<compile_context>
chip_gen: v5e
topology: v5e:2x2
jax: 0.10.0
libtpu: 0.0.40
codegen_flags: <defaults>
</compile_context>

<pallas_src>
import numpy as np

import jax
import jax.numpy as jnp
from jax import lax
from jax.experimental import pallas as pl
from jax.experimental.pallas import tpu as pltpu


# ----------------------------------------------------------------------------
# Fused forward kernel (one batch tile of TB images per grid step)
# ----------------------------------------------------------------------------
def _fused_kernel(x_ref, m1_ref, b1_ref, m2_ref, b2_ref, f_ref, fb_ref,
                  w2t_ref, fc2b_ref, owt_ref, ob_ref, out_ref, c1_ref):
    f32 = jnp.float32
    cdt = m1_ref.dtype            # MXU operand dtype (bf16), f32 accumulation
    TB = x_ref.shape[0]

    # ---- conv1 (1->6, 5x5, valid) as ONE matmul, K = 5*28 = 140 ------------
    lhs1 = jnp.concatenate(
        [x_ref[:, di:di + 24, :].reshape(TB * 24, 28) for di in range(5)],
        axis=1).astype(cdt)                                    # (TB*24, 140)
    a1 = jnp.dot(lhs1, m1_ref[...], preferred_element_type=f32)
    a1 = jnp.maximum(a1 + b1_ref[...], 0.0)                    # (TB*24, 144)
    c1_ref[...] = a1.reshape(TB, 24, 144)                      # one bulk store

    # ---- pool1 2x2: row pairs (cheap vector loads) + lane-shifted max ------
    # (the shift+concat form is kept over pltpu.roll: identical math to the
    #  validated original; the pooled rows never round-trip through scratch)
    p1 = []
    for p in range(12):
        rm = jnp.maximum(c1_ref[:, 2 * p, :], c1_ref[:, 2 * p + 1, :])
        rs = jnp.concatenate([rm[:, 6:], rm[:, :6]], axis=1)
        p1.append(jnp.maximum(rm, rs))                         # (TB, 144) dilated

    # ---- conv2 (6->12, 5x5, valid): per output row, ONE matmul K = 720 -----
    c2 = []
    for r in range(8):
        lhs2 = jnp.concatenate([p1[r + di] for di in range(5)],
                               axis=1).astype(cdt)             # (TB, 720)
        a2 = jnp.dot(lhs2, m2_ref[...], preferred_element_type=f32)
        c2.append(jnp.maximum(a2 + b2_ref[...], 0.0))          # (TB, 96)

    # ---- pool2 2x2 fused with fc1: ONE matmul, K = 4*96 = 384 --------------
    pm = []
    for h in range(4):
        rm = jnp.maximum(c2[2 * h], c2[2 * h + 1])
        rs = jnp.concatenate([rm[:, 12:], rm[:, :12]], axis=1)
        pm.append(jnp.maximum(rm, rs))                         # (TB, 96) dilated
    lhsf = jnp.concatenate(pm, axis=1).astype(cdt)             # (TB, 384)
    t1 = jnp.maximum(
        jnp.dot(lhsf, f_ref[...], preferred_element_type=f32) + fb_ref[...],
        0.0)                                                   # (TB, 120)

    # ---- fc2 + ReLU, out (lane-dense, padded to 128) ------------------------
    t2 = jnp.maximum(
        jnp.dot(t1.astype(cdt), w2t_ref[...], preferred_element_type=f32)
        + fc2b_ref[...], 0.0)                                  # (TB, 60)
    t3 = (jnp.dot(t2.astype(cdt), owt_ref[...], preferred_element_type=f32)
          + ob_ref[...])                                       # (TB, 128)
    out_ref[...] = t3.astype(out_ref.dtype)


# ----------------------------------------------------------------------------
# Host-side one-time weight packing (fused banded matrices, bf16 MXU operands)
# ----------------------------------------------------------------------------
def pack_params(params, compute_dtype=jnp.bfloat16):
    w1 = np.asarray(params["conv1_w"], np.float32)   # (6,1,5,5)
    b1 = np.asarray(params["conv1_b"], np.float32)   # (6,)
    w2 = np.asarray(params["conv2_w"], np.float32)   # (12,6,5,5)
    b2 = np.asarray(params["conv2_b"], np.float32)   # (12,)
    fc1w = np.asarray(params["fc1_w"], np.float32)   # (120,192)
    fc1b = np.asarray(params["fc1_b"], np.float32)
    fc2w = np.asarray(params["fc2_w"], np.float32)   # (60,120)
    fc2b = np.asarray(params["fc2_b"], np.float32)
    ow = np.asarray(params["out_w"], np.float32)     # (10,60)
    ob = np.asarray(params["out_b"], np.float32)

    # conv1: fused banded matrix, LHS lanes = [row r+0 | ... | row r+4] (5*28)
    m1 = np.zeros((5, 28, 24 * 6), np.float32)
    for di in range(5):
        for j in range(24):
            for dj in range(5):
                m1[di, j + dj, j * 6:(j + 1) * 6] = w1[:, 0, di, dj]
    m1 = m1.reshape(5 * 28, 144)                                # (140,144)
    b1r = np.tile(b1, 24)[None, :]                              # (1,144)

    # conv2: input lanes are dilated (valid at even 6-lane groups); fused K=720
    m2 = np.zeros((5, 144, 8 * 12), np.float32)
    for di in range(5):
        for ww in range(8):
            for dj in range(5):
                q = ww + dj
                for c in range(6):
                    m2[di, (2 * q) * 6 + c, ww * 12:(ww + 1) * 12] = w2[:, c, di, dj]
    m2 = m2.reshape(5 * 144, 96)                                # (720,96)
    b2r = np.tile(b2, 8)[None, :]                               # (1,96)

    # fc1 folded with pool2 (dilated cols), fused over the 4 pooled rows K=384
    f = np.zeros((4, 96, 120), np.float32)
    for h in range(4):
        for w in range(4):
            for c in range(12):
                f[h, (2 * w) * 12 + c, :] = fc1w[:, c * 16 + h * 4 + w]
    f = f.reshape(4 * 96, 120)                                  # (384,120)
    fbr = fc1b[None, :]                                         # (1,120)

    fc2wt = fc2w.T.copy()                                       # (120,60)
    fc2br = fc2b[None, :]                                       # (1,60)

    owt = np.zeros((60, 128), np.float32)                       # lane-dense out
    owt[:, :10] = ow.T
    obr = np.zeros((1, 128), np.float32)
    obr[0, :10] = ob

    wd = compute_dtype
    return {
        "m1": jnp.asarray(m1, wd), "b1": jnp.asarray(b1r),
        "m2": jnp.asarray(m2, wd), "b2": jnp.asarray(b2r),
        "f": jnp.asarray(f, wd), "fb": jnp.asarray(fbr),
        "fc2wt": jnp.asarray(fc2wt, wd), "fc2b": jnp.asarray(fc2br),
        "owt": jnp.asarray(owt, wd), "ob": jnp.asarray(obr),
    }


# ----------------------------------------------------------------------------
# Batch-tile selection: large tiles, >=2 grid steps when possible (v7x), and
# a tile that divides the batch so no padding copy is needed in common cases.
# ----------------------------------------------------------------------------
def _pick_tb(B, cap):
    cap = max(8, (min(int(cap), 256) // 8) * 8)
    if B <= cap:
        if B >= 16 and B % 2 == 0 and (B // 2) % 8 == 0:
            return B // 2                     # two tiles -> megacore sharding
        return B                              # single tile == full array
    for tb in range(cap, 7, -8):              # largest multiple of 8 dividing B
        if B % tb == 0:
            return tb
    return cap                                # ragged tail -> one-time pad


# ----------------------------------------------------------------------------
# Wrapper: single fused pallas_call, grid over batch tiles
# ----------------------------------------------------------------------------
def network_forward(x, packed, block_batch=128):
    """x: (B, 1, 28, 28) float32 -> logits (B, 10)."""
    B = x.shape[0]
    x3 = x.reshape(B, 28, 28).astype(jnp.float32)

    TB = _pick_tb(B, block_batch)
    if B % TB != 0:
        Bp = pl.cdiv(B, TB) * TB
        x3 = jnp.concatenate(
            [x3, jnp.zeros((Bp - B, 28, 28), jnp.float32)], axis=0)
    else:
        Bp = B

    grid_spec = pltpu.PrefetchScalarGridSpec(
        num_scalar_prefetch=0,
        grid=(Bp // TB,),
        in_specs=[
            pl.BlockSpec((TB, 28, 28), lambda i: (i, 0, 0)),     # input tile
            pl.BlockSpec((140, 144), lambda i: (0, 0)),          # conv1 banded
            pl.BlockSpec((1, 144), lambda i: (0, 0)),            # conv1 bias
            pl.BlockSpec((720, 96), lambda i: (0, 0)),           # conv2 banded
            pl.BlockSpec((1, 96), lambda i: (0, 0)),             # conv2 bias
            pl.BlockSpec((384, 120), lambda i: (0, 0)),          # fc1 (pool-folded)
            pl.BlockSpec((1, 120), lambda i: (0, 0)),            # fc1 bias
            pl.BlockSpec((120, 60), lambda i: (0, 0)),           # fc2 weight^T
            pl.BlockSpec((1, 60), lambda i: (0, 0)),             # fc2 bias
            pl.BlockSpec((60, 128), lambda i: (0, 0)),           # out weight^T (padded)
            pl.BlockSpec((1, 128), lambda i: (0, 0)),            # out bias (padded)
        ],
        out_specs=pl.BlockSpec((TB, 128), lambda i: (i, 0)),
        scratch_shapes=[
            pltpu.VMEM((TB, 24, 144), jnp.float32),              # conv1 output
        ],
    )
    out = pl.pallas_call(
        _fused_kernel,
        out_shape=jax.ShapeDtypeStruct((Bp, 128), jnp.float32),
        grid_spec=grid_spec,
        compiler_params=pltpu.CompilerParams(
            dimension_semantics=("parallel",),
            vmem_limit_bytes=48 * 1024 * 1024),                  # v5e default is 16 MiB
    )(x3, packed["m1"], packed["b1"], packed["m2"], packed["b2"],
      packed["f"], packed["fb"], packed["fc2wt"], packed["fc2b"],
      packed["owt"], packed["ob"])
    return out[:B, :10]


# ----------------------------------------------------------------------------
# Pure-JAX reference (correctness check only)
# ----------------------------------------------------------------------------
def reference_forward(x, params):
    dn = ("NCHW", "OIHW", "NCHW")

    def conv(x, w, b):
        y = lax.conv_general_dilated(x, w, (1, 1), "VALID", dimension_numbers=dn)
        return jnp.maximum(y + b[None, :, None, None], 0.0)

    def pool(x):
        return lax.reduce_window(x, -jnp.inf, lax.max, (1, 1, 2, 2),
                                 (1, 1, 2, 2), "VALID")

    t = pool(conv(x, params["conv1_w"], params["conv1_b"]))
    t = pool(conv(t, params["conv2_w"], params["conv2_b"]))
    t = t.reshape(-1, 12 * 4 * 4)
    t = jnp.maximum(t @ params["fc1_w"].T + params["fc1_b"], 0.0)
    t = jnp.maximum(t @ params["fc2_w"].T + params["fc2_b"], 0.0)
    return t @ params["out_w"].T + params["out_b"]


def init_params(key):
    ks = jax.random.split(key, 10)

    def lin(k, shape, fan_in):
        return (jax.random.normal(k, shape, jnp.float32) /
                jnp.sqrt(fan_in)).astype(jnp.float32)

    return {
        "conv1_w": lin(ks[0], (6, 1, 5, 5), 25),
        "conv1_b": lin(ks[1], (6,), 25),
        "conv2_w": lin(ks[2], (12, 6, 5, 5), 150),
        "conv2_b": lin(ks[3], (12,), 150),
        "fc1_w": lin(ks[4], (120, 192), 192),
        "fc1_b": lin(ks[5], (120,), 192),
        "fc2_w": lin(ks[6], (60, 120), 120),
        "fc2_b": lin(ks[7], (60,), 120),
        "out_w": lin(ks[8], (10, 60), 60),
        "out_b": lin(ks[9], (10,), 60),
    }


if __name__ == "__main__":
    key = jax.random.PRNGKey(0)
    pkey, xkey = jax.random.split(key)
    params = init_params(pkey)
    packed = pack_params(params)   # one-time host-side packing (bf16 MXU operands)

    B = 2
    x = jax.random.normal(xkey, (B, 1, 28, 28), jnp.float32)

    fwd = jax.jit(network_forward)
    out = jax.block_until_ready(fwd(x, packed))
    assert out.shape == (B, 10), out.shape

    # Kernel uses bf16 MXU operands with f32 accumulation; the tolerance
    # covers bf16 operand rounding accumulated across the 5 matmul layers.
    ref = reference_forward(x, params)
    max_err = float(jnp.max(jnp.abs(out - ref)))
    assert jnp.allclose(out, ref, atol=2e-1, rtol=2e-1), max_err

    print("KERNEL_OK")
</pallas_src>

<mosaic_0001>
module attributes {stable_mosaic.version = 11 : i64} {
  func.func @_fused_kernel(%arg0: i32, %arg1: memref<2x28x28xf32, #tpu.memory_space<vmem>>, %arg2: memref<140x144xbf16, #tpu.memory_space<vmem>>, %arg3: memref<1x144xf32, #tpu.memory_space<vmem>>, %arg4: memref<720x96xbf16, #tpu.memory_space<vmem>>, %arg5: memref<1x96xf32, #tpu.memory_space<vmem>>, %arg6: memref<384x120xbf16, #tpu.memory_space<vmem>>, %arg7: memref<1x120xf32, #tpu.memory_space<vmem>>, %arg8: memref<120x60xbf16, #tpu.memory_space<vmem>>, %arg9: memref<1x60xf32, #tpu.memory_space<vmem>>, %arg10: memref<60x128xbf16, #tpu.memory_space<vmem>>, %arg11: memref<1x128xf32, #tpu.memory_space<vmem>>, %arg12: memref<2x128xf32, #tpu.memory_space<vmem>>, %arg13: memref<2x24x144xf32, #tpu.memory_space<vmem>>) attributes {dimension_semantics = [#tpu.dimension_semantics<parallel>], iteration_bounds = array<i64: 1>, scalar_prefetch = 0 : i64, scratch_operands = 1 : i64, tpu.core_type = #tpu.core_type<tc>, window_params = [{transform_indices = @transform_0, window_bounds = array<i64: 2, 28, 28>}, {pipeline_mode = #tpu.pipeline_mode<synchronous>, transform_indices = @transform_1, window_bounds = array<i64: 140, 144>}, {pipeline_mode = #tpu.pipeline_mode<synchronous>, transform_indices = @transform_2, window_bounds = array<i64: 1, 144>}, {pipeline_mode = #tpu.pipeline_mode<synchronous>, transform_indices = @transform_3, window_bounds = array<i64: 720, 96>}, {pipeline_mode = #tpu.pipeline_mode<synchronous>, transform_indices = @transform_4, window_bounds = array<i64: 1, 96>}, {pipeline_mode = #tpu.pipeline_mode<synchronous>, transform_indices = @transform_5, window_bounds = array<i64: 384, 120>}, {pipeline_mode = #tpu.pipeline_mode<synchronous>, transform_indices = @transform_6, window_bounds = array<i64: 1, 120>}, {pipeline_mode = #tpu.pipeline_mode<synchronous>, transform_indices = @transform_7, window_bounds = array<i64: 120, 60>}, {pipeline_mode = #tpu.pipeline_mode<synchronous>, transform_indices = @transform_8, window_bounds = array<i64: 1, 60>}, {pipeline_mode = #tpu.pipeline_mode<synchronous>, transform_indices = @transform_9, window_bounds = array<i64: 60, 128>}, {pipeline_mode = #tpu.pipeline_mode<synchronous>, transform_indices = @transform_10, window_bounds = array<i64: 1, 128>}, {transform_indices = @transform_11, window_bounds = array<i64: 2, 128>}]} {
    %c0 = arith.constant 0 : index
    %c0_0 = arith.constant 0 : index
    %c0_1 = arith.constant 0 : index
    %0 = vector.load %arg1[%c0, %c0_0, %c0_1] : memref<2x28x28xf32, #tpu.memory_space<vmem>>, vector<2x24x28xf32>
    %1 = vector.shape_cast %0 : vector<2x24x28xf32> to vector<48x28xf32>
    %c0_2 = arith.constant 0 : index
    %c1 = arith.constant 1 : index
    %c0_3 = arith.constant 0 : index
    %2 = vector.load %arg1[%c0_2, %c1, %c0_3] : memref<2x28x28xf32, #tpu.memory_space<vmem>>, vector<2x24x28xf32>
    %3 = vector.shape_cast %2 : vector<2x24x28xf32> to vector<48x28xf32>
    %c0_4 = arith.constant 0 : index
    %c2 = arith.constant 2 : index
    %c0_5 = arith.constant 0 : index
    %4 = vector.load %arg1[%c0_4, %c2, %c0_5] : memref<2x28x28xf32, #tpu.memory_space<vmem>>, vector<2x24x28xf32>
    %5 = vector.shape_cast %4 : vector<2x24x28xf32> to vector<48x28xf32>
    %c0_6 = arith.constant 0 : index
    %c3 = arith.constant 3 : index
    %c0_7 = arith.constant 0 : index
    %6 = vector.load %arg1[%c0_6, %c3, %c0_7] : memref<2x28x28xf32, #tpu.memory_space<vmem>>, vector<2x24x28xf32>
    %7 = vector.shape_cast %6 : vector<2x24x28xf32> to vector<48x28xf32>
    %c0_8 = arith.constant 0 : index
    %c4 = arith.constant 4 : index
    %c0_9 = arith.constant 0 : index
    %8 = vector.load %arg1[%c0_8, %c4, %c0_9] : memref<2x28x28xf32, #tpu.memory_space<vmem>>, vector<2x24x28xf32>
    %9 = vector.shape_cast %8 : vector<2x24x28xf32> to vector<48x28xf32>
    %10 = tpu.concatenate %1, %3, %5, %7, %9 in 1 : vector<48x28xf32>, vector<48x28xf32>, vector<48x28xf32>, vector<48x28xf32>, vector<48x28xf32> -> vector<48x140xf32>
    %11 = arith.truncf %10 : vector<48x140xf32> to vector<48x140xbf16>
    %c0_10 = arith.constant 0 : index
    %c0_11 = arith.constant 0 : index
    %12 = vector.load %arg2[%c0_10, %c0_11] : memref<140x144xbf16, #tpu.memory_space<vmem>>, vector<140x144xbf16>
    %cst = arith.constant dense<0.000000e+00> : vector<48x144xf32>
    %13 = tpu.matmul %11, %12, %cst {dimension_numbers = #tpu.dot_dimension_numbers<[1], [0], [0], [1], [0, 0, 1, 1], [], []>} : vector<48x140xbf16>, vector<140x144xbf16>, vector<48x144xf32> -> vector<48x144xf32>
    %c0_12 = arith.constant 0 : index
    %c0_13 = arith.constant 0 : index
    %14 = vector.load %arg3[%c0_12, %c0_13] : memref<1x144xf32, #tpu.memory_space<vmem>>, vector<1x144xf32>
    %15 = vector.broadcast %14 : vector<1x144xf32> to vector<48x144xf32>
    %16 = arith.addf %13, %15 : vector<48x144xf32>
    %cst_14 = arith.constant 0.000000e+00 : f32
    %17 = vector.broadcast %cst_14 : f32 to vector<48x144xf32>
    %18 = arith.maximumf %16, %17 : vector<48x144xf32>
    %19 = vector.shape_cast %18 : vector<48x144xf32> to vector<2x24x144xf32>
    %c0_15 = arith.constant 0 : index
    %c0_16 = arith.constant 0 : index
    %c0_17 = arith.constant 0 : index
    %20 = vector.load %arg13[%c0_15, %c0_16, %c0_17] : memref<2x24x144xf32, #tpu.memory_space<vmem>>, vector<2x24x144xf32>
    tpu.vector_store %arg13[%c0_15, %c0_16, %c0_17], %19 {strides = array<i32>} : memref<2x24x144xf32, #tpu.memory_space<vmem>>, vector<2x24x144xf32>,
    %c0_18 = arith.constant 0 : index
    %c0_19 = arith.constant 0 : index
    %c0_20 = arith.constant 0 : index
    %21 = vector.load %arg13[%c0_18, %c0_19, %c0_20] : memref<2x24x144xf32, #tpu.memory_space<vmem>>, vector<2x1x144xf32>
    %22 = vector.shape_cast %21 : vector<2x1x144xf32> to vector<2x144xf32>
    %c0_21 = arith.constant 0 : index
    %c1_22 = arith.constant 1 : index
    %c0_23 = arith.constant 0 : index
    %23 = vector.load %arg13[%c0_21, %c1_22, %c0_23] : memref<2x24x144xf32, #tpu.memory_space<vmem>>, vector<2x1x144xf32>
    %24 = vector.shape_cast %23 : vector<2x1x144xf32> to vector<2x144xf32>
    %25 = arith.maximumf %22, %24 : vector<2x144xf32>
    %26 = vector.extract_strided_slice %25 {offsets = [0, 6], sizes = [2, 138], strides = [1, 1]} : vector<2x144xf32> to vector<2x138xf32>
    %27 = vector.extract_strided_slice %25 {offsets = [0, 0], sizes = [2, 6], strides = [1, 1]} : vector<2x144xf32> to vector<2x6xf32>
    %28 = tpu.concatenate %26, %27 in 1 : vector<2x138xf32>, vector<2x6xf32> -> vector<2x144xf32>
    %29 = arith.maximumf %25, %28 : vector<2x144xf32>
    %c0_24 = arith.constant 0 : index
    %c2_25 = arith.constant 2 : index
    %c0_26 = arith.constant 0 : index
    %30 = vector.load %arg13[%c0_24, %c2_25, %c0_26] : memref<2x24x144xf32, #tpu.memory_space<vmem>>, vector<2x1x144xf32>
    %31 = vector.shape_cast %30 : vector<2x1x144xf32> to vector<2x144xf32>
    %c0_27 = arith.constant 0 : index
    %c3_28 = arith.constant 3 : index
    %c0_29 = arith.constant 0 : index
    %32 = vector.load %arg13[%c0_27, %c3_28, %c0_29] : memref<2x24x144xf32, #tpu.memory_space<vmem>>, vector<2x1x144xf32>
    %33 = vector.shape_cast %32 : vector<2x1x144xf32> to vector<2x144xf32>
    %34 = arith.maximumf %31, %33 : vector<2x144xf32>
    %35 = vector.extract_strided_slice %34 {offsets = [0, 6], sizes = [2, 138], strides = [1, 1]} : vector<2x144xf32> to vector<2x138xf32>
    %36 = vector.extract_strided_slice %34 {offsets = [0, 0], sizes = [2, 6], strides = [1, 1]} : vector<2x144xf32> to vector<2x6xf32>
    %37 = tpu.concatenate %35, %36 in 1 : vector<2x138xf32>, vector<2x6xf32> -> vector<2x144xf32>
    %38 = arith.maximumf %34, %37 : vector<2x144xf32>
    %c0_30 = arith.constant 0 : index
    %c4_31 = arith.constant 4 : index
    %c0_32 = arith.constant 0 : index
    %39 = vector.load %arg13[%c0_30, %c4_31, %c0_32] : memref<2x24x144xf32, #tpu.memory_space<vmem>>, vector<2x1x144xf32>
    %40 = vector.shape_cast %39 : vector<2x1x144xf32> to vector<2x144xf32>
    %c0_33 = arith.constant 0 : index
    %c5 = arith.constant 5 : index
    %c0_34 = arith.constant 0 : index
    %41 = vector.load %arg13[%c0_33, %c5, %c0_34] : memref<2x24x144xf32, #tpu.memory_space<vmem>>, vector<2x1x144xf32>
    %42 = vector.shape_cast %41 : vector<2x1x144xf32> to vector<2x144xf32>
    %43 = arith.maximumf %40, %42 : vector<2x144xf32>
    %44 = vector.extract_strided_slice %43 {offsets = [0, 6], sizes = [2, 138], strides = [1, 1]} : vector<2x144xf32> to vector<2x138xf32>
    %45 = vector.extract_strided_slice %43 {offsets = [0, 0], sizes = [2, 6], strides = [1, 1]} : vector<2x144xf32> to vector<2x6xf32>
    %46 = tpu.concatenate %44, %45 in 1 : vector<2x138xf32>, vector<2x6xf32> -> vector<2x144xf32>
    %47 = arith.maximumf %43, %46 : vector<2x144xf32>
    %c0_35 = arith.constant 0 : index
    %c6 = arith.constant 6 : index
    %c0_36 = arith.constant 0 : index
    %48 = vector.load %arg13[%c0_35, %c6, %c0_36] : memref<2x24x144xf32, #tpu.memory_space<vmem>>, vector<2x1x144xf32>
    %49 = vector.shape_cast %48 : vector<2x1x144xf32> to vector<2x144xf32>
    %c0_37 = arith.constant 0 : index
    %c7 = arith.constant 7 : index
    %c0_38 = arith.constant 0 : index
    %50 = vector.load %arg13[%c0_37, %c7, %c0_38] : memref<2x24x144xf32, #tpu.memory_space<vmem>>, vector<2x1x144xf32>
    %51 = vector.shape_cast %50 : vector<2x1x144xf32> to vector<2x144xf32>
    %52 = arith.maximumf %49, %51 : vector<2x144xf32>
    %53 = vector.extract_strided_slice %52 {offsets = [0, 6], sizes = [2, 138], strides = [1, 1]} : vector<2x144xf32> to vector<2x138xf32>
    %54 = vector.extract_strided_slice %52 {offsets = [0, 0], sizes = [2, 6], strides = [1, 1]} : vector<2x144xf32> to vector<2x6xf32>
    %55 = tpu.concatenate %53, %54 in 1 : vector<2x138xf32>, vector<2x6xf32> -> vector<2x144xf32>
    %56 = arith.maximumf %52, %55 : vector<2x144xf32>
    %c0_39 = arith.constant 0 : index
    %c8 = arith.constant 8 : index
    %c0_40 = arith.constant 0 : index
    %57 = vector.load %arg13[%c0_39, %c8, %c0_40] : memref<2x24x144xf32, #tpu.memory_space<vmem>>, vector<2x1x144xf32>
    %58 = vector.shape_cast %57 : vector<2x1x144xf32> to vector<2x144xf32>
    %c0_41 = arith.constant 0 : index
    %c9 = arith.constant 9 : index
    %c0_42 = arith.constant 0 : index
    %59 = vector.load %arg13[%c0_41, %c9, %c0_42] : memref<2x24x144xf32, #tpu.memory_space<vmem>>, vector<2x1x144xf32>
    %60 = vector.shape_cast %59 : vector<2x1x144xf32> to vector<2x144xf32>
    %61 = arith.maximumf %58, %60 : vector<2x144xf32>
    %62 = vector.extract_strided_slice %61 {offsets = [0, 6], sizes = [2, 138], strides = [1, 1]} : vector<2x144xf32> to vector<2x138xf32>
    %63 = vector.extract_strided_slice %61 {offsets = [0, 0], sizes = [2, 6], strides = [1, 1]} : vector<2x144xf32> to vector<2x6xf32>
    %64 = tpu.concatenate %62, %63 in 1 : vector<2x138xf32>, vector<2x6xf32> -> vector<2x144xf32>
    %65 = arith.maximumf %61, %64 : vector<2x144xf32>
    %c0_43 = arith.constant 0 : index
    %c10 = arith.constant 10 : index
    %c0_44 = arith.constant 0 : index
    %66 = vector.load %arg13[%c0_43, %c10, %c0_44] : memref<2x24x144xf32, #tpu.memory_space<vmem>>, vector<2x1x144xf32>
    %67 = vector.shape_cast %66 : vector<2x1x144xf32> to vector<2x144xf32>
    %c0_45 = arith.constant 0 : index
    %c11 = arith.constant 11 : index
    %c0_46 = arith.constant 0 : index
    %68 = vector.load %arg13[%c0_45, %c11, %c0_46] : memref<2x24x144xf32, #tpu.memory_space<vmem>>, vector<2x1x144xf32>
    %69 = vector.shape_cast %68 : vector<2x1x144xf32> to vector<2x144xf32>
    %70 = arith.maximumf %67, %69 : vector<2x144xf32>
    %71 = vector.extract_strided_slice %70 {offsets = [0, 6], sizes = [2, 138], strides = [1, 1]} : vector<2x144xf32> to vector<2x138xf32>
    %72 = vector.extract_strided_slice %70 {offsets = [0, 0], sizes = [2, 6], strides = [1, 1]} : vector<2x144xf32> to vector<2x6xf32>
    %73 = tpu.concatenate %71, %72 in 1 : vector<2x138xf32>, vector<2x6xf32> -> vector<2x144xf32>
    %74 = arith.maximumf %70, %73 : vector<2x144xf32>
    %c0_47 = arith.constant 0 : index
    %c12 = arith.constant 12 : index
    %c0_48 = arith.constant 0 : index
    %75 = vector.load %arg13[%c0_47, %c12, %c0_48] : memref<2x24x144xf32, #tpu.memory_space<vmem>>, vector<2x1x144xf32>
    %76 = vector.shape_cast %75 : vector<2x1x144xf32> to vector<2x144xf32>
    %c0_49 = arith.constant 0 : index
    %c13 = arith.constant 13 : index
    %c0_50 = arith.constant 0 : index
    %77 = vector.load %arg13[%c0_49, %c13, %c0_50] : memref<2x24x144xf32, #tpu.memory_space<vmem>>, vector<2x1x144xf32>
    %78 = vector.shape_cast %77 : vector<2x1x144xf32> to vector<2x144xf32>
    %79 = arith.maximumf %76, %78 : vector<2x144xf32>
    %80 = vector.extract_strided_slice %79 {offsets = [0, 6], sizes = [2, 138], strides = [1, 1]} : vector<2x144xf32> to vector<2x138xf32>
    %81 = vector.extract_strided_slice %79 {offsets = [0, 0], sizes = [2, 6], strides = [1, 1]} : vector<2x144xf32> to vector<2x6xf32>
    %82 = tpu.concatenate %80, %81 in 1 : vector<2x138xf32>, vector<2x6xf32> -> vector<2x144xf32>
    %83 = arith.maximumf %79, %82 : vector<2x144xf32>
    %c0_51 = arith.constant 0 : index
    %c14 = arith.constant 14 : index
    %c0_52 = arith.constant 0 : index
    %84 = vector.load %arg13[%c0_51, %c14, %c0_52] : memref<2x24x144xf32, #tpu.memory_space<vmem>>, vector<2x1x144xf32>
    %85 = vector.shape_cast %84 : vector<2x1x144xf32> to vector<2x144xf32>
    %c0_53 = arith.constant 0 : index
    %c15 = arith.constant 15 : index
    %c0_54 = arith.constant 0 : index
    %86 = vector.load %arg13[%c0_53, %c15, %c0_54] : memref<2x24x144xf32, #tpu.memory_space<vmem>>, vector<2x1x144xf32>
    %87 = vector.shape_cast %86 : vector<2x1x144xf32> to vector<2x144xf32>
    %88 = arith.maximumf %85, %87 : vector<2x144xf32>
    %89 = vector.extract_strided_slice %88 {offsets = [0, 6], sizes = [2, 138], strides = [1, 1]} : vector<2x144xf32> to vector<2x138xf32>
    %90 = vector.extract_strided_slice %88 {offsets = [0, 0], sizes = [2, 6], strides = [1, 1]} : vector<2x144xf32> to vector<2x6xf32>
    %91 = tpu.concatenate %89, %90 in 1 : vector<2x138xf32>, vector<2x6xf32> -> vector<2x144xf32>
    %92 = arith.maximumf %88, %91 : vector<2x144xf32>
    %c0_55 = arith.constant 0 : index
    %c16 = arith.constant 16 : index
    %c0_56 = arith.constant 0 : index
    %93 = vector.load %arg13[%c0_55, %c16, %c0_56] : memref<2x24x144xf32, #tpu.memory_space<vmem>>, vector<2x1x144xf32>
    %94 = vector.shape_cast %93 : vector<2x1x144xf32> to vector<2x144xf32>
    %c0_57 = arith.constant 0 : index
    %c17 = arith.constant 17 : index
    %c0_58 = arith.constant 0 : index
    %95 = vector.load %arg13[%c0_57, %c17, %c0_58] : memref<2x24x144xf32, #tpu.memory_space<vmem>>, vector<2x1x144xf32>
    %96 = vector.shape_cast %95 : vector<2x1x144xf32> to vector<2x144xf32>
    %97 = arith.maximumf %94, %96 : vector<2x144xf32>
    %98 = vector.extract_strided_slice %97 {offsets = [0, 6], sizes = [2, 138], strides = [1, 1]} : vector<2x144xf32> to vector<2x138xf32>
    %99 = vector.extract_strided_slice %97 {offsets = [0, 0], sizes = [2, 6], strides = [1, 1]} : vector<2x144xf32> to vector<2x6xf32>
    %100 = tpu.concatenate %98, %99 in 1 : vector<2x138xf32>, vector<2x6xf32> -> vector<2x144xf32>
    %101 = arith.maximumf %97, %100 : vector<2x144xf32>
    %c0_59 = arith.constant 0 : index
    %c18 = arith.constant 18 : index
    %c0_60 = arith.constant 0 : index
    %102 = vector.load %arg13[%c0_59, %c18, %c0_60] : memref<2x24x144xf32, #tpu.memory_space<vmem>>, vector<2x1x144xf32>
    %103 = vector.shape_cast %102 : vector<2x1x144xf32> to vector<2x144xf32>
    %c0_61 = arith.constant 0 : index
    %c19 = arith.constant 19 : index
    %c0_62 = arith.constant 0 : index
    %104 = vector.load %arg13[%c0_61, %c19, %c0_62] : memref<2x24x144xf32, #tpu.memory_space<vmem>>, vector<2x1x144xf32>
    %105 = vector.shape_cast %104 : vector<2x1x144xf32> to vector<2x144xf32>
    %106 = arith.maximumf %103, %105 : vector<2x144xf32>
    %107 = vector.extract_strided_slice %106 {offsets = [0, 6], sizes = [2, 138], strides = [1, 1]} : vector<2x144xf32> to vector<2x138xf32>
    %108 = vector.extract_strided_slice %106 {offsets = [0, 0], sizes = [2, 6], strides = [1, 1]} : vector<2x144xf32> to vector<2x6xf32>
    %109 = tpu.concatenate %107, %108 in 1 : vector<2x138xf32>, vector<2x6xf32> -> vector<2x144xf32>
    %110 = arith.maximumf %106, %109 : vector<2x144xf32>
    %c0_63 = arith.constant 0 : index
    %c20 = arith.constant 20 : index
    %c0_64 = arith.constant 0 : index
    %111 = vector.load %arg13[%c0_63, %c20, %c0_64] : memref<2x24x144xf32, #tpu.memory_space<vmem>>, vector<2x1x144xf32>
    %112 = vector.shape_cast %111 : vector<2x1x144xf32> to vector<2x144xf32>
    %c0_65 = arith.constant 0 : index
    %c21 = arith.constant 21 : index
    %c0_66 = arith.constant 0 : index
    %113 = vector.load %arg13[%c0_65, %c21, %c0_66] : memref<2x24x144xf32, #tpu.memory_space<vmem>>, vector<2x1x144xf32>
    %114 = vector.shape_cast %113 : vector<2x1x144xf32> to vector<2x144xf32>
    %115 = arith.maximumf %112, %114 : vector<2x144xf32>
    %116 = vector.extract_strided_slice %115 {offsets = [0, 6], sizes = [2, 138], strides = [1, 1]} : vector<2x144xf32> to vector<2x138xf32>
    %117 = vector.extract_strided_slice %115 {offsets = [0, 0], sizes = [2, 6], strides = [1, 1]} : vector<2x144xf32> to vector<2x6xf32>
    %118 = tpu.concatenate %116, %117 in 1 : vector<2x138xf32>, vector<2x6xf32> -> vector<2x144xf32>
    %119 = arith.maximumf %115, %118 : vector<2x144xf32>
    %c0_67 = arith.constant 0 : index
    %c22 = arith.constant 22 : index
    %c0_68 = arith.constant 0 : index
    %120 = vector.load %arg13[%c0_67, %c22, %c0_68] : memref<2x24x144xf32, #tpu.memory_space<vmem>>, vector<2x1x144xf32>
    %121 = vector.shape_cast %120 : vector<2x1x144xf32> to vector<2x144xf32>
    %c0_69 = arith.constant 0 : index
    %c23 = arith.constant 23 : index
    %c0_70 = arith.constant 0 : index
    %122 = vector.load %arg13[%c0_69, %c23, %c0_70] : memref<2x24x144xf32, #tpu.memory_space<vmem>>, vector<2x1x144xf32>
    %123 = vector.shape_cast %122 : vector<2x1x144xf32> to vector<2x144xf32>
    %124 = arith.maximumf %121, %123 : vector<2x144xf32>
    %125 = vector.extract_strided_slice %124 {offsets = [0, 6], sizes = [2, 138], strides = [1, 1]} : vector<2x144xf32> to vector<2x138xf32>
    %126 = vector.extract_strided_slice %124 {offsets = [0, 0], sizes = [2, 6], strides = [1, 1]} : vector<2x144xf32> to vector<2x6xf32>
    %127 = tpu.concatenate %125, %126 in 1 : vector<2x138xf32>, vector<2x6xf32> -> vector<2x144xf32>
    %128 = arith.maximumf %124, %127 : vector<2x144xf32>
    %129 = tpu.concatenate %29, %38, %47, %56, %65 in 1 : vector<2x144xf32>, vector<2x144xf32>, vector<2x144xf32>, vector<2x144xf32>, vector<2x144xf32> -> vector<2x720xf32>
    %130 = arith.truncf %129 : vector<2x720xf32> to vector<2x720xbf16>
    %c0_71 = arith.constant 0 : index
    %c0_72 = arith.constant 0 : index
    %131 = vector.load %arg4[%c0_71, %c0_72] : memref<720x96xbf16, #tpu.memory_space<vmem>>, vector<720x96xbf16>
    %cst_73 = arith.constant dense<0.000000e+00> : vector<2x96xf32>
    %132 = tpu.matmul %130, %131, %cst_73 {dimension_numbers = #tpu.dot_dimension_numbers<[1], [0], [0], [1], [0, 0, 1, 1], [], []>} : vector<2x720xbf16>, vector<720x96xbf16>, vector<2x96xf32> -> vector<2x96xf32>
    %c0_74 = arith.constant 0 : index
    %c0_75 = arith.constant 0 : index
    %133 = vector.load %arg5[%c0_74, %c0_75] : memref<1x96xf32, #tpu.memory_space<vmem>>, vector<1x96xf32>
    %134 = vector.broadcast %133 : vector<1x96xf32> to vector<2x96xf32>
    %135 = arith.addf %132, %134 : vector<2x96xf32>
    %cst_76 = arith.constant 0.000000e+00 : f32
    %136 = vector.broadcast %cst_76 : f32 to vector<2x96xf32>
    %137 = arith.maximumf %135, %136 : vector<2x96xf32>
    %138 = tpu.concatenate %38, %47, %56, %65, %74 in 1 : vector<2x144xf32>, vector<2x144xf32>, vector<2x144xf32>, vector<2x144xf32>, vector<2x144xf32> -> vector<2x720xf32>
    %139 = arith.truncf %138 : vector<2x720xf32> to vector<2x720xbf16>
    %c0_77 = arith.constant 0 : index
    %c0_78 = arith.constant 0 : index
    %140 = vector.load %arg4[%c0_77, %c0_78] : memref<720x96xbf16, #tpu.memory_space<vmem>>, vector<720x96xbf16>
    %cst_79 = arith.constant dense<0.000000e+00> : vector<2x96xf32>
    %141 = tpu.matmul %139, %140, %cst_79 {dimension_numbers = #tpu.dot_dimension_numbers<[1], [0], [0], [1], [0, 0, 1, 1], [], []>} : vector<2x720xbf16>, vector<720x96xbf16>, vector<2x96xf32> -> vector<2x96xf32>
    %c0_80 = arith.constant 0 : index
    %c0_81 = arith.constant 0 : index
    %142 = vector.load %arg5[%c0_80, %c0_81] : memref<1x96xf32, #tpu.memory_space<vmem>>, vector<1x96xf32>
    %143 = vector.broadcast %142 : vector<1x96xf32> to vector<2x96xf32>
    %144 = arith.addf %141, %143 : vector<2x96xf32>
    %cst_82 = arith.constant 0.000000e+00 : f32
    %145 = vector.broadcast %cst_82 : f32 to vector<2x96xf32>
    %146 = arith.maximumf %144, %145 : vector<2x96xf32>
    %147 = tpu.concatenate %47, %56, %65, %74, %83 in 1 : vector<2x144xf32>, vector<2x144xf32>, vector<2x144xf32>, vector<2x144xf32>, vector<2x144xf32> -> vector<2x720xf32>
    %148 = arith.truncf %147 : vector<2x720xf32> to vector<2x720xbf16>
    %c0_83 = arith.constant 0 : index
    %c0_84 = arith.constant 0 : index
    %149 = vector.load %arg4[%c0_83, %c0_84] : memref<720x96xbf16, #tpu.memory_space<vmem>>, vector<720x96xbf16>
    %cst_85 = arith.constant dense<0.000000e+00> : vector<2x96xf32>
    %150 = tpu.matmul %148, %149, %cst_85 {dimension_numbers = #tpu.dot_dimension_numbers<[1], [0], [0], [1], [0, 0, 1, 1], [], []>} : vector<2x720xbf16>, vector<720x96xbf16>, vector<2x96xf32> -> vector<2x96xf32>
    %c0_86 = arith.constant 0 : index
    %c0_87 = arith.constant 0 : index
    %151 = vector.load %arg5[%c0_86, %c0_87] : memref<1x96xf32, #tpu.memory_space<vmem>>, vector<1x96xf32>
    %152 = vector.broadcast %151 : vector<1x96xf32> to vector<2x96xf32>
    %153 = arith.addf %150, %152 : vector<2x96xf32>
    %cst_88 = arith.constant 0.000000e+00 : f32
    %154 = vector.broadcast %cst_88 : f32 to vector<2x96xf32>
    %155 = arith.maximumf %153, %154 : vector<2x96xf32>
    %156 = tpu.concatenate %56, %65, %74, %83, %92 in 1 : vector<2x144xf32>, vector<2x144xf32>, vector<2x144xf32>, vector<2x144xf32>, vector<2x144xf32> -> vector<2x720xf32>
    %157 = arith.truncf %156 : vector<2x720xf32> to vector<2x720xbf16>
    %c0_89 = arith.constant 0 : index
    %c0_90 = arith.constant 0 : index
    %158 = vector.load %arg4[%c0_89, %c0_90] : memref<720x96xbf16, #tpu.memory_space<vmem>>, vector<720x96xbf16>
    %cst_91 = arith.constant dense<0.000000e+00> : vector<2x96xf32>
    %159 = tpu.matmul %157, %158, %cst_91 {dimension_numbers = #tpu.dot_dimension_numbers<[1], [0], [0], [1], [0, 0, 1, 1], [], []>} : vector<2x720xbf16>, vector<720x96xbf16>, vector<2x96xf32> -> vector<2x96xf32>
    %c0_92 = arith.constant 0 : index
    %c0_93 = arith.constant 0 : index
    %160 = vector.load %arg5[%c0_92, %c0_93] : memref<1x96xf32, #tpu.memory_space<vmem>>, vector<1x96xf32>
    %161 = vector.broadcast %160 : vector<1x96xf32> to vector<2x96xf32>
    %162 = arith.addf %159, %161 : vector<2x96xf32>
    %cst_94 = arith.constant 0.000000e+00 : f32
    %163 = vector.broadcast %cst_94 : f32 to vector<2x96xf32>
    %164 = arith.maximumf %162, %163 : vector<2x96xf32>
    %165 = tpu.concatenate %65, %74, %83, %92, %101 in 1 : vector<2x144xf32>, vector<2x144xf32>, vector<2x144xf32>, vector<2x144xf32>, vector<2x144xf32> -> vector<2x720xf32>
    %166 = arith.truncf %165 : vector<2x720xf32> to vector<2x720xbf16>
    %c0_95 = arith.constant 0 : index
    %c0_96 = arith.constant 0 : index
    %167 = vector.load %arg4[%c0_95, %c0_96] : memref<720x96xbf16, #tpu.memory_space<vmem>>, vector<720x96xbf16>
    %cst_97 = arith.constant dense<0.000000e+00> : vector<2x96xf32>
    %168 = tpu.matmul %166, %167, %cst_97 {dimension_numbers = #tpu.dot_dimension_numbers<[1], [0], [0], [1], [0, 0, 1, 1], [], []>} : vector<2x720xbf16>, vector<720x96xbf16>, vector<2x96xf32> -> vector<2x96xf32>
    %c0_98 = arith.constant 0 : index
    %c0_99 = arith.constant 0 : index
    %169 = vector.load %arg5[%c0_98, %c0_99] : memref<1x96xf32, #tpu.memory_space<vmem>>, vector<1x96xf32>
    %170 = vector.broadcast %169 : vector<1x96xf32> to vector<2x96xf32>
    %171 = arith.addf %168, %170 : vector<2x96xf32>
    %cst_100 = arith.constant 0.000000e+00 : f32
    %172 = vector.broadcast %cst_100 : f32 to vector<2x96xf32>
    %173 = arith.maximumf %171, %172 : vector<2x96xf32>
    %174 = tpu.concatenate %74, %83, %92, %101, %110 in 1 : vector<2x144xf32>, vector<2x144xf32>, vector<2x144xf32>, vector<2x144xf32>, vector<2x144xf32> -> vector<2x720xf32>
    %175 = arith.truncf %174 : vector<2x720xf32> to vector<2x720xbf16>
    %c0_101 = arith.constant 0 : index
    %c0_102 = arith.constant 0 : index
    %176 = vector.load %arg4[%c0_101, %c0_102] : memref<720x96xbf16, #tpu.memory_space<vmem>>, vector<720x96xbf16>
    %cst_103 = arith.constant dense<0.000000e+00> : vector<2x96xf32>
    %177 = tpu.matmul %175, %176, %cst_103 {dimension_numbers = #tpu.dot_dimension_numbers<[1], [0], [0], [1], [0, 0, 1, 1], [], []>} : vector<2x720xbf16>, vector<720x96xbf16>, vector<2x96xf32> -> vector<2x96xf32>
    %c0_104 = arith.constant 0 : index
    %c0_105 = arith.constant 0 : index
    %178 = vector.load %arg5[%c0_104, %c0_105] : memref<1x96xf32, #tpu.memory_space<vmem>>, vector<1x96xf32>
    %179 = vector.broadcast %178 : vector<1x96xf32> to vector<2x96xf32>
    %180 = arith.addf %177, %179 : vector<2x96xf32>
    %cst_106 = arith.constant 0.000000e+00 : f32
    %181 = vector.broadcast %cst_106 : f32 to vector<2x96xf32>
    %182 = arith.maximumf %180, %181 : vector<2x96xf32>
    %183 = tpu.concatenate %83, %92, %101, %110, %119 in 1 : vector<2x144xf32>, vector<2x144xf32>, vector<2x144xf32>, vector<2x144xf32>, vector<2x144xf32> -> vector<2x720xf32>
    %184 = arith.truncf %183 : vector<2x720xf32> to vector<2x720xbf16>
    %c0_107 = arith.constant 0 : index
    %c0_108 = arith.constant 0 : index
    %185 = vector.load %arg4[%c0_107, %c0_108] : memref<720x96xbf16, #tpu.memory_space<vmem>>, vector<720x96xbf16>
    %cst_109 = arith.constant dense<0.000000e+00> : vector<2x96xf32>
    %186 = tpu.matmul %184, %185, %cst_109 {dimension_numbers = #tpu.dot_dimension_numbers<[1], [0], [0], [1], [0, 0, 1, 1], [], []>} : vector<2x720xbf16>, vector<720x96xbf16>, vector<2x96xf32> -> vector<2x96xf32>
    %c0_110 = arith.constant 0 : index
    %c0_111 = arith.constant 0 : index
    %187 = vector.load %arg5[%c0_110, %c0_111] : memref<1x96xf32, #tpu.memory_space<vmem>>, vector<1x96xf32>
    %188 = vector.broadcast %187 : vector<1x96xf32> to vector<2x96xf32>
    %189 = arith.addf %186, %188 : vector<2x96xf32>
    %cst_112 = arith.constant 0.000000e+00 : f32
    %190 = vector.broadcast %cst_112 : f32 to vector<2x96xf32>
    %191 = arith.maximumf %189, %190 : vector<2x96xf32>
    %192 = tpu.concatenate %92, %101, %110, %119, %128 in 1 : vector<2x144xf32>, vector<2x144xf32>, vector<2x144xf32>, vector<2x144xf32>, vector<2x144xf32> -> vector<2x720xf32>
    %193 = arith.truncf %192 : vector<2x720xf32> to vector<2x720xbf16>
    %c0_113 = arith.constant 0 : index
    %c0_114 = arith.constant 0 : index
    %194 = vector.load %arg4[%c0_113, %c0_114] : memref<720x96xbf16, #tpu.memory_space<vmem>>, vector<720x96xbf16>
    %cst_115 = arith.constant dense<0.000000e+00> : vector<2x96xf32>
    %195 = tpu.matmul %193, %194, %cst_115 {dimension_numbers = #tpu.dot_dimension_numbers<[1], [0], [0], [1], [0, 0, 1, 1], [], []>} : vector<2x720xbf16>, vector<720x96xbf16>, vector<2x96xf32> -> vector<2x96xf32>
    %c0_116 = arith.constant 0 : index
    %c0_117 = arith.constant 0 : index
    %196 = vector.load %arg5[%c0_116, %c0_117] : memref<1x96xf32, #tpu.memory_space<vmem>>, vector<1x96xf32>
    %197 = vector.broadcast %196 : vector<1x96xf32> to vector<2x96xf32>
    %198 = arith.addf %195, %197 : vector<2x96xf32>
    %cst_118 = arith.constant 0.000000e+00 : f32
    %199 = vector.broadcast %cst_118 : f32 to vector<2x96xf32>
    %200 = arith.maximumf %198, %199 : vector<2x96xf32>
    %201 = arith.maximumf %137, %146 : vector<2x96xf32>
    %202 = vector.extract_strided_slice %201 {offsets = [0, 12], sizes = [2, 84], strides = [1, 1]} : vector<2x96xf32> to vector<2x84xf32>
    %203 = vector.extract_strided_slice %201 {offsets = [0, 0], sizes = [2, 12], strides = [1, 1]} : vector<2x96xf32> to vector<2x12xf32>
    %204 = tpu.concatenate %202, %203 in 1 : vector<2x84xf32>, vector<2x12xf32> -> vector<2x96xf32>
    %205 = arith.maximumf %201, %204 : vector<2x96xf32>
    %206 = arith.maximumf %155, %164 : vector<2x96xf32>
    %207 = vector.extract_strided_slice %206 {offsets = [0, 12], sizes = [2, 84], strides = [1, 1]} : vector<2x96xf32> to vector<2x84xf32>
    %208 = vector.extract_strided_slice %206 {offsets = [0, 0], sizes = [2, 12], strides = [1, 1]} : vector<2x96xf32> to vector<2x12xf32>
    %209 = tpu.concatenate %207, %208 in 1 : vector<2x84xf32>, vector<2x12xf32> -> vector<2x96xf32>
    %210 = arith.maximumf %206, %209 : vector<2x96xf32>
    %211 = arith.maximumf %173, %182 : vector<2x96xf32>
    %212 = vector.extract_strided_slice %211 {offsets = [0, 12], sizes = [2, 84], strides = [1, 1]} : vector<2x96xf32> to vector<2x84xf32>
    %213 = vector.extract_strided_slice %211 {offsets = [0, 0], sizes = [2, 12], strides = [1, 1]} : vector<2x96xf32> to vector<2x12xf32>
    %214 = tpu.concatenate %212, %213 in 1 : vector<2x84xf32>, vector<2x12xf32> -> vector<2x96xf32>
    %215 = arith.maximumf %211, %214 : vector<2x96xf32>
    %216 = arith.maximumf %191, %200 : vector<2x96xf32>
    %217 = vector.extract_strided_slice %216 {offsets = [0, 12], sizes = [2, 84], strides = [1, 1]} : vector<2x96xf32> to vector<2x84xf32>
    %218 = vector.extract_strided_slice %216 {offsets = [0, 0], sizes = [2, 12], strides = [1, 1]} : vector<2x96xf32> to vector<2x12xf32>
    %219 = tpu.concatenate %217, %218 in 1 : vector<2x84xf32>, vector<2x12xf32> -> vector<2x96xf32>
    %220 = arith.maximumf %216, %219 : vector<2x96xf32>
    %221 = tpu.concatenate %205, %210, %215, %220 in 1 : vector<2x96xf32>, vector<2x96xf32>, vector<2x96xf32>, vector<2x96xf32> -> vector<2x384xf32>
    %222 = arith.truncf %221 : vector<2x384xf32> to vector<2x384xbf16>
    %c0_119 = arith.constant 0 : index
    %c0_120 = arith.constant 0 : index
    %223 = vector.load %arg6[%c0_119, %c0_120] : memref<384x120xbf16, #tpu.memory_space<vmem>>, vector<384x120xbf16>
    %cst_121 = arith.constant dense<0.000000e+00> : vector<2x120xf32>
    %224 = tpu.matmul %222, %223, %cst_121 {dimension_numbers = #tpu.dot_dimension_numbers<[1], [0], [0], [1], [0, 0, 1, 1], [], []>} : vector<2x384xbf16>, vector<384x120xbf16>, vector<2x120xf32> -> vector<2x120xf32>
    %c0_122 = arith.constant 0 : index
    %c0_123 = arith.constant 0 : index
    %225 = vector.load %arg7[%c0_122, %c0_123] : memref<1x120xf32, #tpu.memory_space<vmem>>, vector<1x120xf32>
    %226 = vector.broadcast %225 : vector<1x120xf32> to vector<2x120xf32>
    %227 = arith.addf %224, %226 : vector<2x120xf32>
    %cst_124 = arith.constant 0.000000e+00 : f32
    %228 = vector.broadcast %cst_124 : f32 to vector<2x120xf32>
    %229 = arith.maximumf %227, %228 : vector<2x120xf32>
    %230 = arith.truncf %229 : vector<2x120xf32> to vector<2x120xbf16>
    %c0_125 = arith.constant 0 : index
    %c0_126 = arith.constant 0 : index
    %231 = vector.load %arg8[%c0_125, %c0_126] : memref<120x60xbf16, #tpu.memory_space<vmem>>, vector<120x60xbf16>
    %cst_127 = arith.constant dense<0.000000e+00> : vector<2x60xf32>
    %232 = tpu.matmul %230, %231, %cst_127 {dimension_numbers = #tpu.dot_dimension_numbers<[1], [0], [0], [1], [0, 0, 1, 1], [], []>} : vector<2x120xbf16>, vector<120x60xbf16>, vector<2x60xf32> -> vector<2x60xf32>
    %c0_128 = arith.constant 0 : index
    %c0_129 = arith.constant 0 : index
    %233 = vector.load %arg9[%c0_128, %c0_129] : memref<1x60xf32, #tpu.memory_space<vmem>>, vector<1x60xf32>
    %234 = vector.broadcast %233 : vector<1x60xf32> to vector<2x60xf32>
    %235 = arith.addf %232, %234 : vector<2x60xf32>
    %cst_130 = arith.constant 0.000000e+00 : f32
    %236 = vector.broadcast %cst_130 : f32 to vector<2x60xf32>
    %237 = arith.maximumf %235, %236 : vector<2x60xf32>
    %238 = arith.truncf %237 : vector<2x60xf32> to vector<2x60xbf16>
    %c0_131 = arith.constant 0 : index
    %c0_132 = arith.constant 0 : index
    %239 = vector.load %arg10[%c0_131, %c0_132] : memref<60x128xbf16, #tpu.memory_space<vmem>>, vector<60x128xbf16>
    %cst_133 = arith.constant dense<0.000000e+00> : vector<2x128xf32>
    %240 = tpu.matmul %238, %239, %cst_133 {dimension_numbers = #tpu.dot_dimension_numbers<[1], [0], [0], [1], [0, 0, 1, 1], [], []>} : vector<2x60xbf16>, vector<60x128xbf16>, vector<2x128xf32> -> vector<2x128xf32>
    %c0_134 = arith.constant 0 : index
    %c0_135 = arith.constant 0 : index
    %241 = vector.load %arg11[%c0_134, %c0_135] : memref<1x128xf32, #tpu.memory_space<vmem>>, vector<1x128xf32>
    %242 = vector.broadcast %241 : vector<1x128xf32> to vector<2x128xf32>
    %243 = arith.addf %240, %242 : vector<2x128xf32>
    %c0_136 = arith.constant 0 : index
    %c0_137 = arith.constant 0 : index
    %244 = vector.load %arg12[%c0_136, %c0_137] : memref<2x128xf32, #tpu.memory_space<vmem>>, vector<2x128xf32>
    tpu.vector_store %arg12[%c0_136, %c0_137], %243 {strides = array<i32>} : memref<2x128xf32, #tpu.memory_space<vmem>>, vector<2x128xf32>,
    return
  }
  func.func @transform_0(%arg0: i32) -> (i32, i32, i32) {
    %c0_i32 = arith.constant 0 : i32
    %c0_i32_0 = arith.constant 0 : i32
    %c0_i32_1 = arith.constant 0 : i32
    return %arg0, %c0_i32, %c0_i32_0 : i32, i32, i32
  }
  func.func @transform_1(%arg0: i32) -> (i32, i32) {
    %c0_i32 = arith.constant 0 : i32
    %c0_i32_0 = arith.constant 0 : i32
    %c0_i32_1 = arith.constant 0 : i32
    return %c0_i32, %c0_i32_0 : i32, i32
  }
  func.func @transform_2(%arg0: i32) -> (i32, i32) {
    %c0_i32 = arith.constant 0 : i32
    %c0_i32_0 = arith.constant 0 : i32
    %c0_i32_1 = arith.constant 0 : i32
    return %c0_i32, %c0_i32_0 : i32, i32
  }
  func.func @transform_3(%arg0: i32) -> (i32, i32) {
    %c0_i32 = arith.constant 0 : i32
    %c0_i32_0 = arith.constant 0 : i32
    %c0_i32_1 = arith.constant 0 : i32
    return %c0_i32, %c0_i32_0 : i32, i32
  }
  func.func @transform_4(%arg0: i32) -> (i32, i32) {
    %c0_i32 = arith.constant 0 : i32
    %c0_i32_0 = arith.constant 0 : i32
    %c0_i32_1 = arith.constant 0 : i32
    return %c0_i32, %c0_i32_0 : i32, i32
  }
  func.func @transform_5(%arg0: i32) -> (i32, i32) {
    %c0_i32 = arith.constant 0 : i32
    %c0_i32_0 = arith.constant 0 : i32
    %c0_i32_1 = arith.constant 0 : i32
    return %c0_i32, %c0_i32_0 : i32, i32
  }
  func.func @transform_6(%arg0: i32) -> (i32, i32) {
    %c0_i32 = arith.constant 0 : i32
    %c0_i32_0 = arith.constant 0 : i32
    %c0_i32_1 = arith.constant 0 : i32
    return %c0_i32, %c0_i32_0 : i32, i32
  }
  func.func @transform_7(%arg0: i32) -> (i32, i32) {
    %c0_i32 = arith.constant 0 : i32
    %c0_i32_0 = arith.constant 0 : i32
    %c0_i32_1 = arith.constant 0 : i32
    return %c0_i32, %c0_i32_0 : i32, i32
  }
  func.func @transform_8(%arg0: i32) -> (i32, i32) {
    %c0_i32 = arith.constant 0 : i32
    %c0_i32_0 = arith.constant 0 : i32
    %c0_i32_1 = arith.constant 0 : i32
    return %c0_i32, %c0_i32_0 : i32, i32
  }
  func.func @transform_9(%arg0: i32) -> (i32, i32) {
    %c0_i32 = arith.constant 0 : i32
    %c0_i32_0 = arith.constant 0 : i32
    %c0_i32_1 = arith.constant 0 : i32
    return %c0_i32, %c0_i32_0 : i32, i32
  }
  func.func @transform_10(%arg0: i32) -> (i32, i32) {
    %c0_i32 = arith.constant 0 : i32
    %c0_i32_0 = arith.constant 0 : i32
    %c0_i32_1 = arith.constant 0 : i32
    return %c0_i32, %c0_i32_0 : i32, i32
  }
  func.func @transform_11(%arg0: i32) -> (i32, i32) {
    %c0_i32 = arith.constant 0 : i32
    %c0_i32_0 = arith.constant 0 : i32
    return %arg0, %c0_i32 : i32, i32
  }
}

</mosaic_0001>

<llo_original>
// kernel: network_forward.1
$region0: #{network_forward.1}
  #allocation0 [shape = 'u32[]', space=smem, size = 0x4, offset = 0x4, fixed_abs, tag = 'smem constant byte address 0x4 - core index']
  #allocation1 [shape = 'u32[72,128]{1,0:T(1,128)}', space=vmem, size = 0x9000, scoped, tag = 'internal scratch']
  #allocation2 [shape = 'f32[2,24,144]{2,1,0:T(8,128)}', space=vmem, size = 0xc000, scoped, tag = 'scratch operand']
  %s0 = inlined_call_operand.vmem [shape: f32[2,28,28], index: 0, kind: input, shape index: {}]
  %s1 = inlined_call_operand.vmem [shape: bf16[140,144], index: 1, kind: input, shape index: {}]
  %s2 = inlined_call_operand.vmem [shape: f32[1,144], index: 2, kind: input, shape index: {}]
  %s3 = inlined_call_operand.vmem [shape: bf16[720,96], index: 3, kind: input, shape index: {}]
  %s4 = inlined_call_operand.vmem [shape: f32[1,96], index: 4, kind: input, shape index: {}]
  %s5 = inlined_call_operand.vmem [shape: bf16[384,120], index: 5, kind: input, shape index: {}]
  %s6 = inlined_call_operand.vmem [shape: f32[1,120], index: 6, kind: input, shape index: {}]
  %s7 = inlined_call_operand.vmem [shape: bf16[120,60], index: 7, kind: input, shape index: {}]
  %s8 = inlined_call_operand.vmem [shape: f32[1,60], index: 8, kind: input, shape index: {}]
  %s9 = inlined_call_operand.vmem [shape: bf16[60,128], index: 9, kind: input, shape index: {}]
  %s10 = inlined_call_operand.vmem [shape: f32[1,128], index: 10, kind: input, shape index: {}]
  %s11 = inlined_call_operand.hbm [shape: f32[2,128], index: 11, kind: output, shape index: {}]
  %s12 = sld [smem:[#allocation0]]
  $region54: #{network_forward.1} parent=0
    _
  %s14 = ssub.s32 1, %s12
  %s15 = scalar_select 0, %s14, %s12
  $region1: #{network_forward.1} parent=0
    #allocation3 [shape = 'u8[1024]{0}', space=vmem, size = 0x400, scoped, tag = 'output window, operand 0, single buffered']
    #allocation4 [shape = 's32[1]{0}', space=sflag, size = 0x4, scoped, tag = 'scoped memory for network_forward.1']
    %16 = vsyncpa [#allocation4], 0
    // Predicated region
    $region2: #{network_forward.1} parent=1 // pred_check
      _
    $region3: #{network_forward.1} parent=1 // pred_check_branch
      %18 = sbr.rel (0) target = $region5
    $region4: #{network_forward.1} parent=1 // pred_region
      _
    $region5: #{network_forward.1} parent=1 // pred_fallthru
      _
    // Predicated region
    $region6: #{network_forward.1} parent=1 // pred_check
      _
    $region7: #{network_forward.1} parent=1 // pred_check_branch
      %20 = sbr.rel (0) target = $region9
    $region8: #{network_forward.1} parent=1 // pred_region
      _
    $region9: #{network_forward.1} parent=1 // pred_fallthru
      _
    // Predicated region
    $region10: #{network_forward.1} parent=1 // pred_check
      _
    $region11: #{network_forward.1} parent=1 // pred_check_branch
      %22 = sbr.rel (0) target = $region13
    $region12: #{network_forward.1} parent=1 // pred_region
      _
    $region13: #{network_forward.1} parent=1 // pred_fallthru
      _
    // Predicated region
    $region14: #{network_forward.1} parent=1 // pred_check
      _
    $region15: #{network_forward.1} parent=1 // pred_check_branch
      %24 = sbr.rel (0) target = $region17
    $region16: #{network_forward.1} parent=1 // pred_region
      _
    $region17: #{network_forward.1} parent=1 // pred_fallthru
      _
    // Predicated region
    $region18: #{network_forward.1} parent=1 // pred_check
      _
    $region19: #{network_forward.1} parent=1 // pred_check_branch
      %26 = sbr.rel (0) target = $region21
    $region20: #{network_forward.1} parent=1 // pred_region
      _
    $region21: #{network_forward.1} parent=1 // pred_fallthru
      _
    // Predicated region
    $region22: #{network_forward.1} parent=1 // pred_check
      _
    $region23: #{network_forward.1} parent=1 // pred_check_branch
      %28 = sbr.rel (0) target = $region25
    $region24: #{network_forward.1} parent=1 // pred_region
      _
    $region25: #{network_forward.1} parent=1 // pred_fallthru
      _
    // Predicated region
    $region26: #{network_forward.1} parent=1 // pred_check
      _
    $region27: #{network_forward.1} parent=1 // pred_check_branch
      %30 = sbr.rel (0) target = $region29
    $region28: #{network_forward.1} parent=1 // pred_region
      _
    $region29: #{network_forward.1} parent=1 // pred_fallthru
      _
    // Predicated region
    $region30: #{network_forward.1} parent=1 // pred_check
      _
    $region31: #{network_forward.1} parent=1 // pred_check_branch
      %32 = sbr.rel (0) target = $region33
    $region32: #{network_forward.1} parent=1 // pred_region
      _
    $region33: #{network_forward.1} parent=1 // pred_fallthru
      _
    // Predicated region
    $region34: #{network_forward.1} parent=1 // pred_check
      _
    $region35: #{network_forward.1} parent=1 // pred_check_branch
      %34 = sbr.rel (0) target = $region37
    $region36: #{network_forward.1} parent=1 // pred_region
      _
    $region37: #{network_forward.1} parent=1 // pred_fallthru
      _
    // Predicated region
    $region38: #{network_forward.1} parent=1 // pred_check
      _
    $region39: #{network_forward.1} parent=1 // pred_check_branch
      %36 = sbr.rel (0) target = $region41
    $region40: #{network_forward.1} parent=1 // pred_region
      _
    $region41: #{network_forward.1} parent=1 // pred_fallthru
      _
    // Predicated region
    $region42: #{network_forward.1} parent=1 // pred_check
      _
    $region43: #{network_forward.1} parent=1 // pred_check_branch
      %38 = sbr.rel (0) target = $region45
    $region44: #{network_forward.1} parent=1 // pred_region
      _
    $region45: #{network_forward.1} parent=1 // pred_fallthru
      _
    %v40 = vld [vmem:[%s0] sm:$0xff]
    %v41 = vld [vmem:[%s0 + $0x8] sm:$0xff]
    %v42 = vld [vmem:[%s0 + $0x10] sm:$0xff]
    %v43 = vld [vmem:[%s0 + $0x20] sm:$0xff]
    %v44 = vld [vmem:[%s0 + $0x28] sm:$0xff]
    %v45 = vld [vmem:[%s0 + $0x30] sm:$0xff]
    %v46 = vld [vmem:[%s0 + $0x1] sm:$0xff]
    %v47 = vld [vmem:[%s0 + $0x9] sm:$0xff]
    %v48 = vld [vmem:[%s0 + $0x11] sm:$0xff]
    %v49 = vld [vmem:[%s0 + $0x21] sm:$0xff]
    %v50 = vld [vmem:[%s0 + $0x29] sm:$0xff]
    %v51 = vld [vmem:[%s0 + $0x31] sm:$0xff]
    %v52 = vld [vmem:[%s0 + $0x2] sm:$0xff]
    %v53 = vld [vmem:[%s0 + $0xa] sm:$0xff]
    %v54 = vld [vmem:[%s0 + $0x12] sm:$0xff]
    %v55 = vld [vmem:[%s0 + $0x22] sm:$0xff]
    %v56 = vld [vmem:[%s0 + $0x2a] sm:$0xff]
    %v57 = vld [vmem:[%s0 + $0x32] sm:$0xff]
    %v58 = vld [vmem:[%s0 + $0x3] sm:$0xff]
    %v59 = vld [vmem:[%s0 + $0xb] sm:$0xff]
    %v60 = vld [vmem:[%s0 + $0x13] sm:$0xff]
    %v61 = vld [vmem:[%s0 + $0x23] sm:$0xff]
    %v62 = vld [vmem:[%s0 + $0x2b] sm:$0xff]
    %v63 = vld [vmem:[%s0 + $0x33] sm:$0xff]
    %v64 = vld [vmem:[%s0 + $0x4] sm:$0xff]
    %v65 = vld [vmem:[%s0 + $0xc] sm:$0xff]
    %v66 = vld [vmem:[%s0 + $0x14] sm:$0xff]
    %v67 = vld [vmem:[%s0 + $0x24] sm:$0xff]
    %v68 = vld [vmem:[%s0 + $0x2c] sm:$0xff]
    %v69 = vld [vmem:[%s0 + $0x34] sm:$0xff]
    %76 = vrot.lane.b32.xlu0 %v46, 28
    %v77 = vpop.permute.xlu0 %76
    %78 = vrot.lane.b32.xlu0 %v47, 28
    %v79 = vpop.permute.xlu0 %78
    %80 = vrot.lane.b32.xlu0 %v48, 28
    %v81 = vpop.permute.xlu0 %80
    %82 = vrot.lane.b32.xlu0 %v49, 28
    %v83 = vpop.permute.xlu0 %82
    %84 = vrot.lane.b32.xlu0 %v50, 28
    %v85 = vpop.permute.xlu0 %84
    %86 = vrot.lane.b32.xlu0 %v51, 28
    %v87 = vpop.permute.xlu0 %86
    %100 = vrot.lane.b32.xlu0 %v52, 56
    %v101 = vpop.permute.xlu0 %100
    %102 = vrot.lane.b32.xlu0 %v53, 56
    %v103 = vpop.permute.xlu0 %102
    %104 = vrot.lane.b32.xlu0 %v54, 56
    %v105 = vpop.permute.xlu0 %104
    %106 = vrot.lane.b32.xlu0 %v55, 56
    %v107 = vpop.permute.xlu0 %106
    %108 = vrot.lane.b32.xlu0 %v56, 56
    %v109 = vpop.permute.xlu0 %108
    %110 = vrot.lane.b32.xlu0 %v57, 56
    %v111 = vpop.permute.xlu0 %110
    %124 = vrot.lane.b32.xlu0 %v58, 84
    %v125 = vpop.permute.xlu0 %124
    %126 = vrot.lane.b32.xlu0 %v59, 84
    %v127 = vpop.permute.xlu0 %126
    %128 = vrot.lane.b32.xlu0 %v60, 84
    %v129 = vpop.permute.xlu0 %128
    %130 = vrot.lane.b32.xlu0 %v61, 84
    %v131 = vpop.permute.xlu0 %130
    %132 = vrot.lane.b32.xlu0 %v62, 84
    %v133 = vpop.permute.xlu0 %132
    %134 = vrot.lane.b32.xlu0 %v63, 84
    %v135 = vpop.permute.xlu0 %134
    %148 = vrot.lane.b32.xlu0 %v64, 112
    %v149 = vpop.permute.xlu0 %148
    %150 = vrot.lane.b32.xlu0 %v65, 112
    %v151 = vpop.permute.xlu0 %150
    %152 = vrot.lane.b32.xlu0 %v66, 112
    %v153 = vpop.permute.xlu0 %152
    %154 = vrot.lane.b32.xlu0 %v67, 112
    %v155 = vpop.permute.xlu0 %154
    %156 = vrot.lane.b32.xlu0 %v68, 112
    %v157 = vpop.permute.xlu0 %156
    %158 = vrot.lane.b32.xlu0 %v69, 112
    %v159 = vpop.permute.xlu0 %158
    %vm166 = vcmask 228352
    %v167 = vsel %vm166, %v40, %v77
    %v168 = vsel %vm166, %v41, %v79
    %v169 = vsel %vm166, %v42, %v81
    %v170 = vsel %vm166, %v43, %v83
    %v171 = vsel %vm166, %v44, %v85
    %v172 = vsel %vm166, %v45, %v87
    %vm173 = vcmask 457728
    %v174 = vsel %vm173, %v167, %v101
    %v175 = vsel %vm173, %v168, %v103
    %v176 = vsel %vm173, %v169, %v105
    %v177 = vsel %vm173, %v170, %v107
    %v178 = vsel %vm173, %v171, %v109
    %v179 = vsel %vm173, %v172, %v111
    %vm180 = vcmask 687104
    %v181 = vsel %vm180, %v174, %v125
    %v182 = vsel %vm180, %v175, %v127
    %v183 = vsel %vm180, %v176, %v129
    %v184 = vsel %vm180, %v177, %v131
    %v185 = vsel %vm180, %v178, %v133
    %v186 = vsel %vm180, %v179, %v135
    %vm187 = vcmask 916480
    %v188 = vsel %vm187, %v181, %v149
    %v189 = vsel %vm187, %v182, %v151
    %v190 = vsel %vm187, %v183, %v153
    %v191 = vsel %vm187, %v184, %v155
    %v192 = vsel %vm187, %v185, %v157
    %v193 = vsel %vm187, %v186, %v159
    %v194 = vpack.c.bf16 %v189, %v188
    %v195 = vpack.c.bf16 %v151, %v149
    %v196 = vpack.c.bf16 %v191, %v190
    %v197 = vpack.c.bf16 %v155, %v153
    %v198 = vpack.c.bf16 %v193, %v192
    %v199 = vpack.c.bf16 %v159, %v157
    %v200 = vld [vmem:[%s1] sm:$0xff]
    %v201 = vld [vmem:[%s1 + $0x8] sm:$0xff]
    %v202 = vld [vmem:[%s1 + $0x10] sm:$0xff]
    %v203 = vld [vmem:[%s1 + $0x18] sm:$0xff]
    %v204 = vld [vmem:[%s1 + $0x20] sm:$0xff]
    %v205 = vld [vmem:[%s1 + $0x28] sm:$0xff]
    %v206 = vld [vmem:[%s1 + $0x30] sm:$0xff]
    %v207 = vld [vmem:[%s1 + $0x38] sm:$0xff]
    %v208 = vld [vmem:[%s1 + $0x40] sm:$0xff]
    %v209 = vld [vmem:[%s1 + $0x48] sm:$0xff]
    %v210 = vld [vmem:[%s1 + $0x50] sm:$0xff]
    %v211 = vld [vmem:[%s1 + $0x58] sm:$0xff]
    %v212 = vld [vmem:[%s1 + $0x60] sm:$0xff]
    %v213 = vld [vmem:[%s1 + $0x68] sm:$0xff]
    %v214 = vld [vmem:[%s1 + $0x70] sm:$0xff]
    %v215 = vld [vmem:[%s1 + $0x78] sm:$0xff]
    %v216 = vld [vmem:[%s1 + $0x80] sm:$0xff]
    %v217 = vld [vmem:[%s1 + $0x88] sm:$0x33]
    %v218 = vld [vmem:[%s2] sm:$0x3]
    %v220 = vperm.slane %v218, 0
    %v221 = vperm.slane %v218, 1
    %v242 = vunpack.c.l.b16 %v200
    %v243 = vunpack.c.h.b16 %v200
    %v244 = vunpack.c.l.b16 %v201
    %v245 = vunpack.c.h.b16 %v201
    %v246 = vunpack.c.l.b16 %v202
    %v247 = vunpack.c.h.b16 %v202
    %v248 = vunpack.c.l.b16 %v203
    %v249 = vunpack.c.h.b16 %v203
    %v250 = vunpack.c.l.b16 %v204
    %v251 = vunpack.c.h.b16 %v204
    %v252 = vunpack.c.l.b16 %v205
    %v253 = vunpack.c.h.b16 %v205
    %v254 = vunpack.c.l.b16 %v206
    %v255 = vunpack.c.h.b16 %v206
    %v256 = vunpack.c.l.b16 %v207
    %v257 = vunpack.c.h.b16 %v207
    %v258 = vunpack.c.l.b16 %v208
    %v259 = vunpack.c.h.b16 %v208
    %v260 = vunpack.c.l.b16 %v209
    %v261 = vunpack.c.h.b16 %v209
    %v262 = vunpack.c.l.b16 %v210
    %v263 = vunpack.c.h.b16 %v210
    %v264 = vunpack.c.l.b16 %v211
    %v265 = vunpack.c.h.b16 %v211
    %v266 = vunpack.c.l.b16 %v212
    %v267 = vunpack.c.h.b16 %v212
    %v268 = vunpack.c.l.b16 %v213
    %v269 = vunpack.c.h.b16 %v213
    %v270 = vunpack.c.l.b16 %v214
    %v271 = vunpack.c.h.b16 %v214
    %v272 = vunpack.c.l.b16 %v215
    %v273 = vunpack.c.h.b16 %v215
    %v274 = vunpack.c.l.b16 %v216
    %v275 = vunpack.c.h.b16 %v216
    %v276 = vunpack.c.l.b16 %v217
    %v277 = vunpack.c.h.b16 %v217
    %v278 = vpack.c.b16 %v244, %v242
    %v279 = vpack.c.b16 %v245, %v243
    %v280 = vpack.c.b16 %v248, %v246
    %v281 = vpack.c.b16 %v249, %v247
    %v282 = vpack.c.b16 %v252, %v250
    %v283 = vpack.c.b16 %v253, %v251
    %v284 = vpack.c.b16 %v256, %v254
    %v285 = vpack.c.b16 %v257, %v255
    %v286 = vpack.c.b16 %v260, %v258
    %v287 = vpack.c.b16 %v261, %v259
    %v288 = vpack.c.b16 %v264, %v262
    %v289 = vpack.c.b16 %v265, %v263
    %v290 = vpack.c.b16 %v268, %v266
    %v291 = vpack.c.b16 %v269, %v267
    %v292 = vpack.c.b16 %v272, %v270
    %v293 = vpack.c.b16 %v273, %v271
    %v294 = vpack.c.b16 %v276, %v274
    %v295 = vpack.c.b16 %v277, %v275
    %vm312 = vcmask 97280
    %v314 = vsel %vm312, %v195, 0
    %v317 = vsel %vm312, %v197, 0
    %v320 = vsel %vm312, %v199, 0
    %vm322 = vcmask 1045504
    %v324 = vsel %vm322, %v294, 0
    %v327 = vsel %vm322, %v295, 0
    %329 = vmatpush.bf16.msra.mxu0 %v292
    %330 = vmatpush.bf16.msra.mxu0 %v290
    %331 = vmatpush.bf16.msra.mxu0 %v288
    %332 = vmatpush.bf16.msra.mxu0 %v286
    %333 = vmatpush.bf16.msra.mxu0 %v284
    %334 = vmatpush.bf16.msra.mxu0 %v282
    %335 = vmatpush.bf16.msra.mxu0 %v280
    %336 = vmatpush.bf16.msra.mxu0 %v278
    %337 = vmatmul.bf16.gmra.mxu0 %v194
    %v338 = vpop.f32.mrf.mxu0
    %v339 = vadd.f32 %v220, %v338
    %v340 = vpop.f32.mrf.mxu0
    %v341 = vadd.f32 %v220, %v340
    %342 = vmatmul.bf16.gmra.mxu0 %v196
    %v343 = vpop.f32.mrf.mxu0
    %v344 = vadd.f32 %v220, %v343
    %v345 = vpop.f32.mrf.mxu0
    %v346 = vadd.f32 %v220, %v345
    %347 = vmatmul.bf16.gmra.mxu0 %v198
    %v348 = vpop.f32.mrf.mxu0
    %v349 = vadd.f32 %v220, %v348
    %v350 = vpop.f32.mrf.mxu0
    %v351 = vadd.f32 %v220, %v350
    %352 = vdwg.mxu0
    %353 = vmatpush.bf16.msra.mxu0 0
    %354 = vmatpush.bf16.msra.mxu0 0
    %355 = vmatpush.bf16.msra.mxu0 0
    %356 = vmatpush.bf16.msra.mxu0 0
    %357 = vmatpush.bf16.msra.mxu0 0
    %358 = vmatpush.bf16.msra.mxu0 0
    %359 = vmatpush.bf16.msra.mxu0 0
    %360 = vmatpush.bf16.msra.mxu0 %v324
    %361 = vmatmul.bf16.gmra.mxu0 %v314
    %v362 = vpop.f32.mrf.mxu0
    %v363 = vadd.f32 %v339, %v362
    %v364 = vpop.f32.mrf.mxu0
    %v365 = vadd.f32 %v341, %v364
    %366 = vmatmul.bf16.gmra.mxu0 %v317
    %v367 = vpop.f32.mrf.mxu0
    %v368 = vadd.f32 %v344, %v367
    %v369 = vpop.f32.mrf.mxu0
    %v370 = vadd.f32 %v346, %v369
    %371 = vmatmul.bf16.gmra.mxu0 %v320
    %v372 = vpop.f32.mrf.mxu0
    %v373 = vadd.f32 %v349, %v372
    %v374 = vpop.f32.mrf.mxu0
    %v375 = vadd.f32 %v351, %v374
    %376 = vdwg.mxu0
    %377 = vmatpush.bf16.msra.mxu0 %v293
    %378 = vmatpush.bf16.msra.mxu0 %v291
    %379 = vmatpush.bf16.msra.mxu0 %v289
    %380 = vmatpush.bf16.msra.mxu0 %v287
    %381 = vmatpush.bf16.msra.mxu0 %v285
    %382 = vmatpush.bf16.msra.mxu0 %v283
    %383 = vmatpush.bf16.msra.mxu0 %v281
    %384 = vmatpush.bf16.msra.mxu0 %v279
    %385 = vmatmul.bf16.gmra.mxu0 %v194
    %v386 = vpop.f32.mrf.mxu0
    %v387 = vadd.f32 %v221, %v386
    %v388 = vpop.f32.mrf.mxu0
    %v389 = vadd.f32 %v221, %v388
    %390 = vmatmul.bf16.gmra.mxu0 %v196
    %v391 = vpop.f32.mrf.mxu0
    %v392 = vadd.f32 %v221, %v391
    %v393 = vpop.f32.mrf.mxu0
    %v394 = vadd.f32 %v221, %v393
    %395 = vmatmul.bf16.gmra.mxu0 %v198
    %v396 = vpop.f32.mrf.mxu0
    %v397 = vadd.f32 %v221, %v396
    %v398 = vpop.f32.mrf.mxu0
    %v399 = vadd.f32 %v221, %v398
    %400 = vdwg.mxu0
    %401 = vmatpush.bf16.msra.mxu0 0
    %402 = vmatpush.bf16.msra.mxu0 0
    %403 = vmatpush.bf16.msra.mxu0 0
    %404 = vmatpush.bf16.msra.mxu0 0
    %405 = vmatpush.bf16.msra.mxu0 0
    %406 = vmatpush.bf16.msra.mxu0 0
    %407 = vmatpush.bf16.msra.mxu0 0
    %408 = vmatpush.bf16.msra.mxu0 %v327
    %409 = vmatmul.bf16.gmra.mxu0 %v314
    %v410 = vpop.f32.mrf.mxu0
    %v411 = vadd.f32 %v387, %v410
    %v412 = vpop.f32.mrf.mxu0
    %v413 = vadd.f32 %v389, %v412
    %414 = vmatmul.bf16.gmra.mxu0 %v317
    %v415 = vpop.f32.mrf.mxu0
    %v416 = vadd.f32 %v392, %v415
    %v417 = vpop.f32.mrf.mxu0
    %v418 = vadd.f32 %v394, %v417
    %419 = vmatmul.bf16.gmra.mxu0 %v320
    %v420 = vpop.f32.mrf.mxu0
    %v421 = vadd.f32 %v397, %v420
    %v422 = vpop.f32.mrf.mxu0
    %v423 = vadd.f32 %v399, %v422
    %424 = vdwg.mxu0
    %v425 = vmax.f32 %v363, 0.0
    %v426 = vmax.f32 %v411, 0.0
    %v427 = vmax.f32 %v365, 0.0
    %v428 = vmax.f32 %v413, 0.0
    %v429 = vmax.f32 %v368, 0.0
    %v430 = vmax.f32 %v416, 0.0
    %v431 = vmax.f32 %v370, 0.0
    %v432 = vmax.f32 %v418, 0.0
    %v433 = vmax.f32 %v373, 0.0
    %v434 = vmax.f32 %v421, 0.0
    %v435 = vmax.f32 %v375, 0.0
    %v436 = vmax.f32 %v423, 0.0
    %437 = vst [vmem:[#allocation2] sm:$0xff] %v425
    %vm438 = vcmask 130048
    %439 = vst.msk [vmem:[#allocation2 + $0x8] sm:$0xff] %vm438, %v426
    %440 = vst [vmem:[#allocation2 + $0x10] sm:$0xff] %v427
    %441 = vst.msk [vmem:[#allocation2 + $0x18] sm:$0xff] %vm438, %v428
    %442 = vst [vmem:[#allocation2 + $0x20] sm:$0xff] %v429
    %443 = vst.msk [vmem:[#allocation2 + $0x28] sm:$0xff] %vm438, %v430
    %444 = vst [vmem:[#allocation2 + $0x30] sm:$0xff] %v431
    %445 = vst.msk [vmem:[#allocation2 + $0x38] sm:$0xff] %vm438, %v432
    %446 = vst [vmem:[#allocation2 + $0x40] sm:$0xff] %v433
    %447 = vst.msk [vmem:[#allocation2 + $0x48] sm:$0xff] %vm438, %v434
    %448 = vst [vmem:[#allocation2 + $0x50] sm:$0xff] %v435
    %449 = vst.msk [vmem:[#allocation2 + $0x58] sm:$0xff] %vm438, %v436
    %v450 = vld [vmem:[#allocation2] ss:$8 sm:$0x3]
    %s451 = scalar_lea.vmem [#allocation2], 48
    %v452 = vld [vmem:[%s451] ss:$8 sm:$0x3]
    %s453 = scalar_lea.vmem [#allocation2], 1
    %v454 = vld [vmem:[%s453] ss:$8 sm:$0x3]
    %s455 = scalar_lea.vmem [#allocation2], 49
    %v456 = vld [vmem:[%s455] ss:$8 sm:$0x3]
    %v457 = vmax.f32 %v450, %v454
    %v458 = vmax.f32 %v452, %v456
    %461 = vst [vmem:[#allocation1] ss:$9 sm:$0xff] %v457
    %s462 = scalar_lea.vmem [#allocation1], 1
    %463 = vst [vmem:[%s462] ss:$9 sm:$0xff] %v458
    %v464 = vld [vmem:[#allocation1] sm:$0xff]
    %v465 = vld [vmem:[#allocation1 + $0x9] sm:$0xff]
    %466 = vrot.lane.b32.xlu0 %v464, 122
    %v467 = vpop.permute.xlu0 %466
    %468 = vrot.lane.b32.xlu0 %v465, 122
    %v469 = vpop.permute.xlu0 %468
    %vm470 = vcmask 998400
    %v471 = vsel %vm470, %v467, %v469
    %473 = vst [vmem:[#allocation1] ss:$9 sm:$0xff] %v457
    %s474 = scalar_lea.vmem [#allocation1], 1
    %475 = vst [vmem:[%s474] ss:$9 sm:$0xff] %v458
    %v476 = vld [vmem:[#allocation1] sm:$0xff]
    %477 = vrot.lane.b32.xlu0 %v476, 10
    %v478 = vpop.permute.xlu0 %477
    %vm480 = vcmask 80896
    %v481 = vsel %vm480, %v469, %v478
    %v483 = vrot.slane %v481, 7
    %vm484 = vcmask 1040384
    %v485 = vsel %vm484, %v471, %v483
    %vm486 = vcmask 1041409
    %v487 = vsel %vm486, %v471, %v483
    %v488 = vrot.slane %v487, 1
    %v491 = vmax.f32 %v457, %v485
    %v492 = vmax.f32 %v458, %v488
    %s493 = scalar_lea.vmem [#allocation2], 2
    %v494 = vld [vmem:[%s493] ss:$8 sm:$0x3]
    %s495 = scalar_lea.vmem [#allocation2], 50
    %v496 = vld [vmem:[%s495] ss:$8 sm:$0x3]
    %s497 = scalar_lea.vmem [#allocation2], 3
    %v498 = vld [vmem:[%s497] ss:$8 sm:$0x3]
    %s499 = scalar_lea.vmem [#allocation2], 51
    %v500 = vld [vmem:[%s499] ss:$8 sm:$0x3]
    %v501 = vmax.f32 %v494, %v498
    %v502 = vmax.f32 %v496, %v500
    %505 = vst [vmem:[#allocation1] ss:$9 sm:$0xff] %v501
    %s506 = scalar_lea.vmem [#allocation1], 1
    %507 = vst [vmem:[%s506] ss:$9 sm:$0xff] %v502
    %v508 = vld [vmem:[#allocation1] sm:$0xff]
    %v509 = vld [vmem:[#allocation1 + $0x9] sm:$0xff]
    %510 = vrot.lane.b32.xlu0 %v508, 122
    %v511 = vpop.permute.xlu0 %510
    %512 = vrot.lane.b32.xlu0 %v509, 122
    %v513 = vpop.permute.xlu0 %512
    %v514 = vsel %vm470, %v511, %v513
    %516 = vst [vmem:[#allocation1] ss:$9 sm:$0xff] %v501
    %s517 = scalar_lea.vmem [#allocation1], 1
    %518 = vst [vmem:[%s517] ss:$9 sm:$0xff] %v502
    %v519 = vld [vmem:[#allocation1] sm:$0xff]
    %520 = vrot.lane.b32.xlu0 %v519, 10
    %v521 = vpop.permute.xlu0 %520
    %v523 = vsel %vm480, %v513, %v521
    %v525 = vrot.slane %v523, 7
    %v526 = vsel %vm484, %v514, %v525
    %v527 = vsel %vm486, %v514, %v525
    %v528 = vrot.slane %v527, 1
    %v531 = vmax.f32 %v501, %v526
    %v532 = vmax.f32 %v502, %v528
    %s533 = scalar_lea.vmem [#allocation2], 4
    %v534 = vld [vmem:[%s533] ss:$8 sm:$0x3]
    %s535 = scalar_lea.vmem [#allocation2], 52
    %v536 = vld [vmem:[%s535] ss:$8 sm:$0x3]
    %s537 = scalar_lea.vmem [#allocation2], 5
    %v538 = vld [vmem:[%s537] ss:$8 sm:$0x3]
    %s539 = scalar_lea.vmem [#allocation2], 53
    %v540 = vld [vmem:[%s539] ss:$8 sm:$0x3]
    %v541 = vmax.f32 %v534, %v538
    %v542 = vmax.f32 %v536, %v540
    %545 = vst [vmem:[#allocation1] ss:$9 sm:$0xff] %v541
    %s546 = scalar_lea.vmem [#allocation1], 1
    %547 = vst [vmem:[%s546] ss:$9 sm:$0xff] %v542
    %v548 = vld [vmem:[#allocation1] sm:$0xff]
    %v549 = vld [vmem:[#allocation1 + $0x9] sm:$0xff]
    %550 = vrot.lane.b32.xlu0 %v548, 122
    %v551 = vpop.permute.xlu0 %550
    %552 = vrot.lane.b32.xlu0 %v549, 122
    %v553 = vpop.permute.xlu0 %552
    %v554 = vsel %vm470, %v551, %v553
    %556 = vst [vmem:[#allocation1] ss:$9 sm:$0xff] %v541
    %s557 = scalar_lea.vmem [#allocation1], 1
    %558 = vst [vmem:[%s557] ss:$9 sm:$0xff] %v542
    %v559 = vld [vmem:[#allocation1] sm:$0xff]
    %560 = vrot.lane.b32.xlu0 %v559, 10
    %v561 = vpop.permute.xlu0 %560
    %v563 = vsel %vm480, %v553, %v561
    %v565 = vrot.slane %v563, 7
    %v566 = vsel %vm484, %v554, %v565
    %v567 = vsel %vm486, %v554, %v565
    %v568 = vrot.slane %v567, 1
    %v571 = vmax.f32 %v541, %v566
    %v572 = vmax.f32 %v542, %v568
    %s573 = scalar_lea.vmem [#allocation2], 6
    %v574 = vld [vmem:[%s573] ss:$8 sm:$0x3]
    %s575 = scalar_lea.vmem [#allocation2], 54
    %v576 = vld [vmem:[%s575] ss:$8 sm:$0x3]
    %s577 = scalar_lea.vmem [#allocation2], 7
    %v578 = vld [vmem:[%s577] ss:$8 sm:$0x3]
    %s579 = scalar_lea.vmem [#allocation2], 55
    %v580 = vld [vmem:[%s579] ss:$8 sm:$0x3]
    %v581 = vmax.f32 %v574, %v578
    %v582 = vmax.f32 %v576, %v580
    %585 = vst [vmem:[#allocation1] ss:$9 sm:$0xff] %v581
    %s586 = scalar_lea.vmem [#allocation1], 1
    %587 = vst [vmem:[%s586] ss:$9 sm:$0xff] %v582
    %v588 = vld [vmem:[#allocation1] sm:$0xff]
    %v589 = vld [vmem:[#allocation1 + $0x9] sm:$0xff]
    %590 = vrot.lane.b32.xlu0 %v588, 122
    %v591 = vpop.permute.xlu0 %590
    %592 = vrot.lane.b32.xlu0 %v589, 122
    %v593 = vpop.permute.xlu0 %592
    %v594 = vsel %vm470, %v591, %v593
    %596 = vst [vmem:[#allocation1] ss:$9 sm:$0xff] %v581
    %s597 = scalar_lea.vmem [#allocation1], 1
    %598 = vst [vmem:[%s597] ss:$9 sm:$0xff] %v582
    %v599 = vld [vmem:[#allocation1] sm:$0xff]
    %600 = vrot.lane.b32.xlu0 %v599, 10
    %v601 = vpop.permute.xlu0 %600
    %v603 = vsel %vm480, %v593, %v601
    %v605 = vrot.slane %v603, 7
    %v606 = vsel %vm484, %v594, %v605
    %v607 = vsel %vm486, %v594, %v605
    %v608 = vrot.slane %v607, 1
    %v611 = vmax.f32 %v581, %v606
    %v612 = vmax.f32 %v582, %v608
    %s613 = scalar_lea.vmem [#allocation2], 16
    %v614 = vld [vmem:[%s613] ss:$8 sm:$0x3]
    %s615 = scalar_lea.vmem [#allocation2], 64
    %v616 = vld [vmem:[%s615] ss:$8 sm:$0x3]
    %s617 = scalar_lea.vmem [#allocation2], 17
    %v618 = vld [vmem:[%s617] ss:$8 sm:$0x3]
    %s619 = scalar_lea.vmem [#allocation2], 65
    %v620 = vld [vmem:[%s619] ss:$8 sm:$0x3]
    %v621 = vmax.f32 %v614, %v618
    %v622 = vmax.f32 %v616, %v620
    %625 = vst [vmem:[#allocation1] ss:$9 sm:$0xff] %v621
    %s626 = scalar_lea.vmem [#allocation1], 1
    %627 = vst [vmem:[%s626] ss:$9 sm:$0xff] %v622
    %v628 = vld [vmem:[#allocation1] sm:$0xff]
    %v629 = vld [vmem:[#allocation1 + $0x9] sm:$0xff]
    %630 = vrot.lane.b32.xlu0 %v628, 122
    %v631 = vpop.permute.xlu0 %630
    %632 = vrot.lane.b32.xlu0 %v629, 122
    %v633 = vpop.permute.xlu0 %632
    %v634 = vsel %vm470, %v631, %v633
    %636 = vst [vmem:[#allocation1] ss:$9 sm:$0xff] %v621
    %s637 = scalar_lea.vmem [#allocation1], 1
    %638 = vst [vmem:[%s637] ss:$9 sm:$0xff] %v622
    %v639 = vld [vmem:[#allocation1] sm:$0xff]
    %640 = vrot.lane.b32.xlu0 %v639, 10
    %v641 = vpop.permute.xlu0 %640
    %v643 = vsel %vm480, %v633, %v641
    %v645 = vrot.slane %v643, 7
    %v646 = vsel %vm484, %v634, %v645
    %v647 = vsel %vm486, %v634, %v645
    %v648 = vrot.slane %v647, 1
    %v651 = vmax.f32 %v621, %v646
    %v652 = vmax.f32 %v622, %v648
    %s653 = scalar_lea.vmem [#allocation2], 18
    %v654 = vld [vmem:[%s653] ss:$8 sm:$0x3]
    %s655 = scalar_lea.vmem [#allocation2], 66
    %v656 = vld [vmem:[%s655] ss:$8 sm:$0x3]
    %s657 = scalar_lea.vmem [#allocation2], 19
    %v658 = vld [vmem:[%s657] ss:$8 sm:$0x3]
    %s659 = scalar_lea.vmem [#allocation2], 67
    %v660 = vld [vmem:[%s659] ss:$8 sm:$0x3]
    %v661 = vmax.f32 %v654, %v658
    %v662 = vmax.f32 %v656, %v660
    %665 = vst [vmem:[#allocation1] ss:$9 sm:$0xff] %v661
    %s666 = scalar_lea.vmem [#allocation1], 1
    %667 = vst [vmem:[%s666] ss:$9 sm:$0xff] %v662
    %v668 = vld [vmem:[#allocation1] sm:$0xff]
    %v669 = vld [vmem:[#allocation1 + $0x9] sm:$0xff]
    %670 = vrot.lane.b32.xlu0 %v668, 122
    %v671 = vpop.permute.xlu0 %670
    %672 = vrot.lane.b32.xlu0 %v669, 122
    %v673 = vpop.permute.xlu0 %672
    %v674 = vsel %vm470, %v671, %v673
    %676 = vst [vmem:[#allocation1] ss:$9 sm:$0xff] %v661
    %s677 = scalar_lea.vmem [#allocation1], 1
    %678 = vst [vmem:[%s677] ss:$9 sm:$0xff] %v662
    %v679 = vld [vmem:[#allocation1] sm:$0xff]
    %680 = vrot.lane.b32.xlu0 %v679, 10
    %v681 = vpop.permute.xlu0 %680
    %v683 = vsel %vm480, %v673, %v681
    %v685 = vrot.slane %v683, 7
    %v686 = vsel %vm484, %v674, %v685
    %v687 = vsel %vm486, %v674, %v685
    %v688 = vrot.slane %v687, 1
    %v691 = vmax.f32 %v661, %v686
    %v692 = vmax.f32 %v662, %v688
    %s693 = scalar_lea.vmem [#allocation2], 20
    %v694 = vld [vmem:[%s693] ss:$8 sm:$0x3]
    %s695 = scalar_lea.vmem [#allocation2], 68
    %v696 = vld [vmem:[%s695] ss:$8 sm:$0x3]
    %s697 = scalar_lea.vmem [#allocation2], 21
    %v698 = vld [vmem:[%s697] ss:$8 sm:$0x3]
    %s699 = scalar_lea.vmem [#allocation2], 69
    %v700 = vld [vmem:[%s699] ss:$8 sm:$0x3]
    %v701 = vmax.f32 %v694, %v698
    %v702 = vmax.f32 %v696, %v700
    %705 = vst [vmem:[#allocation1] ss:$9 sm:$0xff] %v701
    %s706 = scalar_lea.vmem [#allocation1], 1
    %707 = vst [vmem:[%s706] ss:$9 sm:$0xff] %v702
    %v708 = vld [vmem:[#allocation1] sm:$0xff]
    %v709 = vld [vmem:[#allocation1 + $0x9] sm:$0xff]
    %710 = vrot.lane.b32.xlu0 %v708, 122
    %v711 = vpop.permute.xlu0 %710
    %712 = vrot.lane.b32.xlu0 %v709, 122
    %v713 = vpop.permute.xlu0 %712
    %v714 = vsel %vm470, %v711, %v713
    %716 = vst [vmem:[#allocation1] ss:$9 sm:$0xff] %v701
    %s717 = scalar_lea.vmem [#allocation1], 1
    %718 = vst [vmem:[%s717] ss:$9 sm:$0xff] %v702
    %v719 = vld [vmem:[#allocation1] sm:$0xff]
    %720 = vrot.lane.b32.xlu0 %v719, 10
    %v721 = vpop.permute.xlu0 %720
    %v723 = vsel %vm480, %v713, %v721
    %v725 = vrot.slane %v723, 7
    %v726 = vsel %vm484, %v714, %v725
    %v727 = vsel %vm486, %v714, %v725
    %v728 = vrot.slane %v727, 1
    %v731 = vmax.f32 %v701, %v726
    %v732 = vmax.f32 %v702, %v728
    %s733 = scalar_lea.vmem [#allocation2], 22
    %v734 = vld [vmem:[%s733] ss:$8 sm:$0x3]
    %s735 = scalar_lea.vmem [#allocation2], 70
    %v736 = vld [vmem:[%s735] ss:$8 sm:$0x3]
    %s737 = scalar_lea.vmem [#allocation2], 23
    %v738 = vld [vmem:[%s737] ss:$8 sm:$0x3]
    %s739 = scalar_lea.vmem [#allocation2], 71
    %v740 = vld [vmem:[%s739] ss:$8 sm:$0x3]
    %v741 = vmax.f32 %v734, %v738
    %v742 = vmax.f32 %v736, %v740
    %745 = vst [vmem:[#allocation1] ss:$9 sm:$0xff] %v741
    %s746 = scalar_lea.vmem [#allocation1], 1
    %747 = vst [vmem:[%s746] ss:$9 sm:$0xff] %v742
    %v748 = vld [vmem:[#allocation1] sm:$0xff]
    %v749 = vld [vmem:[#allocation1 + $0x9] sm:$0xff]
    %750 = vrot.lane.b32.xlu0 %v748, 122
    %v751 = vpop.permute.xlu0 %750
    %752 = vrot.lane.b32.xlu0 %v749, 122
    %v753 = vpop.permute.xlu0 %752
    %v754 = vsel %vm470, %v751, %v753
    %756 = vst [vmem:[#allocation1] ss:$9 sm:$0xff] %v741
    %s757 = scalar_lea.vmem [#allocation1], 1
    %758 = vst [vmem:[%s757] ss:$9 sm:$0xff] %v742
    %v759 = vld [vmem:[#allocation1] sm:$0xff]
    %760 = vrot.lane.b32.xlu0 %v759, 10
    %v761 = vpop.permute.xlu0 %760
    %v763 = vsel %vm480, %v753, %v761
    %v765 = vrot.slane %v763, 7
    %v766 = vsel %vm484, %v754, %v765
    %v767 = vsel %vm486, %v754, %v765
    %v768 = vrot.slane %v767, 1
    %v771 = vmax.f32 %v741, %v766
    %v772 = vmax.f32 %v742, %v768
    %s773 = scalar_lea.vmem [#allocation2], 32
    %v774 = vld [vmem:[%s773] ss:$8 sm:$0x3]
    %s775 = scalar_lea.vmem [#allocation2], 80
    %v776 = vld [vmem:[%s775] ss:$8 sm:$0x3]
    %s777 = scalar_lea.vmem [#allocation2], 33
    %v778 = vld [vmem:[%s777] ss:$8 sm:$0x3]
    %s779 = scalar_lea.vmem [#allocation2], 81
    %v780 = vld [vmem:[%s779] ss:$8 sm:$0x3]
    %v781 = vmax.f32 %v774, %v778
    %v782 = vmax.f32 %v776, %v780
    %785 = vst [vmem:[#allocation1] ss:$9 sm:$0xff] %v781
    %s786 = scalar_lea.vmem [#allocation1], 1
    %787 = vst [vmem:[%s786] ss:$9 sm:$0xff] %v782
    %v788 = vld [vmem:[#allocation1] sm:$0xff]
    %v789 = vld [vmem:[#allocation1 + $0x9] sm:$0xff]
    %790 = vrot.lane.b32.xlu0 %v788, 122
    %v791 = vpop.permute.xlu0 %790
    %792 = vrot.lane.b32.xlu0 %v789, 122
    %v793 = vpop.permute.xlu0 %792
    %v794 = vsel %vm470, %v791, %v793
    %796 = vst [vmem:[#allocation1] ss:$9 sm:$0xff] %v781
    %s797 = scalar_lea.vmem [#allocation1], 1
    %798 = vst [vmem:[%s797] ss:$9 sm:$0xff] %v782
    %v799 = vld [vmem:[#allocation1] sm:$0xff]
    %800 = vrot.lane.b32.xlu0 %v799, 10
    %v801 = vpop.permute.xlu0 %800
    %v803 = vsel %vm480, %v793, %v801
    %v805 = vrot.slane %v803, 7
    %v806 = vsel %vm484, %v794, %v805
    %v807 = vsel %vm486, %v794, %v805
    %v808 = vrot.slane %v807, 1
    %v811 = vmax.f32 %v781, %v806
    %v812 = vmax.f32 %v782, %v808
    %s813 = scalar_lea.vmem [#allocation2], 34
    %v814 = vld [vmem:[%s813] ss:$8 sm:$0x3]
    %s815 = scalar_lea.vmem [#allocation2], 82
    %v816 = vld [vmem:[%s815] ss:$8 sm:$0x3]
    %s817 = scalar_lea.vmem [#allocation2], 35
    %v818 = vld [vmem:[%s817] ss:$8 sm:$0x3]
    %s819 = scalar_lea.vmem [#allocation2], 83
    %v820 = vld [vmem:[%s819] ss:$8 sm:$0x3]
    %v821 = vmax.f32 %v814, %v818
    %v822 = vmax.f32 %v816, %v820
    %825 = vst [vmem:[#allocation1] ss:$9 sm:$0xff] %v821
    %s826 = scalar_lea.vmem [#allocation1], 1
    %827 = vst [vmem:[%s826] ss:$9 sm:$0xff] %v822
    %v828 = vld [vmem:[#allocation1] sm:$0xff]
    %v829 = vld [vmem:[#allocation1 + $0x9] sm:$0xff]
    %830 = vrot.lane.b32.xlu0 %v828, 122
    %v831 = vpop.permute.xlu0 %830
    %832 = vrot.lane.b32.xlu0 %v829, 122
    %v833 = vpop.permute.xlu0 %832
    %v834 = vsel %vm470, %v831, %v833
    %836 = vst [vmem:[#allocation1] ss:$9 sm:$0xff] %v821
    %s837 = scalar_lea.vmem [#allocation1], 1
    %838 = vst [vmem:[%s837] ss:$9 sm:$0xff] %v822
    %v839 = vld [vmem:[#allocation1] sm:$0xff]
    %840 = vrot.lane.b32.xlu0 %v839, 10
    %v841 = vpop.permute.xlu0 %840
    %v843 = vsel %vm480, %v833, %v841
    %v845 = vrot.slane %v843, 7
    %v846 = vsel %vm484, %v834, %v845
    %v847 = vsel %vm486, %v834, %v845
    %v848 = vrot.slane %v847, 1
    %v851 = vmax.f32 %v821, %v846
    %v852 = vmax.f32 %v822, %v848
    %s853 = scalar_lea.vmem [#allocation2], 36
    %v854 = vld [vmem:[%s853] ss:$8 sm:$0x3]
    %s855 = scalar_lea.vmem [#allocation2], 84
    %v856 = vld [vmem:[%s855] ss:$8 sm:$0x3]
    %s857 = scalar_lea.vmem [#allocation2], 37
    %v858 = vld [vmem:[%s857] ss:$8 sm:$0x3]
    %s859 = scalar_lea.vmem [#allocation2], 85
    %v860 = vld [vmem:[%s859] ss:$8 sm:$0x3]
    %v861 = vmax.f32 %v854, %v858
    %v862 = vmax.f32 %v856, %v860
    %865 = vst [vmem:[#allocation1] ss:$9 sm:$0xff] %v861
    %s866 = scalar_lea.vmem [#allocation1], 1
    %867 = vst [vmem:[%s866] ss:$9 sm:$0xff] %v862
    %v868 = vld [vmem:[#allocation1] sm:$0xff]
    %v869 = vld [vmem:[#allocation1 + $0x9] sm:$0xff]
    %870 = vrot.lane.b32.xlu0 %v868, 122
    %v871 = vpop.permute.xlu0 %870
    %872 = vrot.lane.b32.xlu0 %v869, 122
    %v873 = vpop.permute.xlu0 %872
    %v874 = vsel %vm470, %v871, %v873
    %876 = vst [vmem:[#allocation1] ss:$9 sm:$0xff] %v861
    %s877 = scalar_lea.vmem [#allocation1], 1
    %878 = vst [vmem:[%s877] ss:$9 sm:$0xff] %v862
    %v879 = vld [vmem:[#allocation1] sm:$0xff]
    %880 = vrot.lane.b32.xlu0 %v879, 10
    %v881 = vpop.permute.xlu0 %880
    %v883 = vsel %vm480, %v873, %v881
    %v885 = vrot.slane %v883, 7
    %v886 = vsel %vm484, %v874, %v885
    %v887 = vsel %vm486, %v874, %v885
    %v888 = vrot.slane %v887, 1
    %v891 = vmax.f32 %v861, %v886
    %v892 = vmax.f32 %v862, %v888
    %s893 = scalar_lea.vmem [#allocation2], 38
    %v894 = vld [vmem:[%s893] ss:$8 sm:$0x3]
    %s895 = scalar_lea.vmem [#allocation2], 86
    %v896 = vld [vmem:[%s895] ss:$8 sm:$0x3]
    %s897 = scalar_lea.vmem [#allocation2], 39
    %v898 = vld [vmem:[%s897] ss:$8 sm:$0x3]
    %s899 = scalar_lea.vmem [#allocation2], 87
    %v900 = vld [vmem:[%s899] ss:$8 sm:$0x3]
    %v901 = vmax.f32 %v894, %v898
    %v902 = vmax.f32 %v896, %v900
    %905 = vst [vmem:[#allocation1] ss:$9 sm:$0xff] %v901
    %s906 = scalar_lea.vmem [#allocation1], 1
    %907 = vst [vmem:[%s906] ss:$9 sm:$0xff] %v902
    %v908 = vld [vmem:[#allocation1] sm:$0xff]
    %v909 = vld [vmem:[#allocation1 + $0x9] sm:$0xff]
    %910 = vrot.lane.b32.xlu0 %v908, 122
    %v911 = vpop.permute.xlu0 %910
    %912 = vrot.lane.b32.xlu0 %v909, 122
    %v913 = vpop.permute.xlu0 %912
    %v914 = vsel %vm470, %v911, %v913
    %916 = vst [vmem:[#allocation1] ss:$9 sm:$0xff] %v901
    %s917 = scalar_lea.vmem [#allocation1], 1
    %918 = vst [vmem:[%s917] ss:$9 sm:$0xff] %v902
    %v919 = vld [vmem:[#allocation1] sm:$0xff]
    %920 = vrot.lane.b32.xlu0 %v919, 10
    %v921 = vpop.permute.xlu0 %920
    %v923 = vsel %vm480, %v913, %v921
    %v925 = vrot.slane %v923, 7
    %v926 = vsel %vm484, %v914, %v925
    %v927 = vsel %vm486, %v914, %v925
    %v928 = vrot.slane %v927, 1
    %v931 = vmax.f32 %v901, %v926
    %v932 = vmax.f32 %v902, %v928
    %935 = vst [vmem:[#allocation1] ss:$9 sm:$0xff] %v491
    %s936 = scalar_lea.vmem [#allocation1], 1
    %937 = vst [vmem:[%s936] ss:$9 sm:$0xff] %v492
    %v938 = vld [vmem:[#allocation1] sm:$0xff]
    %v939 = vld [vmem:[#allocation1 + $0x9] sm:$0xff]
    %944 = vst [vmem:[#allocation1] ss:$9 sm:$0xff] %v531
    %s945 = scalar_lea.vmem [#allocation1], 1
    %946 = vst [vmem:[%s945] ss:$9 sm:$0xff] %v532
    %v947 = vld [vmem:[#allocation1] sm:$0xff]
    %v948 = vld [vmem:[#allocation1 + $0x9] sm:$0xff]
    %949 = vrot.lane.b32.xlu0 %v947, 16
    %v950 = vpop.permute.xlu0 %949
    %951 = vrot.lane.b32.xlu0 %v948, 16
    %v952 = vpop.permute.xlu0 %951
    %v953 = vsel %vm438, %v950, %v952
    %958 = vst [vmem:[#allocation1] ss:$9 sm:$0xff] %v571
    %s959 = scalar_lea.vmem [#allocation1], 1
    %960 = vst [vmem:[%s959] ss:$9 sm:$0xff] %v572
    %v961 = vld [vmem:[#allocation1] sm:$0xff]
    %v962 = vld [vmem:[#allocation1 + $0x9] sm:$0xff]
    %963 = vrot.lane.b32.xlu0 %v961, 32
    %v964 = vpop.permute.xlu0 %963
    %965 = vrot.lane.b32.xlu0 %v962, 32
    %v966 = vpop.permute.xlu0 %965
    %vm967 = vcmask 261120
    %v968 = vsel %vm967, %v964, %v966
    %973 = vst [vmem:[#allocation1] ss:$9 sm:$0xff] %v611
    %s974 = scalar_lea.vmem [#allocation1], 1
    %975 = vst [vmem:[%s974] ss:$9 sm:$0xff] %v612
    %v976 = vld [vmem:[#allocation1] sm:$0xff]
    %v977 = vld [vmem:[#allocation1 + $0x9] sm:$0xff]
    %978 = vrot.lane.b32.xlu0 %v976, 48
    %v979 = vpop.permute.xlu0 %978
    %980 = vrot.lane.b32.xlu0 %v977, 48
    %v981 = vpop.permute.xlu0 %980
    %vm982 = vcmask 392192
    %v983 = vsel %vm982, %v979, %v981
    %988 = vst [vmem:[#allocation1] ss:$9 sm:$0xff] %v651
    %s989 = scalar_lea.vmem [#allocation1], 1
    %990 = vst [vmem:[%s989] ss:$9 sm:$0xff] %v652
    %v991 = vld [vmem:[#allocation1] sm:$0xff]
    %v992 = vld [vmem:[#allocation1 + $0x9] sm:$0xff]
    %993 = vrot.lane.b32.xlu0 %v991, 64
    %v994 = vpop.permute.xlu0 %993
    %995 = vrot.lane.b32.xlu0 %v992, 64
    %v996 = vpop.permute.xlu0 %995
    %vm997 = vcmask 523264
    %v998 = vsel %vm997, %v994, %v996
    %v1001 = vsel %vm438, %v939, %v950
    %v1002 = vsel %vm967, %v953, %v964
    %v1003 = vsel %vm982, %v968, %v979
    %v1004 = vsel %vm997, %v983, %v994
    %v1005 = vpack.c.bf16 %v938, %v938
    %v1006 = vpack.c.bf16 %v1001, %v1001
    %v1007 = vpack.c.bf16 %v1002, %v1002
    %v1008 = vpack.c.bf16 %v1003, %v1003
    %v1009 = vpack.c.bf16 %v1004, %v1004
    %v1010 = vpack.c.bf16 %v998, %v998
    %v1011 = vld [vmem:[%s3] sm:$0xf]
    %v1012 = vld [vmem:[%s3 + $0x4] sm:$0xf]
    %v1013 = vld [vmem:[%s3 + $0x8] sm:$0xf]
    %v1014 = vld [vmem:[%s3 + $0xc] sm:$0xf]
    %v1015 = vld [vmem:[%s3 + $0x10] sm:$0xf]
    %v1016 = vld [vmem:[%s3 + $0x14] sm:$0xf]
    %v1017 = vld [vmem:[%s3 + $0x18] sm:$0xf]
    %v1018 = vld [vmem:[%s3 + $0x1c] sm:$0xf]
    %v1019 = vld [vmem:[%s3 + $0x20] sm:$0xf]
    %v1020 = vld [vmem:[%s3 + $0x24] sm:$0xf]
    %v1021 = vld [vmem:[%s3 + $0x28] sm:$0xf]
    %v1022 = vld [vmem:[%s3 + $0x2c] sm:$0xf]
    %v1023 = vld [vmem:[%s3 + $0x30] sm:$0xf]
    %v1024 = vld [vmem:[%s3 + $0x34] sm:$0xf]
    %v1025 = vld [vmem:[%s3 + $0x38] sm:$0xf]
    %v1026 = vld [vmem:[%s3 + $0x3c] sm:$0xf]
    %v1027 = vld [vmem:[%s3 + $0x40] sm:$0xf]
    %v1028 = vld [vmem:[%s3 + $0x44] sm:$0xf]
    %v1029 = vld [vmem:[%s3 + $0x48] sm:$0xf]
    %v1030 = vld [vmem:[%s3 + $0x4c] sm:$0xf]
    %v1031 = vld [vmem:[%s3 + $0x50] sm:$0xf]
    %v1032 = vld [vmem:[%s3 + $0x54] sm:$0xf]
    %v1033 = vld [vmem:[%s3 + $0x58] sm:$0xf]
    %v1034 = vld [vmem:[%s3 + $0x5c] sm:$0xf]
    %v1035 = vld [vmem:[%s3 + $0x60] sm:$0xf]
    %v1036 = vld [vmem:[%s3 + $0x64] sm:$0xf]
    %v1037 = vld [vmem:[%s3 + $0x68] sm:$0xf]
    %v1038 = vld [vmem:[%s3 + $0x6c] sm:$0xf]
    %v1039 = vld [vmem:[%s3 + $0x70] sm:$0xf]
    %v1040 = vld [vmem:[%s3 + $0x74] sm:$0xf]
    %v1041 = vld [vmem:[%s3 + $0x78] sm:$0xf]
    %v1042 = vld [vmem:[%s3 + $0x7c] sm:$0xf]
    %v1043 = vld [vmem:[%s3 + $0x80] sm:$0xf]
    %v1044 = vld [vmem:[%s3 + $0x84] sm:$0xf]
    %v1045 = vld [vmem:[%s3 + $0x88] sm:$0xf]
    %v1046 = vld [vmem:[%s3 + $0x8c] sm:$0xf]
    %v1047 = vld [vmem:[%s3 + $0x90] sm:$0xf]
    %v1048 = vld [vmem:[%s3 + $0x94] sm:$0xf]
    %v1049 = vld [vmem:[%s3 + $0x98] sm:$0xf]
    %v1050 = vld [vmem:[%s3 + $0x9c] sm:$0xf]
    %v1051 = vld [vmem:[%s3 + $0xa0] sm:$0xf]
    %v1052 = vld [vmem:[%s3 + $0xa4] sm:$0xf]
    %v1053 = vld [vmem:[%s3 + $0xa8] sm:$0xf]
    %v1054 = vld [vmem:[%s3 + $0xac] sm:$0xf]
    %v1055 = vld [vmem:[%s3 + $0xb0] sm:$0xf]
    %v1056 = vld [vmem:[%s3 + $0xb4] sm:$0xf]
    %v1057 = vld [vmem:[%s3 + $0xb8] sm:$0xf]
    %v1058 = vld [vmem:[%s3 + $0xbc] sm:$0xf]
    %v1059 = vld [vmem:[%s3 + $0xc0] sm:$0xf]
    %v1060 = vld [vmem:[%s3 + $0xc4] sm:$0xf]
    %v1061 = vld [vmem:[%s3 + $0xc8] sm:$0xf]
    %v1062 = vld [vmem:[%s3 + $0xcc] sm:$0xf]
    %v1063 = vld [vmem:[%s3 + $0xd0] sm:$0xf]
    %v1064 = vld [vmem:[%s3 + $0xd4] sm:$0xf]
    %v1065 = vld [vmem:[%s3 + $0xd8] sm:$0xf]
    %v1066 = vld [vmem:[%s3 + $0xdc] sm:$0xf]
    %v1067 = vld [vmem:[%s3 + $0xe0] sm:$0xf]
    %v1068 = vld [vmem:[%s3 + $0xe4] sm:$0xf]
    %v1069 = vld [vmem:[%s3 + $0xe8] sm:$0xf]
    %v1070 = vld [vmem:[%s3 + $0xec] sm:$0xf]
    %v1071 = vld [vmem:[%s3 + $0xf0] sm:$0xf]
    %v1072 = vld [vmem:[%s3 + $0xf4] sm:$0xf]
    %v1073 = vld [vmem:[%s3 + $0xf8] sm:$0xf]
    %v1074 = vld [vmem:[%s3 + $0xfc] sm:$0xf]
    %v1075 = vld [vmem:[%s3 + $0x100] sm:$0xf]
    %v1076 = vld [vmem:[%s3 + $0x104] sm:$0xf]
    %v1077 = vld [vmem:[%s3 + $0x108] sm:$0xf]
    %v1078 = vld [vmem:[%s3 + $0x10c] sm:$0xf]
    %v1079 = vld [vmem:[%s3 + $0x110] sm:$0xf]
    %v1080 = vld [vmem:[%s3 + $0x114] sm:$0xf]
    %v1081 = vld [vmem:[%s3 + $0x118] sm:$0xf]
    %v1082 = vld [vmem:[%s3 + $0x11c] sm:$0xf]
    %v1083 = vld [vmem:[%s3 + $0x120] sm:$0xf]
    %v1084 = vld [vmem:[%s3 + $0x124] sm:$0xf]
    %v1085 = vld [vmem:[%s3 + $0x128] sm:$0xf]
    %v1086 = vld [vmem:[%s3 + $0x12c] sm:$0xf]
    %v1087 = vld [vmem:[%s3 + $0x130] sm:$0xf]
    %v1088 = vld [vmem:[%s3 + $0x134] sm:$0xf]
    %v1089 = vld [vmem:[%s3 + $0x138] sm:$0xf]
    %v1090 = vld [vmem:[%s3 + $0x13c] sm:$0xf]
    %v1091 = vld [vmem:[%s3 + $0x140] sm:$0xf]
    %v1092 = vld [vmem:[%s3 + $0x144] sm:$0xf]
    %v1093 = vld [vmem:[%s3 + $0x148] sm:$0xf]
    %v1094 = vld [vmem:[%s3 + $0x14c] sm:$0xf]
    %v1095 = vld [vmem:[%s3 + $0x150] sm:$0xf]
    %v1096 = vld [vmem:[%s3 + $0x154] sm:$0xf]
    %v1097 = vld [vmem:[%s3 + $0x158] sm:$0xf]
    %v1098 = vld [vmem:[%s3 + $0x15c] sm:$0xf]
    %v1099 = vld [vmem:[%s3 + $0x160] sm:$0xf]
    %v1100 = vld [vmem:[%s3 + $0x164] sm:$0xf]
    %v1101 = vld [vmem:[%s4] sm:$0x1]
    %v1103 = vperm.slane %v1101, 0
    %v1195 = vunpack.c.l.b16 %v1011
    %v1196 = vunpack.c.l.b16 %v1012
    %v1197 = vunpack.c.l.b16 %v1013
    %v1198 = vunpack.c.l.b16 %v1014
    %v1199 = vunpack.c.l.b16 %v1015
    %v1200 = vunpack.c.l.b16 %v1016
    %v1201 = vunpack.c.l.b16 %v1017
    %v1202 = vunpack.c.l.b16 %v1018
    %v1203 = vunpack.c.l.b16 %v1019
    %v1204 = vunpack.c.l.b16 %v1020
    %v1205 = vunpack.c.l.b16 %v1021
    %v1206 = vunpack.c.l.b16 %v1022
    %v1207 = vunpack.c.l.b16 %v1023
    %v1208 = vunpack.c.l.b16 %v1024
    %v1209 = vunpack.c.l.b16 %v1025
    %v1210 = vunpack.c.l.b16 %v1026
    %v1211 = vunpack.c.l.b16 %v1027
    %v1212 = vunpack.c.l.b16 %v1028
    %v1213 = vunpack.c.l.b16 %v1029
    %v1214 = vunpack.c.l.b16 %v1030
    %v1215 = vunpack.c.l.b16 %v1031
    %v1216 = vunpack.c.l.b16 %v1032
    %v1217 = vunpack.c.l.b16 %v1033
    %v1218 = vunpack.c.l.b16 %v1034
    %v1219 = vunpack.c.l.b16 %v1035
    %v1220 = vunpack.c.l.b16 %v1036
    %v1221 = vunpack.c.l.b16 %v1037
    %v1222 = vunpack.c.l.b16 %v1038
    %v1223 = vunpack.c.l.b16 %v1039
    %v1224 = vunpack.c.l.b16 %v1040
    %v1225 = vunpack.c.l.b16 %v1041
    %v1226 = vunpack.c.l.b16 %v1042
    %v1227 = vunpack.c.l.b16 %v1043
    %v1228 = vunpack.c.l.b16 %v1044
    %v1229 = vunpack.c.l.b16 %v1045
    %v1230 = vunpack.c.l.b16 %v1046
    %v1231 = vunpack.c.l.b16 %v1047
    %v1232 = vunpack.c.l.b16 %v1048
    %v1233 = vunpack.c.l.b16 %v1049
    %v1234 = vunpack.c.l.b16 %v1050
    %v1235 = vunpack.c.l.b16 %v1051
    %v1236 = vunpack.c.l.b16 %v1052
    %v1237 = vunpack.c.l.b16 %v1053
    %v1238 = vunpack.c.l.b16 %v1054
    %v1239 = vunpack.c.l.b16 %v1055
    %v1240 = vunpack.c.l.b16 %v1056
    %v1241 = vunpack.c.l.b16 %v1057
    %v1242 = vunpack.c.l.b16 %v1058
    %v1243 = vunpack.c.l.b16 %v1059
    %v1244 = vunpack.c.l.b16 %v1060
    %v1245 = vunpack.c.l.b16 %v1061
    %v1246 = vunpack.c.l.b16 %v1062
    %v1247 = vunpack.c.l.b16 %v1063
    %v1248 = vunpack.c.l.b16 %v1064
    %v1249 = vunpack.c.l.b16 %v1065
    %v1250 = vunpack.c.l.b16 %v1066
    %v1251 = vunpack.c.l.b16 %v1067
    %v1252 = vunpack.c.l.b16 %v1068
    %v1253 = vunpack.c.l.b16 %v1069
    %v1254 = vunpack.c.l.b16 %v1070
    %v1255 = vunpack.c.l.b16 %v1071
    %v1256 = vunpack.c.l.b16 %v1072
    %v1257 = vunpack.c.l.b16 %v1073
    %v1258 = vunpack.c.l.b16 %v1074
    %v1259 = vunpack.c.l.b16 %v1075
    %v1260 = vunpack.c.l.b16 %v1076
    %v1261 = vunpack.c.l.b16 %v1077
    %v1262 = vunpack.c.l.b16 %v1078
    %v1263 = vunpack.c.l.b16 %v1079
    %v1264 = vunpack.c.l.b16 %v1080
    %v1265 = vunpack.c.l.b16 %v1081
    %v1266 = vunpack.c.l.b16 %v1082
    %v1267 = vunpack.c.l.b16 %v1083
    %v1268 = vunpack.c.l.b16 %v1084
    %v1269 = vunpack.c.l.b16 %v1085
    %v1270 = vunpack.c.l.b16 %v1086
    %v1271 = vunpack.c.l.b16 %v1087
    %v1272 = vunpack.c.l.b16 %v1088
    %v1273 = vunpack.c.l.b16 %v1089
    %v1274 = vunpack.c.l.b16 %v1090
    %v1275 = vunpack.c.l.b16 %v1091
    %v1276 = vunpack.c.l.b16 %v1092
    %v1277 = vunpack.c.l.b16 %v1093
    %v1278 = vunpack.c.l.b16 %v1094
    %v1279 = vunpack.c.l.b16 %v1095
    %v1280 = vunpack.c.l.b16 %v1096
    %v1281 = vunpack.c.l.b16 %v1097
    %v1282 = vunpack.c.l.b16 %v1098
    %v1283 = vunpack.c.l.b16 %v1099
    %v1284 = vunpack.c.l.b16 %v1100
    %v1285 = vpack.c.b16 %v1196, %v1195
    %v1286 = vpack.c.b16 %v1198, %v1197
    %v1287 = vpack.c.b16 %v1200, %v1199
    %v1288 = vpack.c.b16 %v1202, %v1201
    %v1289 = vpack.c.b16 %v1204, %v1203
    %v1290 = vpack.c.b16 %v1206, %v1205
    %v1291 = vpack.c.b16 %v1208, %v1207
    %v1292 = vpack.c.b16 %v1210, %v1209
    %v1293 = vpack.c.b16 %v1212, %v1211
    %v1294 = vpack.c.b16 %v1214, %v1213
    %v1295 = vpack.c.b16 %v1216, %v1215
    %v1296 = vpack.c.b16 %v1218, %v1217
    %v1297 = vpack.c.b16 %v1220, %v1219
    %v1298 = vpack.c.b16 %v1222, %v1221
    %v1299 = vpack.c.b16 %v1224, %v1223
    %v1300 = vpack.c.b16 %v1226, %v1225
    %v1301 = vpack.c.b16 %v1228, %v1227
    %v1302 = vpack.c.b16 %v1230, %v1229
    %v1303 = vpack.c.b16 %v1232, %v1231
    %v1304 = vpack.c.b16 %v1234, %v1233
    %v1305 = vpack.c.b16 %v1236, %v1235
    %v1306 = vpack.c.b16 %v1238, %v1237
    %v1307 = vpack.c.b16 %v1240, %v1239
    %v1308 = vpack.c.b16 %v1242, %v1241
    %v1309 = vpack.c.b16 %v1244, %v1243
    %v1310 = vpack.c.b16 %v1246, %v1245
    %v1311 = vpack.c.b16 %v1248, %v1247
    %v1312 = vpack.c.b16 %v1250, %v1249
    %v1313 = vpack.c.b16 %v1252, %v1251
    %v1314 = vpack.c.b16 %v1254, %v1253
    %v1315 = vpack.c.b16 %v1256, %v1255
    %v1316 = vpack.c.b16 %v1258, %v1257
    %v1317 = vpack.c.b16 %v1260, %v1259
    %v1318 = vpack.c.b16 %v1262, %v1261
    %v1319 = vpack.c.b16 %v1264, %v1263
    %v1320 = vpack.c.b16 %v1266, %v1265
    %v1321 = vpack.c.b16 %v1268, %v1267
    %v1322 = vpack.c.b16 %v1270, %v1269
    %v1323 = vpack.c.b16 %v1272, %v1271
    %v1324 = vpack.c.b16 %v1274, %v1273
    %v1325 = vpack.c.b16 %v1276, %v1275
    %v1326 = vpack.c.b16 %v1278, %v1277
    %v1327 = vpack.c.b16 %v1280, %v1279
    %v1328 = vpack.c.b16 %v1282, %v1281
    %v1329 = vpack.c.b16 %v1284, %v1283
    %vm1375 = vcmask 654336
    %v1377 = vsel %vm1375, %v1010, 0
    %1379 = vmatpush.bf16.msra.mxu0 %v1292
    %1380 = vmatpush.bf16.msra.mxu0 %v1291
    %1381 = vmatpush.bf16.msra.mxu0 %v1290
    %1382 = vmatpush.bf16.msra.mxu0 %v1289
    %1383 = vmatpush.bf16.msra.mxu0 %v1288
    %1384 = vmatpush.bf16.msra.mxu0 %v1287
    %1385 = vmatpush.bf16.msra.mxu0 %v1286
    %1386 = vmatpush.bf16.msra.mxu0 %v1285
    %1387 = vmatmul.bf16.gmra.mxu0 %v1005
    %v1388 = vpop.f32.mrf.mxu0
    %v1389 = vadd.f32 %v1103, %v1388
    %v1390 = vpop.f32.mrf.mxu0
    %1391 = vdwg.mxu0
    %1392 = vmatpush.bf16.msra.mxu0 %v1300
    %1393 = vmatpush.bf16.msra.mxu0 %v1299
    %1394 = vmatpush.bf16.msra.mxu0 %v1298
    %1395 = vmatpush.bf16.msra.mxu0 %v1297
    %1396 = vmatpush.bf16.msra.mxu0 %v1296
    %1397 = vmatpush.bf16.msra.mxu0 %v1295
    %1398 = vmatpush.bf16.msra.mxu0 %v1294
    %1399 = vmatpush.bf16.msra.mxu0 %v1293
    %1400 = vmatmul.bf16.gmra.mxu0 %v1006
    %v1401 = vpop.f32.mrf.mxu0
    %v1402 = vadd.f32 %v1389, %v1401
    %v1403 = vpop.f32.mrf.mxu0
    %1404 = vdwg.mxu0
    %1405 = vmatpush.bf16.msra.mxu0 %v1308
    %1406 = vmatpush.bf16.msra.mxu0 %v1307
    %1407 = vmatpush.bf16.msra.mxu0 %v1306
    %1408 = vmatpush.bf16.msra.mxu0 %v1305
    %1409 = vmatpush.bf16.msra.mxu0 %v1304
    %1410 = vmatpush.bf16.msra.mxu0 %v1303
    %1411 = vmatpush.bf16.msra.mxu0 %v1302
    %1412 = vmatpush.bf16.msra.mxu0 %v1301
    %1413 = vmatmul.bf16.gmra.mxu0 %v1007
    %v1414 = vpop.f32.mrf.mxu0
    %v1415 = vadd.f32 %v1402, %v1414
    %v1416 = vpop.f32.mrf.mxu0
    %1417 = vdwg.mxu0
    %1418 = vmatpush.bf16.msra.mxu0 %v1316
    %1419 = vmatpush.bf16.msra.mxu0 %v1315
    %1420 = vmatpush.bf16.msra.mxu0 %v1314
    %1421 = vmatpush.bf16.msra.mxu0 %v1313
    %1422 = vmatpush.bf16.msra.mxu0 %v1312
    %1423 = vmatpush.bf16.msra.mxu0 %v1311
    %1424 = vmatpush.bf16.msra.mxu0 %v1310
    %1425 = vmatpush.bf16.msra.mxu0 %v1309
    %1426 = vmatmul.bf16.gmra.mxu0 %v1008
    %v1427 = vpop.f32.mrf.mxu0
    %v1428 = vadd.f32 %v1415, %v1427
    %v1429 = vpop.f32.mrf.mxu0
    %1430 = vdwg.mxu0
    %1431 = vmatpush.bf16.msra.mxu0 %v1324
    %1432 = vmatpush.bf16.msra.mxu0 %v1323
    %1433 = vmatpush.bf16.msra.mxu0 %v1322
    %1434 = vmatpush.bf16.msra.mxu0 %v1321
    %1435 = vmatpush.bf16.msra.mxu0 %v1320
    %1436 = vmatpush.bf16.msra.mxu0 %v1319
    %1437 = vmatpush.bf16.msra.mxu0 %v1318
    %1438 = vmatpush.bf16.msra.mxu0 %v1317
    %1439 = vmatmul.bf16.gmra.mxu0 %v1009
    %v1440 = vpop.f32.mrf.mxu0
    %v1441 = vadd.f32 %v1428, %v1440
    %v1442 = vpop.f32.mrf.mxu0
    %1443 = vdwg.mxu0
    %1444 = vmatpush.bf16.msra.mxu0 0
    %1445 = vmatpush.bf16.msra.mxu0 0
    %1446 = vmatpush.bf16.msra.mxu0 0
    %1447 = vmatpush.bf16.msra.mxu0 %v1329
    %1448 = vmatpush.bf16.msra.mxu0 %v1328
    %1449 = vmatpush.bf16.msra.mxu0 %v1327
    %1450 = vmatpush.bf16.msra.mxu0 %v1326
    %1451 = vmatpush.bf16.msra.mxu0 %v1325
    %1452 = vmatmul.bf16.gmra.mxu0 %v1377
    %v1453 = vpop.f32.mrf.mxu0
    %v1454 = vadd.f32 %v1441, %v1453
    %v1455 = vpop.f32.mrf.mxu0
    %1456 = vdwg.mxu0
    %v1457 = vmax.f32 %v1454, 0.0
    %1458 = vst [vmem:[#allocation1] ss:$9 sm:$0xff] %v531
    %s1459 = scalar_lea.vmem [#allocation1], 1
    %1460 = vst [vmem:[%s1459] ss:$9 sm:$0xff] %v532
    %v1461 = vld [vmem:[#allocation1] sm:$0xff]
    %v1462 = vld [vmem:[#allocation1 + $0x9] sm:$0xff]
    %1465 = vst [vmem:[#allocation1] ss:$9 sm:$0xff] %v571
    %s1466 = scalar_lea.vmem [#allocation1], 1
    %1467 = vst [vmem:[%s1466] ss:$9 sm:$0xff] %v572
    %v1468 = vld [vmem:[#allocation1] sm:$0xff]
    %v1469 = vld [vmem:[#allocation1 + $0x9] sm:$0xff]
    %1470 = vrot.lane.b32.xlu0 %v1468, 16
    %v1471 = vpop.permute.xlu0 %1470
    %1472 = vrot.lane.b32.xlu0 %v1469, 16
    %v1473 = vpop.permute.xlu0 %1472
    %v1474 = vsel %vm438, %v1471, %v1473
    %1477 = vst [vmem:[#allocation1] ss:$9 sm:$0xff] %v611
    %s1478 = scalar_lea.vmem [#allocation1], 1
    %1479 = vst [vmem:[%s1478] ss:$9 sm:$0xff] %v612
    %v1480 = vld [vmem:[#allocation1] sm:$0xff]
    %v1481 = vld [vmem:[#allocation1 + $0x9] sm:$0xff]
    %1482 = vrot.lane.b32.xlu0 %v1480, 32
    %v1483 = vpop.permute.xlu0 %1482
    %1484 = vrot.lane.b32.xlu0 %v1481, 32
    %v1485 = vpop.permute.xlu0 %1484
    %v1486 = vsel %vm967, %v1483, %v1485
    %1489 = vst [vmem:[#allocation1] ss:$9 sm:$0xff] %v651
    %s1490 = scalar_lea.vmem [#allocation1], 1
    %1491 = vst [vmem:[%s1490] ss:$9 sm:$0xff] %v652
    %v1492 = vld [vmem:[#allocation1] sm:$0xff]
    %v1493 = vld [vmem:[#allocation1 + $0x9] sm:$0xff]
    %1494 = vrot.lane.b32.xlu0 %v1492, 48
    %v1495 = vpop.permute.xlu0 %1494
    %1496 = vrot.lane.b32.xlu0 %v1493, 48
    %v1497 = vpop.permute.xlu0 %1496
    %v1498 = vsel %vm982, %v1495, %v1497
    %1503 = vst [vmem:[#allocation1] ss:$9 sm:$0xff] %v691
    %s1504 = scalar_lea.vmem [#allocation1], 1
    %1505 = vst [vmem:[%s1504] ss:$9 sm:$0xff] %v692
    %v1506 = vld [vmem:[#allocation1] sm:$0xff]
    %v1507 = vld [vmem:[#allocation1 + $0x9] sm:$0xff]
    %1508 = vrot.lane.b32.xlu0 %v1506, 64
    %v1509 = vpop.permute.xlu0 %1508
    %1510 = vrot.lane.b32.xlu0 %v1507, 64
    %v1511 = vpop.permute.xlu0 %1510
    %v1512 = vsel %vm997, %v1509, %v1511
    %v1515 = vsel %vm438, %v1462, %v1471
    %v1516 = vsel %vm967, %v1474, %v1483
    %v1517 = vsel %vm982, %v1486, %v1495
    %v1518 = vsel %vm997, %v1498, %v1509
    %v1519 = vpack.c.bf16 %v1461, %v1461
    %v1520 = vpack.c.bf16 %v1515, %v1515
    %v1521 = vpack.c.bf16 %v1516, %v1516
    %v1522 = vpack.c.bf16 %v1517, %v1517
    %v1523 = vpack.c.bf16 %v1518, %v1518
    %v1524 = vpack.c.bf16 %v1512, %v1512
    %v1526 = vsel %vm1375, %v1524, 0
    %1528 = vmatpush.bf16.msra.mxu0 %v1292
    %1529 = vmatpush.bf16.msra.mxu0 %v1291
    %1530 = vmatpush.bf16.msra.mxu0 %v1290
    %1531 = vmatpush.bf16.msra.mxu0 %v1289
    %1532 = vmatpush.bf16.msra.mxu0 %v1288
    %1533 = vmatpush.bf16.msra.mxu0 %v1287
    %1534 = vmatpush.bf16.msra.mxu0 %v1286
    %1535 = vmatpush.bf16.msra.mxu0 %v1285
    %1536 = vmatmul.bf16.gmra.mxu0 %v1519
    %v1537 = vpop.f32.mrf.mxu0
    %v1538 = vadd.f32 %v1103, %v1537
    %v1539 = vpop.f32.mrf.mxu0
    %1540 = vdwg.mxu0
    %1541 = vmatpush.bf16.msra.mxu0 %v1300
    %1542 = vmatpush.bf16.msra.mxu0 %v1299
    %1543 = vmatpush.bf16.msra.mxu0 %v1298
    %1544 = vmatpush.bf16.msra.mxu0 %v1297
    %1545 = vmatpush.bf16.msra.mxu0 %v1296
    %1546 = vmatpush.bf16.msra.mxu0 %v1295
    %1547 = vmatpush.bf16.msra.mxu0 %v1294
    %1548 = vmatpush.bf16.msra.mxu0 %v1293
    %1549 = vmatmul.bf16.gmra.mxu0 %v1520
    %v1550 = vpop.f32.mrf.mxu0
    %v1551 = vadd.f32 %v1538, %v1550
    %v1552 = vpop.f32.mrf.mxu0
    %1553 = vdwg.mxu0
    %1554 = vmatpush.bf16.msra.mxu0 %v1308
    %1555 = vmatpush.bf16.msra.mxu0 %v1307
    %1556 = vmatpush.bf16.msra.mxu0 %v1306
    %1557 = vmatpush.bf16.msra.mxu0 %v1305
    %1558 = vmatpush.bf16.msra.mxu0 %v1304
    %1559 = vmatpush.bf16.msra.mxu0 %v1303
    %1560 = vmatpush.bf16.msra.mxu0 %v1302
    %1561 = vmatpush.bf16.msra.mxu0 %v1301
    %1562 = vmatmul.bf16.gmra.mxu0 %v1521
    %v1563 = vpop.f32.mrf.mxu0
    %v1564 = vadd.f32 %v1551, %v1563
    %v1565 = vpop.f32.mrf.mxu0
    %1566 = vdwg.mxu0
    %1567 = vmatpush.bf16.msra.mxu0 %v1316
    %1568 = vmatpush.bf16.msra.mxu0 %v1315
    %1569 = vmatpush.bf16.msra.mxu0 %v1314
    %1570 = vmatpush.bf16.msra.mxu0 %v1313
    %1571 = vmatpush.bf16.msra.mxu0 %v1312
    %1572 = vmatpush.bf16.msra.mxu0 %v1311
    %1573 = vmatpush.bf16.msra.mxu0 %v1310
    %1574 = vmatpush.bf16.msra.mxu0 %v1309
    %1575 = vmatmul.bf16.gmra.mxu0 %v1522
    %v1576 = vpop.f32.mrf.mxu0
    %v1577 = vadd.f32 %v1564, %v1576
    %v1578 = vpop.f32.mrf.mxu0
    %1579 = vdwg.mxu0
    %1580 = vmatpush.bf16.msra.mxu0 %v1324
    %1581 = vmatpush.bf16.msra.mxu0 %v1323
    %1582 = vmatpush.bf16.msra.mxu0 %v1322
    %1583 = vmatpush.bf16.msra.mxu0 %v1321
    %1584 = vmatpush.bf16.msra.mxu0 %v1320
    %1585 = vmatpush.bf16.msra.mxu0 %v1319
    %1586 = vmatpush.bf16.msra.mxu0 %v1318
    %1587 = vmatpush.bf16.msra.mxu0 %v1317
    %1588 = vmatmul.bf16.gmra.mxu0 %v1523
    %v1589 = vpop.f32.mrf.mxu0
    %v1590 = vadd.f32 %v1577, %v1589
    %v1591 = vpop.f32.mrf.mxu0
    %1592 = vdwg.mxu0
    %1593 = vmatpush.bf16.msra.mxu0 0
    %1594 = vmatpush.bf16.msra.mxu0 0
    %1595 = vmatpush.bf16.msra.mxu0 0
    %1596 = vmatpush.bf16.msra.mxu0 %v1329
    %1597 = vmatpush.bf16.msra.mxu0 %v1328
    %1598 = vmatpush.bf16.msra.mxu0 %v1327
    %1599 = vmatpush.bf16.msra.mxu0 %v1326
    %1600 = vmatpush.bf16.msra.mxu0 %v1325
    %1601 = vmatmul.bf16.gmra.mxu0 %v1526
    %v1602 = vpop.f32.mrf.mxu0
    %v1603 = vadd.f32 %v1590, %v1602
    %v1604 = vpop.f32.mrf.mxu0
    %1605 = vdwg.mxu0
    %v1606 = vmax.f32 %v1603, 0.0
    %1607 = vst [vmem:[#allocation1] ss:$9 sm:$0xff] %v571
    %s1608 = scalar_lea.vmem [#allocation1], 1
    %1609 = vst [vmem:[%s1608] ss:$9 sm:$0xff] %v572
    %v1610 = vld [vmem:[#allocation1] sm:$0xff]
    %v1611 = vld [vmem:[#allocation1 + $0x9] sm:$0xff]
    %1614 = vst [vmem:[#allocation1] ss:$9 sm:$0xff] %v611
    %s1615 = scalar_lea.vmem [#allocation1], 1
    %1616 = vst [vmem:[%s1615] ss:$9 sm:$0xff] %v612
    %v1617 = vld [vmem:[#allocation1] sm:$0xff]
    %v1618 = vld [vmem:[#allocation1 + $0x9] sm:$0xff]
    %1619 = vrot.lane.b32.xlu0 %v1617, 16
    %v1620 = vpop.permute.xlu0 %1619
    %1621 = vrot.lane.b32.xlu0 %v1618, 16
    %v1622 = vpop.permute.xlu0 %1621
    %v1623 = vsel %vm438, %v1620, %v1622
    %1626 = vst [vmem:[#allocation1] ss:$9 sm:$0xff] %v651
    %s1627 = scalar_lea.vmem [#allocation1], 1
    %1628 = vst [vmem:[%s1627] ss:$9 sm:$0xff] %v652
    %v1629 = vld [vmem:[#allocation1] sm:$0xff]
    %v1630 = vld [vmem:[#allocation1 + $0x9] sm:$0xff]
    %1631 = vrot.lane.b32.xlu0 %v1629, 32
    %v1632 = vpop.permute.xlu0 %1631
    %1633 = vrot.lane.b32.xlu0 %v1630, 32
    %v1634 = vpop.permute.xlu0 %1633
    %v1635 = vsel %vm967, %v1632, %v1634
    %1638 = vst [vmem:[#allocation1] ss:$9 sm:$0xff] %v691
    %s1639 = scalar_lea.vmem [#allocation1], 1
    %1640 = vst [vmem:[%s1639] ss:$9 sm:$0xff] %v692
    %v1641 = vld [vmem:[#allocation1] sm:$0xff]
    %v1642 = vld [vmem:[#allocation1 + $0x9] sm:$0xff]
    %1643 = vrot.lane.b32.xlu0 %v1641, 48
    %v1644 = vpop.permute.xlu0 %1643
    %1645 = vrot.lane.b32.xlu0 %v1642, 48
    %v1646 = vpop.permute.xlu0 %1645
    %v1647 = vsel %vm982, %v1644, %v1646
    %1652 = vst [vmem:[#allocation1] ss:$9 sm:$0xff] %v731
    %s1653 = scalar_lea.vmem [#allocation1], 1
    %1654 = vst [vmem:[%s1653] ss:$9 sm:$0xff] %v732
    %v1655 = vld [vmem:[#allocation1] sm:$0xff]
    %v1656 = vld [vmem:[#allocation1 + $0x9] sm:$0xff]
    %1657 = vrot.lane.b32.xlu0 %v1655, 64
    %v1658 = vpop.permute.xlu0 %1657
    %1659 = vrot.lane.b32.xlu0 %v1656, 64
    %v1660 = vpop.permute.xlu0 %1659
    %v1661 = vsel %vm997, %v1658, %v1660
    %v1664 = vsel %vm438, %v1611, %v1620
    %v1665 = vsel %vm967, %v1623, %v1632
    %v1666 = vsel %vm982, %v1635, %v1644
    %v1667 = vsel %vm997, %v1647, %v1658
    %v1668 = vpack.c.bf16 %v1610, %v1610
    %v1669 = vpack.c.bf16 %v1664, %v1664
    %v1670 = vpack.c.bf16 %v1665, %v1665
    %v1671 = vpack.c.bf16 %v1666, %v1666
    %v1672 = vpack.c.bf16 %v1667, %v1667
    %v1673 = vpack.c.bf16 %v1661, %v1661
    %v1675 = vsel %vm1375, %v1673, 0
    %1677 = vmatpush.bf16.msra.mxu0 %v1292
    %1678 = vmatpush.bf16.msra.mxu0 %v1291
    %1679 = vmatpush.bf16.msra.mxu0 %v1290
    %1680 = vmatpush.bf16.msra.mxu0 %v1289
    %1681 = vmatpush.bf16.msra.mxu0 %v1288
    %1682 = vmatpush.bf16.msra.mxu0 %v1287
    %1683 = vmatpush.bf16.msra.mxu0 %v1286
    %1684 = vmatpush.bf16.msra.mxu0 %v1285
    %1685 = vmatmul.bf16.gmra.mxu0 %v1668
    %v1686 = vpop.f32.mrf.mxu0
    %v1687 = vadd.f32 %v1103, %v1686
    %v1688 = vpop.f32.mrf.mxu0
    %1689 = vdwg.mxu0
    %1690 = vmatpush.bf16.msra.mxu0 %v1300
    %1691 = vmatpush.bf16.msra.mxu0 %v1299
    %1692 = vmatpush.bf16.msra.mxu0 %v1298
    %1693 = vmatpush.bf16.msra.mxu0 %v1297
    %1694 = vmatpush.bf16.msra.mxu0 %v1296
    %1695 = vmatpush.bf16.msra.mxu0 %v1295
    %1696 = vmatpush.bf16.msra.mxu0 %v1294
    %1697 = vmatpush.bf16.msra.mxu0 %v1293
    %1698 = vmatmul.bf16.gmra.mxu0 %v1669
    %v1699 = vpop.f32.mrf.mxu0
    %v1700 = vadd.f32 %v1687, %v1699
    %v1701 = vpop.f32.mrf.mxu0
    %1702 = vdwg.mxu0
    %1703 = vmatpush.bf16.msra.mxu0 %v1308
    %1704 = vmatpush.bf16.msra.mxu0 %v1307
    %1705 = vmatpush.bf16.msra.mxu0 %v1306
    %1706 = vmatpush.bf16.msra.mxu0 %v1305
    %1707 = vmatpush.bf16.msra.mxu0 %v1304
    %1708 = vmatpush.bf16.msra.mxu0 %v1303
    %1709 = vmatpush.bf16.msra.mxu0 %v1302
    %1710 = vmatpush.bf16.msra.mxu0 %v1301
    %1711 = vmatmul.bf16.gmra.mxu0 %v1670
    %v1712 = vpop.f32.mrf.mxu0
    %v1713 = vadd.f32 %v1700, %v1712
    %v1714 = vpop.f32.mrf.mxu0
    %1715 = vdwg.mxu0
    %1716 = vmatpush.bf16.msra.mxu0 %v1316
    %1717 = vmatpush.bf16.msra.mxu0 %v1315
    %1718 = vmatpush.bf16.msra.mxu0 %v1314
    %1719 = vmatpush.bf16.msra.mxu0 %v1313
    %1720 = vmatpush.bf16.msra.mxu0 %v1312
    %1721 = vmatpush.bf16.msra.mxu0 %v1311
    %1722 = vmatpush.bf16.msra.mxu0 %v1310
    %1723 = vmatpush.bf16.msra.mxu0 %v1309
    %1724 = vmatmul.bf16.gmra.mxu0 %v1671
    %v1725 = vpop.f32.mrf.mxu0
    %v1726 = vadd.f32 %v1713, %v1725
    %v1727 = vpop.f32.mrf.mxu0
    %1728 = vdwg.mxu0
    %1729 = vmatpush.bf16.msra.mxu0 %v1324
    %1730 = vmatpush.bf16.msra.mxu0 %v1323
    %1731 = vmatpush.bf16.msra.mxu0 %v1322
    %1732 = vmatpush.bf16.msra.mxu0 %v1321
    %1733 = vmatpush.bf16.msra.mxu0 %v1320
    %1734 = vmatpush.bf16.msra.mxu0 %v1319
    %1735 = vmatpush.bf16.msra.mxu0 %v1318
    %1736 = vmatpush.bf16.msra.mxu0 %v1317
    %1737 = vmatmul.bf16.gmra.mxu0 %v1672
    %v1738 = vpop.f32.mrf.mxu0
    %v1739 = vadd.f32 %v1726, %v1738
    %v1740 = vpop.f32.mrf.mxu0
    %1741 = vdwg.mxu0
    %1742 = vmatpush.bf16.msra.mxu0 0
    %1743 = vmatpush.bf16.msra.mxu0 0
    %1744 = vmatpush.bf16.msra.mxu0 0
    %1745 = vmatpush.bf16.msra.mxu0 %v1329
    %1746 = vmatpush.bf16.msra.mxu0 %v1328
    %1747 = vmatpush.bf16.msra.mxu0 %v1327
    %1748 = vmatpush.bf16.msra.mxu0 %v1326
    %1749 = vmatpush.bf16.msra.mxu0 %v1325
    %1750 = vmatmul.bf16.gmra.mxu0 %v1675
    %v1751 = vpop.f32.mrf.mxu0
    %v1752 = vadd.f32 %v1739, %v1751
    %v1753 = vpop.f32.mrf.mxu0
    %1754 = vdwg.mxu0
    %v1755 = vmax.f32 %v1752, 0.0
    %1756 = vst [vmem:[#allocation1] ss:$9 sm:$0xff] %v611
    %s1757 = scalar_lea.vmem [#allocation1], 1
    %1758 = vst [vmem:[%s1757] ss:$9 sm:$0xff] %v612
    %v1759 = vld [vmem:[#allocation1] sm:$0xff]
    %v1760 = vld [vmem:[#allocation1 + $0x9] sm:$0xff]
    %1763 = vst [vmem:[#allocation1] ss:$9 sm:$0xff] %v651
    %s1764 = scalar_lea.vmem [#allocation1], 1
    %1765 = vst [vmem:[%s1764] ss:$9 sm:$0xff] %v652
    %v1766 = vld [vmem:[#allocation1] sm:$0xff]
    %v1767 = vld [vmem:[#allocation1 + $0x9] sm:$0xff]
    %1768 = vrot.lane.b32.xlu0 %v1766, 16
    %v1769 = vpop.permute.xlu0 %1768
    %1770 = vrot.lane.b32.xlu0 %v1767, 16
    %v1771 = vpop.permute.xlu0 %1770
    %v1772 = vsel %vm438, %v1769, %v1771
    %1775 = vst [vmem:[#allocation1] ss:$9 sm:$0xff] %v691
    %s1776 = scalar_lea.vmem [#allocation1], 1
    %1777 = vst [vmem:[%s1776] ss:$9 sm:$0xff] %v692
    %v1778 = vld [vmem:[#allocation1] sm:$0xff]
    %v1779 = vld [vmem:[#allocation1 + $0x9] sm:$0xff]
    %1780 = vrot.lane.b32.xlu0 %v1778, 32
    %v1781 = vpop.permute.xlu0 %1780
    %1782 = vrot.lane.b32.xlu0 %v1779, 32
    %v1783 = vpop.permute.xlu0 %1782
    %v1784 = vsel %vm967, %v1781, %v1783
    %1787 = vst [vmem:[#allocation1] ss:$9 sm:$0xff] %v731
    %s1788 = scalar_lea.vmem [#allocation1], 1
    %1789 = vst [vmem:[%s1788] ss:$9 sm:$0xff] %v732
    %v1790 = vld [vmem:[#allocation1] sm:$0xff]
    %v1791 = vld [vmem:[#allocation1 + $0x9] sm:$0xff]
    %1792 = vrot.lane.b32.xlu0 %v1790, 48
    %v1793 = vpop.permute.xlu0 %1792
    %1794 = vrot.lane.b32.xlu0 %v1791, 48
    %v1795 = vpop.permute.xlu0 %1794
    %v1796 = vsel %vm982, %v1793, %v1795
    %1801 = vst [vmem:[#allocation1] ss:$9 sm:$0xff] %v771
    %s1802 = scalar_lea.vmem [#allocation1], 1
    %1803 = vst [vmem:[%s1802] ss:$9 sm:$0xff] %v772
    %v1804 = vld [vmem:[#allocation1] sm:$0xff]
    %v1805 = vld [vmem:[#allocation1 + $0x9] sm:$0xff]
    %1806 = vrot.lane.b32.xlu0 %v1804, 64
    %v1807 = vpop.permute.xlu0 %1806
    %1808 = vrot.lane.b32.xlu0 %v1805, 64
    %v1809 = vpop.permute.xlu0 %1808
    %v1810 = vsel %vm997, %v1807, %v1809
    %v1813 = vsel %vm438, %v1760, %v1769
    %v1814 = vsel %vm967, %v1772, %v1781
    %v1815 = vsel %vm982, %v1784, %v1793
    %v1816 = vsel %vm997, %v1796, %v1807
    %v1817 = vpack.c.bf16 %v1759, %v1759
    %v1818 = vpack.c.bf16 %v1813, %v1813
    %v1819 = vpack.c.bf16 %v1814, %v1814
    %v1820 = vpack.c.bf16 %v1815, %v1815
    %v1821 = vpack.c.bf16 %v1816, %v1816
    %v1822 = vpack.c.bf16 %v1810, %v1810
    %v1824 = vsel %vm1375, %v1822, 0
    %1826 = vmatpush.bf16.msra.mxu0 %v1292
    %1827 = vmatpush.bf16.msra.mxu0 %v1291
    %1828 = vmatpush.bf16.msra.mxu0 %v1290
    %1829 = vmatpush.bf16.msra.mxu0 %v1289
    %1830 = vmatpush.bf16.msra.mxu0 %v1288
    %1831 = vmatpush.bf16.msra.mxu0 %v1287
    %1832 = vmatpush.bf16.msra.mxu0 %v1286
    %1833 = vmatpush.bf16.msra.mxu0 %v1285
    %1834 = vmatmul.bf16.gmra.mxu0 %v1817
    %v1835 = vpop.f32.mrf.mxu0
    %v1836 = vadd.f32 %v1103, %v1835
    %v1837 = vpop.f32.mrf.mxu0
    %1838 = vdwg.mxu0
    %1839 = vmatpush.bf16.msra.mxu0 %v1300
    %1840 = vmatpush.bf16.msra.mxu0 %v1299
    %1841 = vmatpush.bf16.msra.mxu0 %v1298
    %1842 = vmatpush.bf16.msra.mxu0 %v1297
    %1843 = vmatpush.bf16.msra.mxu0 %v1296
    %1844 = vmatpush.bf16.msra.mxu0 %v1295
    %1845 = vmatpush.bf16.msra.mxu0 %v1294
    %1846 = vmatpush.bf16.msra.mxu0 %v1293
    %1847 = vmatmul.bf16.gmra.mxu0 %v1818
    %v1848 = vpop.f32.mrf.mxu0
    %v1849 = vadd.f32 %v1836, %v1848
    %v1850 = vpop.f32.mrf.mxu0
    %1851 = vdwg.mxu0
    %1852 = vmatpush.bf16.msra.mxu0 %v1308
    %1853 = vmatpush.bf16.msra.mxu0 %v1307
    %1854 = vmatpush.bf16.msra.mxu0 %v1306
    %1855 = vmatpush.bf16.msra.mxu0 %v1305
    %1856 = vmatpush.bf16.msra.mxu0 %v1304
    %1857 = vmatpush.bf16.msra.mxu0 %v1303
    %1858 = vmatpush.bf16.msra.mxu0 %v1302
    %1859 = vmatpush.bf16.msra.mxu0 %v1301
    %1860 = vmatmul.bf16.gmra.mxu0 %v1819
    %v1861 = vpop.f32.mrf.mxu0
    %v1862 = vadd.f32 %v1849, %v1861
    %v1863 = vpop.f32.mrf.mxu0
    %1864 = vdwg.mxu0
    %1865 = vmatpush.bf16.msra.mxu0 %v1316
    %1866 = vmatpush.bf16.msra.mxu0 %v1315
    %1867 = vmatpush.bf16.msra.mxu0 %v1314
    %1868 = vmatpush.bf16.msra.mxu0 %v1313
    %1869 = vmatpush.bf16.msra.mxu0 %v1312
    %1870 = vmatpush.bf16.msra.mxu0 %v1311
    %1871 = vmatpush.bf16.msra.mxu0 %v1310
    %1872 = vmatpush.bf16.msra.mxu0 %v1309
    %1873 = vmatmul.bf16.gmra.mxu0 %v1820
    %v1874 = vpop.f32.mrf.mxu0
    %v1875 = vadd.f32 %v1862, %v1874
    %v1876 = vpop.f32.mrf.mxu0
    %1877 = vdwg.mxu0
    %1878 = vmatpush.bf16.msra.mxu0 %v1324
    %1879 = vmatpush.bf16.msra.mxu0 %v1323
    %1880 = vmatpush.bf16.msra.mxu0 %v1322
    %1881 = vmatpush.bf16.msra.mxu0 %v1321
    %1882 = vmatpush.bf16.msra.mxu0 %v1320
    %1883 = vmatpush.bf16.msra.mxu0 %v1319
    %1884 = vmatpush.bf16.msra.mxu0 %v1318
    %1885 = vmatpush.bf16.msra.mxu0 %v1317
    %1886 = vmatmul.bf16.gmra.mxu0 %v1821
    %v1887 = vpop.f32.mrf.mxu0
    %v1888 = vadd.f32 %v1875, %v1887
    %v1889 = vpop.f32.mrf.mxu0
    %1890 = vdwg.mxu0
    %1891 = vmatpush.bf16.msra.mxu0 0
    %1892 = vmatpush.bf16.msra.mxu0 0
    %1893 = vmatpush.bf16.msra.mxu0 0
    %1894 = vmatpush.bf16.msra.mxu0 %v1329
    %1895 = vmatpush.bf16.msra.mxu0 %v1328
    %1896 = vmatpush.bf16.msra.mxu0 %v1327
    %1897 = vmatpush.bf16.msra.mxu0 %v1326
    %1898 = vmatpush.bf16.msra.mxu0 %v1325
    %1899 = vmatmul.bf16.gmra.mxu0 %v1824
    %v1900 = vpop.f32.mrf.mxu0
    %v1901 = vadd.f32 %v1888, %v1900
    %v1902 = vpop.f32.mrf.mxu0
    %1903 = vdwg.mxu0
    %v1904 = vmax.f32 %v1901, 0.0
    %1905 = vst [vmem:[#allocation1] ss:$9 sm:$0xff] %v651
    %s1906 = scalar_lea.vmem [#allocation1], 1
    %1907 = vst [vmem:[%s1906] ss:$9 sm:$0xff] %v652
    %v1908 = vld [vmem:[#allocation1] sm:$0xff]
    %v1909 = vld [vmem:[#allocation1 + $0x9] sm:$0xff]
    %1912 = vst [vmem:[#allocation1] ss:$9 sm:$0xff] %v691
    %s1913 = scalar_lea.vmem [#allocation1], 1
    %1914 = vst [vmem:[%s1913] ss:$9 sm:$0xff] %v692
    %v1915 = vld [vmem:[#allocation1] sm:$0xff]
    %v1916 = vld [vmem:[#allocation1 + $0x9] sm:$0xff]
    %1917 = vrot.lane.b32.xlu0 %v1915, 16
    %v1918 = vpop.permute.xlu0 %1917
    %1919 = vrot.lane.b32.xlu0 %v1916, 16
    %v1920 = vpop.permute.xlu0 %1919
    %v1921 = vsel %vm438, %v1918, %v1920
    %1924 = vst [vmem:[#allocation1] ss:$9 sm:$0xff] %v731
    %s1925 = scalar_lea.vmem [#allocation1], 1
    %1926 = vst [vmem:[%s1925] ss:$9 sm:$0xff] %v732
    %v1927 = vld [vmem:[#allocation1] sm:$0xff]
    %v1928 = vld [vmem:[#allocation1 + $0x9] sm:$0xff]
    %1929 = vrot.lane.b32.xlu0 %v1927, 32
    %v1930 = vpop.permute.xlu0 %1929
    %1931 = vrot.lane.b32.xlu0 %v1928, 32
    %v1932 = vpop.permute.xlu0 %1931
    %v1933 = vsel %vm967, %v1930, %v1932
    %1936 = vst [vmem:[#allocation1] ss:$9 sm:$0xff] %v771
    %s1937 = scalar_lea.vmem [#allocation1], 1
    %1938 = vst [vmem:[%s1937] ss:$9 sm:$0xff] %v772
    %v1939 = vld [vmem:[#allocation1] sm:$0xff]
    %v1940 = vld [vmem:[#allocation1 + $0x9] sm:$0xff]
    %1941 = vrot.lane.b32.xlu0 %v1939, 48
    %v1942 = vpop.permute.xlu0 %1941
    %1943 = vrot.lane.b32.xlu0 %v1940, 48
    %v1944 = vpop.permute.xlu0 %1943
    %v1945 = vsel %vm982, %v1942, %v1944
    %1950 = vst [vmem:[#allocation1] ss:$9 sm:$0xff] %v811
    %s1951 = scalar_lea.vmem [#allocation1], 1
    %1952 = vst [vmem:[%s1951] ss:$9 sm:$0xff] %v812
    %v1953 = vld [vmem:[#allocation1] sm:$0xff]
    %v1954 = vld [vmem:[#allocation1 + $0x9] sm:$0xff]
    %1955 = vrot.lane.b32.xlu0 %v1953, 64
    %v1956 = vpop.permute.xlu0 %1955
    %1957 = vrot.lane.b32.xlu0 %v1954, 64
    %v1958 = vpop.permute.xlu0 %1957
    %v1959 = vsel %vm997, %v1956, %v1958
    %v1962 = vsel %vm438, %v1909, %v1918
    %v1963 = vsel %vm967, %v1921, %v1930
    %v1964 = vsel %vm982, %v1933, %v1942
    %v1965 = vsel %vm997, %v1945, %v1956
    %v1966 = vpack.c.bf16 %v1908, %v1908
    %v1967 = vpack.c.bf16 %v1962, %v1962
    %v1968 = vpack.c.bf16 %v1963, %v1963
    %v1969 = vpack.c.bf16 %v1964, %v1964
    %v1970 = vpack.c.bf16 %v1965, %v1965
    %v1971 = vpack.c.bf16 %v1959, %v1959
    %v1973 = vsel %vm1375, %v1971, 0
    %1975 = vmatpush.bf16.msra.mxu0 %v1292
    %1976 = vmatpush.bf16.msra.mxu0 %v1291
    %1977 = vmatpush.bf16.msra.mxu0 %v1290
    %1978 = vmatpush.bf16.msra.mxu0 %v1289
    %1979 = vmatpush.bf16.msra.mxu0 %v1288
    %1980 = vmatpush.bf16.msra.mxu0 %v1287
    %1981 = vmatpush.bf16.msra.mxu0 %v1286
    %1982 = vmatpush.bf16.msra.mxu0 %v1285
    %1983 = vmatmul.bf16.gmra.mxu0 %v1966
    %v1984 = vpop.f32.mrf.mxu0
    %v1985 = vadd.f32 %v1103, %v1984
    %v1986 = vpop.f32.mrf.mxu0
    %1987 = vdwg.mxu0
    %1988 = vmatpush.bf16.msra.mxu0 %v1300
    %1989 = vmatpush.bf16.msra.mxu0 %v1299
    %1990 = vmatpush.bf16.msra.mxu0 %v1298
    %1991 = vmatpush.bf16.msra.mxu0 %v1297
    %1992 = vmatpush.bf16.msra.mxu0 %v1296
    %1993 = vmatpush.bf16.msra.mxu0 %v1295
    %1994 = vmatpush.bf16.msra.mxu0 %v1294
    %1995 = vmatpush.bf16.msra.mxu0 %v1293
    %1996 = vmatmul.bf16.gmra.mxu0 %v1967
    %v1997 = vpop.f32.mrf.mxu0
    %v1998 = vadd.f32 %v1985, %v1997
    %v1999 = vpop.f32.mrf.mxu0
    %2000 = vdwg.mxu0
    %2001 = vmatpush.bf16.msra.mxu0 %v1308
    %2002 = vmatpush.bf16.msra.mxu0 %v1307
    %2003 = vmatpush.bf16.msra.mxu0 %v1306
    %2004 = vmatpush.bf16.msra.mxu0 %v1305
    %2005 = vmatpush.bf16.msra.mxu0 %v1304
    %2006 = vmatpush.bf16.msra.mxu0 %v1303
    %2007 = vmatpush.bf16.msra.mxu0 %v1302
    %2008 = vmatpush.bf16.msra.mxu0 %v1301
    %2009 = vmatmul.bf16.gmra.mxu0 %v1968
    %v2010 = vpop.f32.mrf.mxu0
    %v2011 = vadd.f32 %v1998, %v2010
    %v2012 = vpop.f32.mrf.mxu0
    %2013 = vdwg.mxu0
    %2014 = vmatpush.bf16.msra.mxu0 %v1316
    %2015 = vmatpush.bf16.msra.mxu0 %v1315
    %2016 = vmatpush.bf16.msra.mxu0 %v1314
    %2017 = vmatpush.bf16.msra.mxu0 %v1313
    %2018 = vmatpush.bf16.msra.mxu0 %v1312
    %2019 = vmatpush.bf16.msra.mxu0 %v1311
    %2020 = vmatpush.bf16.msra.mxu0 %v1310
    %2021 = vmatpush.bf16.msra.mxu0 %v1309
    %2022 = vmatmul.bf16.gmra.mxu0 %v1969
    %v2023 = vpop.f32.mrf.mxu0
    %v2024 = vadd.f32 %v2011, %v2023
    %v2025 = vpop.f32.mrf.mxu0
    %2026 = vdwg.mxu0
    %2027 = vmatpush.bf16.msra.mxu0 %v1324
    %2028 = vmatpush.bf16.msra.mxu0 %v1323
    %2029 = vmatpush.bf16.msra.mxu0 %v1322
    %2030 = vmatpush.bf16.msra.mxu0 %v1321
    %2031 = vmatpush.bf16.msra.mxu0 %v1320
    %2032 = vmatpush.bf16.msra.mxu0 %v1319
    %2033 = vmatpush.bf16.msra.mxu0 %v1318
    %2034 = vmatpush.bf16.msra.mxu0 %v1317
    %2035 = vmatmul.bf16.gmra.mxu0 %v1970
    %v2036 = vpop.f32.mrf.mxu0
    %v2037 = vadd.f32 %v2024, %v2036
    %v2038 = vpop.f32.mrf.mxu0
    %2039 = vdwg.mxu0
    %2040 = vmatpush.bf16.msra.mxu0 0
    %2041 = vmatpush.bf16.msra.mxu0 0
    %2042 = vmatpush.bf16.msra.mxu0 0
    %2043 = vmatpush.bf16.msra.mxu0 %v1329
    %2044 = vmatpush.bf16.msra.mxu0 %v1328
    %2045 = vmatpush.bf16.msra.mxu0 %v1327
    %2046 = vmatpush.bf16.msra.mxu0 %v1326
    %2047 = vmatpush.bf16.msra.mxu0 %v1325
    %2048 = vmatmul.bf16.gmra.mxu0 %v1973
    %v2049 = vpop.f32.mrf.mxu0
    %v2050 = vadd.f32 %v2037, %v2049
    %v2051 = vpop.f32.mrf.mxu0
    %2052 = vdwg.mxu0
    %v2053 = vmax.f32 %v2050, 0.0
    %2054 = vst [vmem:[#allocation1] ss:$9 sm:$0xff] %v691
    %s2055 = scalar_lea.vmem [#allocation1], 1
    %2056 = vst [vmem:[%s2055] ss:$9 sm:$0xff] %v692
    %v2057 = vld [vmem:[#allocation1] sm:$0xff]
    %v2058 = vld [vmem:[#allocation1 + $0x9] sm:$0xff]
    %2061 = vst [vmem:[#allocation1] ss:$9 sm:$0xff] %v731
    %s2062 = scalar_lea.vmem [#allocation1], 1
    %2063 = vst [vmem:[%s2062] ss:$9 sm:$0xff] %v732
    %v2064 = vld [vmem:[#allocation1] sm:$0xff]
    %v2065 = vld [vmem:[#allocation1 + $0x9] sm:$0xff]
    %2066 = vrot.lane.b32.xlu0 %v2064, 16
    %v2067 = vpop.permute.xlu0 %2066
    %2068 = vrot.lane.b32.xlu0 %v2065, 16
    %v2069 = vpop.permute.xlu0 %2068
    %v2070 = vsel %vm438, %v2067, %v2069
    %2073 = vst [vmem:[#allocation1] ss:$9 sm:$0xff] %v771
    %s2074 = scalar_lea.vmem [#allocation1], 1
    %2075 = vst [vmem:[%s2074] ss:$9 sm:$0xff] %v772
    %v2076 = vld [vmem:[#allocation1] sm:$0xff]
    %v2077 = vld [vmem:[#allocation1 + $0x9] sm:$0xff]
    %2078 = vrot.lane.b32.xlu0 %v2076, 32
    %v2079 = vpop.permute.xlu0 %2078
    %2080 = vrot.lane.b32.xlu0 %v2077, 32
    %v2081 = vpop.permute.xlu0 %2080
    %v2082 = vsel %vm967, %v2079, %v2081
    %2085 = vst [vmem:[#allocation1] ss:$9 sm:$0xff] %v811
    %s2086 = scalar_lea.vmem [#allocation1], 1
    %2087 = vst [vmem:[%s2086] ss:$9 sm:$0xff] %v812
    %v2088 = vld [vmem:[#allocation1] sm:$0xff]
    %v2089 = vld [vmem:[#allocation1 + $0x9] sm:$0xff]
    %2090 = vrot.lane.b32.xlu0 %v2088, 48
    %v2091 = vpop.permute.xlu0 %2090
    %2092 = vrot.lane.b32.xlu0 %v2089, 48
    %v2093 = vpop.permute.xlu0 %2092
    %v2094 = vsel %vm982, %v2091, %v2093
    %2099 = vst [vmem:[#allocation1] ss:$9 sm:$0xff] %v851
    %s2100 = scalar_lea.vmem [#allocation1], 1
    %2101 = vst [vmem:[%s2100] ss:$9 sm:$0xff] %v852
    %v2102 = vld [vmem:[#allocation1] sm:$0xff]
    %v2103 = vld [vmem:[#allocation1 + $0x9] sm:$0xff]
    %2104 = vrot.lane.b32.xlu0 %v2102, 64
    %v2105 = vpop.permute.xlu0 %2104
    %2106 = vrot.lane.b32.xlu0 %v2103, 64
    %v2107 = vpop.permute.xlu0 %2106
    %v2108 = vsel %vm997, %v2105, %v2107
    %v2111 = vsel %vm438, %v2058, %v2067
    %v2112 = vsel %vm967, %v2070, %v2079
    %v2113 = vsel %vm982, %v2082, %v2091
    %v2114 = vsel %vm997, %v2094, %v2105
    %v2115 = vpack.c.bf16 %v2057, %v2057
    %v2116 = vpack.c.bf16 %v2111, %v2111
    %v2117 = vpack.c.bf16 %v2112, %v2112
    %v2118 = vpack.c.bf16 %v2113, %v2113
    %v2119 = vpack.c.bf16 %v2114, %v2114
    %v2120 = vpack.c.bf16 %v2108, %v2108
    %v2122 = vsel %vm1375, %v2120, 0
    %2124 = vmatpush.bf16.msra.mxu0 %v1292
    %2125 = vmatpush.bf16.msra.mxu0 %v1291
    %2126 = vmatpush.bf16.msra.mxu0 %v1290
    %2127 = vmatpush.bf16.msra.mxu0 %v1289
    %2128 = vmatpush.bf16.msra.mxu0 %v1288
    %2129 = vmatpush.bf16.msra.mxu0 %v1287
    %2130 = vmatpush.bf16.msra.mxu0 %v1286
    %2131 = vmatpush.bf16.msra.mxu0 %v1285
    %2132 = vmatmul.bf16.gmra.mxu0 %v2115
    %v2133 = vpop.f32.mrf.mxu0
    %v2134 = vadd.f32 %v1103, %v2133
    %v2135 = vpop.f32.mrf.mxu0
    %2136 = vdwg.mxu0
    %2137 = vmatpush.bf16.msra.mxu0 %v1300
    %2138 = vmatpush.bf16.msra.mxu0 %v1299
    %2139 = vmatpush.bf16.msra.mxu0 %v1298
    %2140 = vmatpush.bf16.msra.mxu0 %v1297
    %2141 = vmatpush.bf16.msra.mxu0 %v1296
    %2142 = vmatpush.bf16.msra.mxu0 %v1295
    %2143 = vmatpush.bf16.msra.mxu0 %v1294
    %2144 = vmatpush.bf16.msra.mxu0 %v1293
    %2145 = vmatmul.bf16.gmra.mxu0 %v2116
    %v2146 = vpop.f32.mrf.mxu0
    %v2147 = vadd.f32 %v2134, %v2146
    %v2148 = vpop.f32.mrf.mxu0
    %2149 = vdwg.mxu0
    %2150 = vmatpush.bf16.msra.mxu0 %v1308
    %2151 = vmatpush.bf16.msra.mxu0 %v1307
    %2152 = vmatpush.bf16.msra.mxu0 %v1306
    %2153 = vmatpush.bf16.msra.mxu0 %v1305
    %2154 = vmatpush.bf16.msra.mxu0 %v1304
    %2155 = vmatpush.bf16.msra.mxu0 %v1303
    %2156 = vmatpush.bf16.msra.mxu0 %v1302
    %2157 = vmatpush.bf16.msra.mxu0 %v1301
    %2158 = vmatmul.bf16.gmra.mxu0 %v2117
    %v2159 = vpop.f32.mrf.mxu0
    %v2160 = vadd.f32 %v2147, %v2159
    %v2161 = vpop.f32.mrf.mxu0
    %2162 = vdwg.mxu0
    %2163 = vmatpush.bf16.msra.mxu0 %v1316
    %2164 = vmatpush.bf16.msra.mxu0 %v1315
    %2165 = vmatpush.bf16.msra.mxu0 %v1314
    %2166 = vmatpush.bf16.msra.mxu0 %v1313
    %2167 = vmatpush.bf16.msra.mxu0 %v1312
    %2168 = vmatpush.bf16.msra.mxu0 %v1311
    %2169 = vmatpush.bf16.msra.mxu0 %v1310
    %2170 = vmatpush.bf16.msra.mxu0 %v1309
    %2171 = vmatmul.bf16.gmra.mxu0 %v2118
    %v2172 = vpop.f32.mrf.mxu0
    %v2173 = vadd.f32 %v2160, %v2172
    %v2174 = vpop.f32.mrf.mxu0
    %2175 = vdwg.mxu0
    %2176 = vmatpush.bf16.msra.mxu0 %v1324
    %2177 = vmatpush.bf16.msra.mxu0 %v1323
    %2178 = vmatpush.bf16.msra.mxu0 %v1322
    %2179 = vmatpush.bf16.msra.mxu0 %v1321
    %2180 = vmatpush.bf16.msra.mxu0 %v1320
    %2181 = vmatpush.bf16.msra.mxu0 %v1319
    %2182 = vmatpush.bf16.msra.mxu0 %v1318
    %2183 = vmatpush.bf16.msra.mxu0 %v1317
    %2184 = vmatmul.bf16.gmra.mxu0 %v2119
    %v2185 = vpop.f32.mrf.mxu0
    %v2186 = vadd.f32 %v2173, %v2185
    %v2187 = vpop.f32.mrf.mxu0
    %2188 = vdwg.mxu0
    %2189 = vmatpush.bf16.msra.mxu0 0
    %2190 = vmatpush.bf16.msra.mxu0 0
    %2191 = vmatpush.bf16.msra.mxu0 0
    %2192 = vmatpush.bf16.msra.mxu0 %v1329
    %2193 = vmatpush.bf16.msra.mxu0 %v1328
    %2194 = vmatpush.bf16.msra.mxu0 %v1327
    %2195 = vmatpush.bf16.msra.mxu0 %v1326
    %2196 = vmatpush.bf16.msra.mxu0 %v1325
    %2197 = vmatmul.bf16.gmra.mxu0 %v2122
    %v2198 = vpop.f32.mrf.mxu0
    %v2199 = vadd.f32 %v2186, %v2198
    %v2200 = vpop.f32.mrf.mxu0
    %2201 = vdwg.mxu0
    %v2202 = vmax.f32 %v2199, 0.0
    %2203 = vst [vmem:[#allocation1] ss:$9 sm:$0xff] %v731
    %s2204 = scalar_lea.vmem [#allocation1], 1
    %2205 = vst [vmem:[%s2204] ss:$9 sm:$0xff] %v732
    %v2206 = vld [vmem:[#allocation1] sm:$0xff]
    %v2207 = vld [vmem:[#allocation1 + $0x9] sm:$0xff]
    %2210 = vst [vmem:[#allocation1] ss:$9 sm:$0xff] %v771
    %s2211 = scalar_lea.vmem [#allocation1], 1
    %2212 = vst [vmem:[%s2211] ss:$9 sm:$0xff] %v772
    %v2213 = vld [vmem:[#allocation1] sm:$0xff]
    %v2214 = vld [vmem:[#allocation1 + $0x9] sm:$0xff]
    %2215 = vrot.lane.b32.xlu0 %v2213, 16
    %v2216 = vpop.permute.xlu0 %2215
    %2217 = vrot.lane.b32.xlu0 %v2214, 16
    %v2218 = vpop.permute.xlu0 %2217
    %v2219 = vsel %vm438, %v2216, %v2218
    %2222 = vst [vmem:[#allocation1] ss:$9 sm:$0xff] %v811
    %s2223 = scalar_lea.vmem [#allocation1], 1
    %2224 = vst [vmem:[%s2223] ss:$9 sm:$0xff] %v812
    %v2225 = vld [vmem:[#allocation1] sm:$0xff]
    %v2226 = vld [vmem:[#allocation1 + $0x9] sm:$0xff]
    %2227 = vrot.lane.b32.xlu0 %v2225, 32
    %v2228 = vpop.permute.xlu0 %2227
    %2229 = vrot.lane.b32.xlu0 %v2226, 32
    %v2230 = vpop.permute.xlu0 %2229
    %v2231 = vsel %vm967, %v2228, %v2230
    %2234 = vst [vmem:[#allocation1] ss:$9 sm:$0xff] %v851
    %s2235 = scalar_lea.vmem [#allocation1], 1
    %2236 = vst [vmem:[%s2235] ss:$9 sm:$0xff] %v852
    %v2237 = vld [vmem:[#allocation1] sm:$0xff]
    %v2238 = vld [vmem:[#allocation1 + $0x9] sm:$0xff]
    %2239 = vrot.lane.b32.xlu0 %v2237, 48
    %v2240 = vpop.permute.xlu0 %2239
    %2241 = vrot.lane.b32.xlu0 %v2238, 48
    %v2242 = vpop.permute.xlu0 %2241
    %v2243 = vsel %vm982, %v2240, %v2242
    %2248 = vst [vmem:[#allocation1] ss:$9 sm:$0xff] %v891
    %s2249 = scalar_lea.vmem [#allocation1], 1
    %2250 = vst [vmem:[%s2249] ss:$9 sm:$0xff] %v892
    %v2251 = vld [vmem:[#allocation1] sm:$0xff]
    %v2252 = vld [vmem:[#allocation1 + $0x9] sm:$0xff]
    %2253 = vrot.lane.b32.xlu0 %v2251, 64
    %v2254 = vpop.permute.xlu0 %2253
    %2255 = vrot.lane.b32.xlu0 %v2252, 64
    %v2256 = vpop.permute.xlu0 %2255
    %v2257 = vsel %vm997, %v2254, %v2256
    %v2260 = vsel %vm438, %v2207, %v2216
    %v2261 = vsel %vm967, %v2219, %v2228
    %v2262 = vsel %vm982, %v2231, %v2240
    %v2263 = vsel %vm997, %v2243, %v2254
    %v2264 = vpack.c.bf16 %v2206, %v2206
    %v2265 = vpack.c.bf16 %v2260, %v2260
    %v2266 = vpack.c.bf16 %v2261, %v2261
    %v2267 = vpack.c.bf16 %v2262, %v2262
    %v2268 = vpack.c.bf16 %v2263, %v2263
    %v2269 = vpack.c.bf16 %v2257, %v2257
    %v2271 = vsel %vm1375, %v2269, 0
    %2273 = vmatpush.bf16.msra.mxu0 %v1292
    %2274 = vmatpush.bf16.msra.mxu0 %v1291
    %2275 = vmatpush.bf16.msra.mxu0 %v1290
    %2276 = vmatpush.bf16.msra.mxu0 %v1289
    %2277 = vmatpush.bf16.msra.mxu0 %v1288
    %2278 = vmatpush.bf16.msra.mxu0 %v1287
    %2279 = vmatpush.bf16.msra.mxu0 %v1286
    %2280 = vmatpush.bf16.msra.mxu0 %v1285
    %2281 = vmatmul.bf16.gmra.mxu0 %v2264
    %v2282 = vpop.f32.mrf.mxu0
    %v2283 = vadd.f32 %v1103, %v2282
    %v2284 = vpop.f32.mrf.mxu0
    %2285 = vdwg.mxu0
    %2286 = vmatpush.bf16.msra.mxu0 %v1300
    %2287 = vmatpush.bf16.msra.mxu0 %v1299
    %2288 = vmatpush.bf16.msra.mxu0 %v1298
    %2289 = vmatpush.bf16.msra.mxu0 %v1297
    %2290 = vmatpush.bf16.msra.mxu0 %v1296
    %2291 = vmatpush.bf16.msra.mxu0 %v1295
    %2292 = vmatpush.bf16.msra.mxu0 %v1294
    %2293 = vmatpush.bf16.msra.mxu0 %v1293
    %2294 = vmatmul.bf16.gmra.mxu0 %v2265
    %v2295 = vpop.f32.mrf.mxu0
    %v2296 = vadd.f32 %v2283, %v2295
    %v2297 = vpop.f32.mrf.mxu0
    %2298 = vdwg.mxu0
    %2299 = vmatpush.bf16.msra.mxu0 %v1308
    %2300 = vmatpush.bf16.msra.mxu0 %v1307
    %2301 = vmatpush.bf16.msra.mxu0 %v1306
    %2302 = vmatpush.bf16.msra.mxu0 %v1305
    %2303 = vmatpush.bf16.msra.mxu0 %v1304
    %2304 = vmatpush.bf16.msra.mxu0 %v1303
    %2305 = vmatpush.bf16.msra.mxu0 %v1302
    %2306 = vmatpush.bf16.msra.mxu0 %v1301
    %2307 = vmatmul.bf16.gmra.mxu0 %v2266
    %v2308 = vpop.f32.mrf.mxu0
    %v2309 = vadd.f32 %v2296, %v2308
    %v2310 = vpop.f32.mrf.mxu0
    %2311 = vdwg.mxu0
    %2312 = vmatpush.bf16.msra.mxu0 %v1316
    %2313 = vmatpush.bf16.msra.mxu0 %v1315
    %2314 = vmatpush.bf16.msra.mxu0 %v1314
    %2315 = vmatpush.bf16.msra.mxu0 %v1313
    %2316 = vmatpush.bf16.msra.mxu0 %v1312
    %2317 = vmatpush.bf16.msra.mxu0 %v1311
    %2318 = vmatpush.bf16.msra.mxu0 %v1310
    %2319 = vmatpush.bf16.msra.mxu0 %v1309
    %2320 = vmatmul.bf16.gmra.mxu0 %v2267
    %v2321 = vpop.f32.mrf.mxu0
    %v2322 = vadd.f32 %v2309, %v2321
    %v2323 = vpop.f32.mrf.mxu0
    %2324 = vdwg.mxu0
    %2325 = vmatpush.bf16.msra.mxu0 %v1324
    %2326 = vmatpush.bf16.msra.mxu0 %v1323
    %2327 = vmatpush.bf16.msra.mxu0 %v1322
    %2328 = vmatpush.bf16.msra.mxu0 %v1321
    %2329 = vmatpush.bf16.msra.mxu0 %v1320
    %2330 = vmatpush.bf16.msra.mxu0 %v1319
    %2331 = vmatpush.bf16.msra.mxu0 %v1318
    %2332 = vmatpush.bf16.msra.mxu0 %v1317
    %2333 = vmatmul.bf16.gmra.mxu0 %v2268
    %v2334 = vpop.f32.mrf.mxu0
    %v2335 = vadd.f32 %v2322, %v2334
    %v2336 = vpop.f32.mrf.mxu0
    %2337 = vdwg.mxu0
    %2338 = vmatpush.bf16.msra.mxu0 0
    %2339 = vmatpush.bf16.msra.mxu0 0
    %2340 = vmatpush.bf16.msra.mxu0 0
    %2341 = vmatpush.bf16.msra.mxu0 %v1329
    %2342 = vmatpush.bf16.msra.mxu0 %v1328
    %2343 = vmatpush.bf16.msra.mxu0 %v1327
    %2344 = vmatpush.bf16.msra.mxu0 %v1326
    %2345 = vmatpush.bf16.msra.mxu0 %v1325
    %2346 = vmatmul.bf16.gmra.mxu0 %v2271
    %v2347 = vpop.f32.mrf.mxu0
    %v2348 = vadd.f32 %v2335, %v2347
    %v2349 = vpop.f32.mrf.mxu0
    %2350 = vdwg.mxu0
    %v2351 = vmax.f32 %v2348, 0.0
    %2352 = vst [vmem:[#allocation1] ss:$9 sm:$0xff] %v771
    %s2353 = scalar_lea.vmem [#allocation1], 1
    %2354 = vst [vmem:[%s2353] ss:$9 sm:$0xff] %v772
    %v2355 = vld [vmem:[#allocation1] sm:$0xff]
    %v2356 = vld [vmem:[#allocation1 + $0x9] sm:$0xff]
    %2359 = vst [vmem:[#allocation1] ss:$9 sm:$0xff] %v811
    %s2360 = scalar_lea.vmem [#allocation1], 1
    %2361 = vst [vmem:[%s2360] ss:$9 sm:$0xff] %v812
    %v2362 = vld [vmem:[#allocation1] sm:$0xff]
    %v2363 = vld [vmem:[#allocation1 + $0x9] sm:$0xff]
    %2364 = vrot.lane.b32.xlu0 %v2362, 16
    %v2365 = vpop.permute.xlu0 %2364
    %2366 = vrot.lane.b32.xlu0 %v2363, 16
    %v2367 = vpop.permute.xlu0 %2366
    %v2368 = vsel %vm438, %v2365, %v2367
    %2371 = vst [vmem:[#allocation1] ss:$9 sm:$0xff] %v851
    %s2372 = scalar_lea.vmem [#allocation1], 1
    %2373 = vst [vmem:[%s2372] ss:$9 sm:$0xff] %v852
    %v2374 = vld [vmem:[#allocation1] sm:$0xff]
    %v2375 = vld [vmem:[#allocation1 + $0x9] sm:$0xff]
    %2376 = vrot.lane.b32.xlu0 %v2374, 32
    %v2377 = vpop.permute.xlu0 %2376
    %2378 = vrot.lane.b32.xlu0 %v2375, 32
    %v2379 = vpop.permute.xlu0 %2378
    %v2380 = vsel %vm967, %v2377, %v2379
    %2383 = vst [vmem:[#allocation1] ss:$9 sm:$0xff] %v891
    %s2384 = scalar_lea.vmem [#allocation1], 1
    %2385 = vst [vmem:[%s2384] ss:$9 sm:$0xff] %v892
    %v2386 = vld [vmem:[#allocation1] sm:$0xff]
    %v2387 = vld [vmem:[#allocation1 + $0x9] sm:$0xff]
    %2388 = vrot.lane.b32.xlu0 %v2386, 48
    %v2389 = vpop.permute.xlu0 %2388
    %2390 = vrot.lane.b32.xlu0 %v2387, 48
    %v2391 = vpop.permute.xlu0 %2390
    %v2392 = vsel %vm982, %v2389, %v2391
    %2397 = vst [vmem:[#allocation1] ss:$9 sm:$0xff] %v931
    %s2398 = scalar_lea.vmem [#allocation1], 1
    %2399 = vst [vmem:[%s2398] ss:$9 sm:$0xff] %v932
    %v2400 = vld [vmem:[#allocation1] sm:$0xff]
    %v2401 = vld [vmem:[#allocation1 + $0x9] sm:$0xff]
    %2402 = vrot.lane.b32.xlu0 %v2400, 64
    %v2403 = vpop.permute.xlu0 %2402
    %2404 = vrot.lane.b32.xlu0 %v2401, 64
    %v2405 = vpop.permute.xlu0 %2404
    %v2406 = vsel %vm997, %v2403, %v2405
    %v2409 = vsel %vm438, %v2356, %v2365
    %v2410 = vsel %vm967, %v2368, %v2377
    %v2411 = vsel %vm982, %v2380, %v2389
    %v2412 = vsel %vm997, %v2392, %v2403
    %v2413 = vpack.c.bf16 %v2355, %v2355
    %v2414 = vpack.c.bf16 %v2409, %v2409
    %v2415 = vpack.c.bf16 %v2410, %v2410
    %v2416 = vpack.c.bf16 %v2411, %v2411
    %v2417 = vpack.c.bf16 %v2412, %v2412
    %v2418 = vpack.c.bf16 %v2406, %v2406
    %v2420 = vsel %vm1375, %v2418, 0
    %2422 = vmatpush.bf16.msra.mxu0 %v1292
    %2423 = vmatpush.bf16.msra.mxu0 %v1291
    %2424 = vmatpush.bf16.msra.mxu0 %v1290
    %2425 = vmatpush.bf16.msra.mxu0 %v1289
    %2426 = vmatpush.bf16.msra.mxu0 %v1288
    %2427 = vmatpush.bf16.msra.mxu0 %v1287
    %2428 = vmatpush.bf16.msra.mxu0 %v1286
    %2429 = vmatpush.bf16.msra.mxu0 %v1285
    %2430 = vmatmul.bf16.gmra.mxu0 %v2413
    %v2431 = vpop.f32.mrf.mxu0
    %v2432 = vadd.f32 %v1103, %v2431
    %v2433 = vpop.f32.mrf.mxu0
    %2434 = vdwg.mxu0
    %2435 = vmatpush.bf16.msra.mxu0 %v1300
    %2436 = vmatpush.bf16.msra.mxu0 %v1299
    %2437 = vmatpush.bf16.msra.mxu0 %v1298
    %2438 = vmatpush.bf16.msra.mxu0 %v1297
    %2439 = vmatpush.bf16.msra.mxu0 %v1296
    %2440 = vmatpush.bf16.msra.mxu0 %v1295
    %2441 = vmatpush.bf16.msra.mxu0 %v1294
    %2442 = vmatpush.bf16.msra.mxu0 %v1293
    %2443 = vmatmul.bf16.gmra.mxu0 %v2414
    %v2444 = vpop.f32.mrf.mxu0
    %v2445 = vadd.f32 %v2432, %v2444
    %v2446 = vpop.f32.mrf.mxu0
    %2447 = vdwg.mxu0
    %2448 = vmatpush.bf16.msra.mxu0 %v1308
    %2449 = vmatpush.bf16.msra.mxu0 %v1307
    %2450 = vmatpush.bf16.msra.mxu0 %v1306
    %2451 = vmatpush.bf16.msra.mxu0 %v1305
    %2452 = vmatpush.bf16.msra.mxu0 %v1304
    %2453 = vmatpush.bf16.msra.mxu0 %v1303
    %2454 = vmatpush.bf16.msra.mxu0 %v1302
    %2455 = vmatpush.bf16.msra.mxu0 %v1301
    %2456 = vmatmul.bf16.gmra.mxu0 %v2415
    %v2457 = vpop.f32.mrf.mxu0
    %v2458 = vadd.f32 %v2445, %v2457
    %v2459 = vpop.f32.mrf.mxu0
    %2460 = vdwg.mxu0
    %2461 = vmatpush.bf16.msra.mxu0 %v1316
    %2462 = vmatpush.bf16.msra.mxu0 %v1315
    %2463 = vmatpush.bf16.msra.mxu0 %v1314
    %2464 = vmatpush.bf16.msra.mxu0 %v1313
    %2465 = vmatpush.bf16.msra.mxu0 %v1312
    %2466 = vmatpush.bf16.msra.mxu0 %v1311
    %2467 = vmatpush.bf16.msra.mxu0 %v1310
    %2468 = vmatpush.bf16.msra.mxu0 %v1309
    %2469 = vmatmul.bf16.gmra.mxu0 %v2416
    %v2470 = vpop.f32.mrf.mxu0
    %v2471 = vadd.f32 %v2458, %v2470
    %v2472 = vpop.f32.mrf.mxu0
    %2473 = vdwg.mxu0
    %2474 = vmatpush.bf16.msra.mxu0 %v1324
    %2475 = vmatpush.bf16.msra.mxu0 %v1323
    %2476 = vmatpush.bf16.msra.mxu0 %v1322
    %2477 = vmatpush.bf16.msra.mxu0 %v1321
    %2478 = vmatpush.bf16.msra.mxu0 %v1320
    %2479 = vmatpush.bf16.msra.mxu0 %v1319
    %2480 = vmatpush.bf16.msra.mxu0 %v1318
    %2481 = vmatpush.bf16.msra.mxu0 %v1317
    %2482 = vmatmul.bf16.gmra.mxu0 %v2417
    %v2483 = vpop.f32.mrf.mxu0
    %v2484 = vadd.f32 %v2471, %v2483
    %v2485 = vpop.f32.mrf.mxu0
    %2486 = vdwg.mxu0
    %2487 = vmatpush.bf16.msra.mxu0 0
    %2488 = vmatpush.bf16.msra.mxu0 0
    %2489 = vmatpush.bf16.msra.mxu0 0
    %2490 = vmatpush.bf16.msra.mxu0 %v1329
    %2491 = vmatpush.bf16.msra.mxu0 %v1328
    %2492 = vmatpush.bf16.msra.mxu0 %v1327
    %2493 = vmatpush.bf16.msra.mxu0 %v1326
    %2494 = vmatpush.bf16.msra.mxu0 %v1325
    %2495 = vmatmul.bf16.gmra.mxu0 %v2420
    %v2496 = vpop.f32.mrf.mxu0
    %v2497 = vadd.f32 %v2484, %v2496
    %v2498 = vpop.f32.mrf.mxu0
    %2499 = vdwg.mxu0
    %v2500 = vmax.f32 %v2497, 0.0
    %v2501 = vmax.f32 %v1457, %v1606
    %2503 = vrot.lane.b32.xlu0 %v2501, 116
    %v2504 = vpop.permute.xlu0 %2503
    %2506 = vrot.lane.b32.xlu0 %v2501, 84
    %v2507 = vpop.permute.xlu0 %2506
    %v2509 = vsel %vm180, %v2504, %v2507
    %v2510 = vmax.f32 %v2501, %v2509
    %v2511 = vmax.f32 %v1755, %v1904
    %2513 = vrot.lane.b32.xlu0 %v2511, 116
    %v2514 = vpop.permute.xlu0 %2513
    %2516 = vrot.lane.b32.xlu0 %v2511, 84
    %v2517 = vpop.permute.xlu0 %2516
    %v2519 = vsel %vm180, %v2514, %v2517
    %v2520 = vmax.f32 %v2511, %v2519
    %v2521 = vmax.f32 %v2053, %v2202
    %2523 = vrot.lane.b32.xlu0 %v2521, 116
    %v2524 = vpop.permute.xlu0 %2523
    %2526 = vrot.lane.b32.xlu0 %v2521, 84
    %v2527 = vpop.permute.xlu0 %2526
    %v2529 = vsel %vm180, %v2524, %v2527
    %v2530 = vmax.f32 %v2521, %v2529
    %v2531 = vmax.f32 %v2351, %v2500
    %2533 = vrot.lane.b32.xlu0 %v2531, 116
    %v2534 = vpop.permute.xlu0 %2533
    %2536 = vrot.lane.b32.xlu0 %v2531, 84
    %v2537 = vpop.permute.xlu0 %2536
    %v2539 = vsel %vm180, %v2534, %v2537
    %v2540 = vmax.f32 %v2531, %v2539
    %2542 = vrot.lane.b32.xlu0 %v2520, 96
    %v2543 = vpop.permute.xlu0 %2542
    %2546 = vrot.lane.b32.xlu0 %v2530, 64
    %v2547 = vpop.permute.xlu0 %2546
    %2550 = vrot.lane.b32.xlu0 %v2540, 32
    %v2551 = vpop.permute.xlu0 %2550
    %vm2553 = vcmask 785408
    %v2554 = vsel %vm2553, %v2510, %v2543
    %v2555 = vsel %vm997, %v2543, %v2547
    %v2556 = vsel %vm967, %v2547, %v2551
    %v2557 = vpack.c.bf16 %v2554, %v2554
    %v2558 = vpack.c.bf16 %v2555, %v2555
    %v2559 = vpack.c.bf16 %v2556, %v2556
    %v2560 = vld [vmem:[%s5] sm:$0xf]
    %v2561 = vld [vmem:[%s5 + $0x4] sm:$0xf]
    %v2562 = vld [vmem:[%s5 + $0x8] sm:$0xf]
    %v2563 = vld [vmem:[%s5 + $0xc] sm:$0xf]
    %v2564 = vld [vmem:[%s5 + $0x10] sm:$0xf]
    %v2565 = vld [vmem:[%s5 + $0x14] sm:$0xf]
    %v2566 = vld [vmem:[%s5 + $0x18] sm:$0xf]
    %v2567 = vld [vmem:[%s5 + $0x1c] sm:$0xf]
    %v2568 = vld [vmem:[%s5 + $0x20] sm:$0xf]
    %v2569 = vld [vmem:[%s5 + $0x24] sm:$0xf]
    %v2570 = vld [vmem:[%s5 + $0x28] sm:$0xf]
    %v2571 = vld [vmem:[%s5 + $0x2c] sm:$0xf]
    %v2572 = vld [vmem:[%s5 + $0x30] sm:$0xf]
    %v2573 = vld [vmem:[%s5 + $0x34] sm:$0xf]
    %v2574 = vld [vmem:[%s5 + $0x38] sm:$0xf]
    %v2575 = vld [vmem:[%s5 + $0x3c] sm:$0xf]
    %v2576 = vld [vmem:[%s5 + $0x40] sm:$0xf]
    %v2577 = vld [vmem:[%s5 + $0x44] sm:$0xf]
    %v2578 = vld [vmem:[%s5 + $0x48] sm:$0xf]
    %v2579 = vld [vmem:[%s5 + $0x4c] sm:$0xf]
    %v2580 = vld [vmem:[%s5 + $0x50] sm:$0xf]
    %v2581 = vld [vmem:[%s5 + $0x54] sm:$0xf]
    %v2582 = vld [vmem:[%s5 + $0x58] sm:$0xf]
    %v2583 = vld [vmem:[%s5 + $0x5c] sm:$0xf]
    %v2584 = vld [vmem:[%s5 + $0x60] sm:$0xf]
    %v2585 = vld [vmem:[%s5 + $0x64] sm:$0xf]
    %v2586 = vld [vmem:[%s5 + $0x68] sm:$0xf]
    %v2587 = vld [vmem:[%s5 + $0x6c] sm:$0xf]
    %v2588 = vld [vmem:[%s5 + $0x70] sm:$0xf]
    %v2589 = vld [vmem:[%s5 + $0x74] sm:$0xf]
    %v2590 = vld [vmem:[%s5 + $0x78] sm:$0xf]
    %v2591 = vld [vmem:[%s5 + $0x7c] sm:$0xf]
    %v2592 = vld [vmem:[%s5 + $0x80] sm:$0xf]
    %v2593 = vld [vmem:[%s5 + $0x84] sm:$0xf]
    %v2594 = vld [vmem:[%s5 + $0x88] sm:$0xf]
    %v2595 = vld [vmem:[%s5 + $0x8c] sm:$0xf]
    %v2596 = vld [vmem:[%s5 + $0x90] sm:$0xf]
    %v2597 = vld [vmem:[%s5 + $0x94] sm:$0xf]
    %v2598 = vld [vmem:[%s5 + $0x98] sm:$0xf]
    %v2599 = vld [vmem:[%s5 + $0x9c] sm:$0xf]
    %v2600 = vld [vmem:[%s5 + $0xa0] sm:$0xf]
    %v2601 = vld [vmem:[%s5 + $0xa4] sm:$0xf]
    %v2602 = vld [vmem:[%s5 + $0xa8] sm:$0xf]
    %v2603 = vld [vmem:[%s5 + $0xac] sm:$0xf]
    %v2604 = vld [vmem:[%s5 + $0xb0] sm:$0xf]
    %v2605 = vld [vmem:[%s5 + $0xb4] sm:$0xf]
    %v2606 = vld [vmem:[%s5 + $0xb8] sm:$0xf]
    %v2607 = vld [vmem:[%s5 + $0xbc] sm:$0xf]
    %v2608 = vld [vmem:[%s6] sm:$0x1]
    %v2610 = vperm.slane %v2608, 0
    %v2660 = vunpack.c.l.b16 %v2560
    %v2661 = vunpack.c.l.b16 %v2561
    %v2662 = vunpack.c.l.b16 %v2562
    %v2663 = vunpack.c.l.b16 %v2563
    %v2664 = vunpack.c.l.b16 %v2564
    %v2665 = vunpack.c.l.b16 %v2565
    %v2666 = vunpack.c.l.b16 %v2566
    %v2667 = vunpack.c.l.b16 %v2567
    %v2668 = vunpack.c.l.b16 %v2568
    %v2669 = vunpack.c.l.b16 %v2569
    %v2670 = vunpack.c.l.b16 %v2570
    %v2671 = vunpack.c.l.b16 %v2571
    %v2672 = vunpack.c.l.b16 %v2572
    %v2673 = vunpack.c.l.b16 %v2573
    %v2674 = vunpack.c.l.b16 %v2574
    %v2675 = vunpack.c.l.b16 %v2575
    %v2676 = vunpack.c.l.b16 %v2576
    %v2677 = vunpack.c.l.b16 %v2577
    %v2678 = vunpack.c.l.b16 %v2578
    %v2679 = vunpack.c.l.b16 %v2579
    %v2680 = vunpack.c.l.b16 %v2580
    %v2681 = vunpack.c.l.b16 %v2581
    %v2682 = vunpack.c.l.b16 %v2582
    %v2683 = vunpack.c.l.b16 %v2583
    %v2684 = vunpack.c.l.b16 %v2584
    %v2685 = vunpack.c.l.b16 %v2585
    %v2686 = vunpack.c.l.b16 %v2586
    %v2687 = vunpack.c.l.b16 %v2587
    %v2688 = vunpack.c.l.b16 %v2588
    %v2689 = vunpack.c.l.b16 %v2589
    %v2690 = vunpack.c.l.b16 %v2590
    %v2691 = vunpack.c.l.b16 %v2591
    %v2692 = vunpack.c.l.b16 %v2592
    %v2693 = vunpack.c.l.b16 %v2593
    %v2694 = vunpack.c.l.b16 %v2594
    %v2695 = vunpack.c.l.b16 %v2595
    %v2696 = vunpack.c.l.b16 %v2596
    %v2697 = vunpack.c.l.b16 %v2597
    %v2698 = vunpack.c.l.b16 %v2598
    %v2699 = vunpack.c.l.b16 %v2599
    %v2700 = vunpack.c.l.b16 %v2600
    %v2701 = vunpack.c.l.b16 %v2601
    %v2702 = vunpack.c.l.b16 %v2602
    %v2703 = vunpack.c.l.b16 %v2603
    %v2704 = vunpack.c.l.b16 %v2604
    %v2705 = vunpack.c.l.b16 %v2605
    %v2706 = vunpack.c.l.b16 %v2606
    %v2707 = vunpack.c.l.b16 %v2607
    %v2708 = vpack.c.b16 %v2661, %v2660
    %v2709 = vpack.c.b16 %v2663, %v2662
    %v2710 = vpack.c.b16 %v2665, %v2664
    %v2711 = vpack.c.b16 %v2667, %v2666
    %v2712 = vpack.c.b16 %v2669, %v2668
    %v2713 = vpack.c.b16 %v2671, %v2670
    %v2714 = vpack.c.b16 %v2673, %v2672
    %v2715 = vpack.c.b16 %v2675, %v2674
    %v2716 = vpack.c.b16 %v2677, %v2676
    %v2717 = vpack.c.b16 %v2679, %v2678
    %v2718 = vpack.c.b16 %v2681, %v2680
    %v2719 = vpack.c.b16 %v2683, %v2682
    %v2720 = vpack.c.b16 %v2685, %v2684
    %v2721 = vpack.c.b16 %v2687, %v2686
    %v2722 = vpack.c.b16 %v2689, %v2688
    %v2723 = vpack.c.b16 %v2691, %v2690
    %v2724 = vpack.c.b16 %v2693, %v2692
    %v2725 = vpack.c.b16 %v2695, %v2694
    %v2726 = vpack.c.b16 %v2697, %v2696
    %v2727 = vpack.c.b16 %v2699, %v2698
    %v2728 = vpack.c.b16 %v2701, %v2700
    %v2729 = vpack.c.b16 %v2703, %v2702
    %v2730 = vpack.c.b16 %v2705, %v2704
    %v2731 = vpack.c.b16 %v2707, %v2706
    %2756 = vmatpush.bf16.msra.mxu0 %v2715
    %2757 = vmatpush.bf16.msra.mxu0 %v2714
    %2758 = vmatpush.bf16.msra.mxu0 %v2713
    %2759 = vmatpush.bf16.msra.mxu0 %v2712
    %2760 = vmatpush.bf16.msra.mxu0 %v2711
    %2761 = vmatpush.bf16.msra.mxu0 %v2710
    %2762 = vmatpush.bf16.msra.mxu0 %v2709
    %2763 = vmatpush.bf16.msra.mxu0 %v2708
    %2764 = vmatmul.bf16.gmra.mxu0 %v2557
    %v2765 = vpop.f32.mrf.mxu0
    %v2766 = vadd.f32 %v2610, %v2765
    %v2767 = vpop.f32.mrf.mxu0
    %2768 = vdwg.mxu0
    %2769 = vmatpush.bf16.msra.mxu0 %v2723
    %2770 = vmatpush.bf16.msra.mxu0 %v2722
    %2771 = vmatpush.bf16.msra.mxu0 %v2721
    %2772 = vmatpush.bf16.msra.mxu0 %v2720
    %2773 = vmatpush.bf16.msra.mxu0 %v2719
    %2774 = vmatpush.bf16.msra.mxu0 %v2718
    %2775 = vmatpush.bf16.msra.mxu0 %v2717
    %2776 = vmatpush.bf16.msra.mxu0 %v2716
    %2777 = vmatmul.bf16.gmra.mxu0 %v2558
    %v2778 = vpop.f32.mrf.mxu0
    %v2779 = vadd.f32 %v2766, %v2778
    %v2780 = vpop.f32.mrf.mxu0
    %2781 = vdwg.mxu0
    %2782 = vmatpush.bf16.msra.mxu0 %v2731
    %2783 = vmatpush.bf16.msra.mxu0 %v2730
    %2784 = vmatpush.bf16.msra.mxu0 %v2729
    %2785 = vmatpush.bf16.msra.mxu0 %v2728
    %2786 = vmatpush.bf16.msra.mxu0 %v2727
    %2787 = vmatpush.bf16.msra.mxu0 %v2726
    %2788 = vmatpush.bf16.msra.mxu0 %v2725
    %2789 = vmatpush.bf16.msra.mxu0 %v2724
    %2790 = vmatmul.bf16.gmra.mxu0 %v2559
    %v2791 = vpop.f32.mrf.mxu0
    %v2792 = vadd.f32 %v2779, %v2791
    %v2793 = vpop.f32.mrf.mxu0
    %2794 = vdwg.mxu0
    %v2795 = vmax.f32 %v2792, 0.0
    %v2796 = vpack.c.bf16 %v2795, %v2795
    %v2797 = vld [vmem:[%s7] sm:$0xf]
    %v2798 = vld [vmem:[%s7 + $0x4] sm:$0xf]
    %v2799 = vld [vmem:[%s7 + $0x8] sm:$0xf]
    %v2800 = vld [vmem:[%s7 + $0xc] sm:$0xf]
    %v2801 = vld [vmem:[%s7 + $0x10] sm:$0xf]
    %v2802 = vld [vmem:[%s7 + $0x14] sm:$0xf]
    %v2803 = vld [vmem:[%s7 + $0x18] sm:$0xf]
    %v2804 = vld [vmem:[%s7 + $0x1c] sm:$0xf]
    %v2805 = vld [vmem:[%s7 + $0x20] sm:$0xf]
    %v2806 = vld [vmem:[%s7 + $0x24] sm:$0xf]
    %v2807 = vld [vmem:[%s7 + $0x28] sm:$0xf]
    %v2808 = vld [vmem:[%s7 + $0x2c] sm:$0xf]
    %v2809 = vld [vmem:[%s7 + $0x30] sm:$0xf]
    %v2810 = vld [vmem:[%s7 + $0x34] sm:$0xf]
    %v2811 = vld [vmem:[%s7 + $0x38] sm:$0xf]
    %v2812 = vld [vmem:[%s8] sm:$0x1]
    %v2814 = vperm.slane %v2812, 0
    %v2831 = vunpack.c.l.b16 %v2797
    %v2832 = vunpack.c.l.b16 %v2798
    %v2833 = vunpack.c.l.b16 %v2799
    %v2834 = vunpack.c.l.b16 %v2800
    %v2835 = vunpack.c.l.b16 %v2801
    %v2836 = vunpack.c.l.b16 %v2802
    %v2837 = vunpack.c.l.b16 %v2803
    %v2838 = vunpack.c.l.b16 %v2804
    %v2839 = vunpack.c.l.b16 %v2805
    %v2840 = vunpack.c.l.b16 %v2806
    %v2841 = vunpack.c.l.b16 %v2807
    %v2842 = vunpack.c.l.b16 %v2808
    %v2843 = vunpack.c.l.b16 %v2809
    %v2844 = vunpack.c.l.b16 %v2810
    %v2845 = vunpack.c.l.b16 %v2811
    %v2846 = vpack.c.b16 %v2832, %v2831
    %v2847 = vpack.c.b16 %v2834, %v2833
    %v2848 = vpack.c.b16 %v2836, %v2835
    %v2849 = vpack.c.b16 %v2838, %v2837
    %v2850 = vpack.c.b16 %v2840, %v2839
    %v2851 = vpack.c.b16 %v2842, %v2841
    %v2852 = vpack.c.b16 %v2844, %v2843
    %v2853 = vpack.c.b16 %v2845, %v2845
    %vm2861 = vcmask 982016
    %v2863 = vsel %vm2861, %v2796, 0
    %vm2865 = vcmask 1043456
    %v2867 = vsel %vm2865, %v2853, 0
    %2869 = vmatpush.bf16.msra.mxu0 %v2867
    %2870 = vmatpush.bf16.msra.mxu0 %v2852
    %2871 = vmatpush.bf16.msra.mxu0 %v2851
    %2872 = vmatpush.bf16.msra.mxu0 %v2850
    %2873 = vmatpush.bf16.msra.mxu0 %v2849
    %2874 = vmatpush.bf16.msra.mxu0 %v2848
    %2875 = vmatpush.bf16.msra.mxu0 %v2847
    %2876 = vmatpush.bf16.msra.mxu0 %v2846
    %2877 = vmatmul.bf16.gmra.mxu0 %v2863
    %v2878 = vpop.f32.mrf.mxu0
    %v2879 = vadd.f32 %v2814, %v2878
    %v2880 = vpop.f32.mrf.mxu0
    %2881 = vdwg.mxu0
    %v2882 = vmax.f32 %v2879, 0.0
    %v2883 = vpack.c.bf16 %v2882, %v2882
    %v2884 = vld [vmem:[%s9] sm:$0xf]
    %v2885 = vld [vmem:[%s9 + $0x4] sm:$0xf]
    %v2886 = vld [vmem:[%s9 + $0x8] sm:$0xf]
    %v2887 = vld [vmem:[%s9 + $0xc] sm:$0xf]
    %v2888 = vld [vmem:[%s9 + $0x10] sm:$0xf]
    %v2889 = vld [vmem:[%s9 + $0x14] sm:$0xf]
    %v2890 = vld [vmem:[%s9 + $0x18] sm:$0xf]
    %v2891 = vld [vmem:[%s9 + $0x1c] sm:$0x3]
    %v2892 = vld [vmem:[%s10] sm:$0x1]
    %v2894 = vperm.slane %v2892, 0
    %v2904 = vunpack.c.l.b16 %v2884
    %v2905 = vunpack.c.l.b16 %v2885
    %v2906 = vunpack.c.l.b16 %v2886
    %v2907 = vunpack.c.l.b16 %v2887
    %v2908 = vunpack.c.l.b16 %v2888
    %v2909 = vunpack.c.l.b16 %v2889
    %v2910 = vunpack.c.l.b16 %v2890
    %v2911 = vunpack.c.l.b16 %v2891
    %v2912 = vpack.c.b16 %v2905, %v2904
    %v2913 = vpack.c.b16 %v2907, %v2906
    %v2914 = vpack.c.b16 %v2909, %v2908
    %v2915 = vpack.c.b16 %v2911, %v2910
    %vm2919 = vcmask 490496
    %v2921 = vsel %vm2919, %v2883, 0
    %v2924 = vsel %vm322, %v2915, 0
    %2926 = vmatpush.bf16.msra.mxu0 0
    %2927 = vmatpush.bf16.msra.mxu0 0
    %2928 = vmatpush.bf16.msra.mxu0 0
    %2929 = vmatpush.bf16.msra.mxu0 0
    %2930 = vmatpush.bf16.msra.mxu0 %v2924
    %2931 = vmatpush.bf16.msra.mxu0 %v2914
    %2932 = vmatpush.bf16.msra.mxu0 %v2913
    %2933 = vmatpush.bf16.msra.mxu0 %v2912
    %2934 = vmatmul.bf16.gmra.mxu0 %v2921
    %v2935 = vpop.f32.mrf.mxu0
    %v2936 = vadd.f32 %v2894, %v2935
    %v2937 = vpop.f32.mrf.mxu0
    %2938 = vdwg.mxu0
    %2939 = vst [vmem:[#allocation3] sm:$0x3] %v2936
    // Predicated region
    $region46: #{network_forward.1} parent=1 // pred_check
      _
    $region47: #{network_forward.1} parent=1 // pred_check_branch
      %2941 = sbr.rel (0) target = $region49
    $region48: #{network_forward.1} parent=1 // pred_region
      %2943 = vsyncadd [#allocation4], 0
      %s2945 = sshll.u32 [#allocation3], 4
      %s2946 = int_to_ptr.vmem [resolvable:$true] %s2945
      %s2947 = sshll.u32 %s11, 4
      %s2948 = int_to_ptr.hbm [resolvable:$true] %s2947
      %2950 = dma.vmem_to_hbm [thread:$0]  %s2946, 32, %s2948, [#allocation4]
    $region49: #{network_forward.1} parent=1 // pred_fallthru
      _
    // Predicated region
    $region50: #{network_forward.1} parent=1 // pred_check
      _
    $region51: #{network_forward.1} parent=1 // pred_check_branch
      %2952 = sbr.rel (0) target = $region53
    $region52: #{network_forward.1} parent=1 // pred_region
      %2954 = dma.done [#allocation4], 32
    $region53: #{network_forward.1} parent=1 // pred_fallthru
      _
    %2955 = vsyncpa [#allocation4], 1

</llo_original>
